<compile_context>
chip_gen: v7x
topology: tpu7x:2x2x1
jax: 0.10.0
libtpu: 0.0.40
codegen_flags: <defaults>
</compile_context>

<pallas_src>
import functools

import jax
import jax.numpy as jnp
from jax.experimental import pallas as pl
from jax.experimental.pallas import tpu as pltpu


def _round_up(v, m):
    return (v + m - 1) // m * m


# -----------------------------------------------------------------------------
# Pallas kernel: out = act(x @ w + b), bf16 MXU inputs, f32 accumulate.
# -----------------------------------------------------------------------------
def _matmul_bias_act_kernel(x_ref, w_ref, b_ref, o_ref, *, act):
    acc = jnp.dot(x_ref[...], w_ref[...], preferred_element_type=jnp.float32)
    acc = acc + b_ref[...]                       # (1, N) f32 broadcasts over rows
    if act == "relu":
        acc = jnp.maximum(acc, 0.0)
    elif act == "sigmoid":
        # exp goes to the EUP; exact reciprocal keeps the output inside [0, 1].
        acc = pl.reciprocal(1.0 + jnp.exp(-acc), approx=False)
    o_ref[...] = acc.astype(o_ref.dtype)


def matmul_bias_act(x, w, b2d, act, out_dtype):
    """x: (M, K), w: (K, N) bf16, b2d: (1, N) f32 -> (M, N) in `out_dtype`.

    One grid axis over rows. K / N blocks span the full array dims, so no
    zero-padded HBM copies of the operands and no output slicing afterwards.
    """
    M, K = x.shape
    _, N = w.shape

    TM = min(512, _round_up(M, 8))   # big row tile, 8-aligned, never > needed
    grid = (pl.cdiv(M, TM),)

    return pl.pallas_call(
        functools.partial(_matmul_bias_act_kernel, act=act),
        out_shape=jax.ShapeDtypeStruct((M, N), out_dtype),
        grid=grid,
        in_specs=[
            pl.BlockSpec((TM, K), lambda i: (i, 0)),   # activations, K = full dim
            pl.BlockSpec((K, N), lambda i: (0, 0)),    # weight resident, full dims
            pl.BlockSpec((1, N), lambda i: (0, 0)),    # bias resident, full dims
        ],
        out_specs=pl.BlockSpec((TM, N), lambda i: (i, 0)),
        compiler_params=pltpu.CompilerParams(
            dimension_semantics=("parallel",),
            vmem_limit_bytes=32 * 1024 * 1024,
        ),
    )(x.astype(jnp.bfloat16), w, b2d)


# -----------------------------------------------------------------------------
# Conv2d (k=3, stride 2, pad 1): im2col (fused pad+slice+concat) + fused kernel.
# -----------------------------------------------------------------------------
def conv2d(x_nhwc, wmat, b2d, *, stride, padding, kh, kw, act, out_dtype):
    xpad = jnp.pad(x_nhwc, ((0, 0), (padding, padding), (padding, padding), (0, 0)))
    N, Hp, Wp, Cin = xpad.shape
    Cout = wmat.shape[1]
    Ho = (Hp - kh) // stride + 1
    Wo = (Wp - kw) // stride + 1

    cols = []
    for i in range(kh):
        for j in range(kw):
            cols.append(
                xpad[:,
                     i:i + stride * (Ho - 1) + 1:stride,
                     j:j + stride * (Wo - 1) + 1:stride,
                     :])
    # patch feature ordering: (kh, kw, Cin) — matches the prepared weight layout
    patches = jnp.concatenate(cols, axis=-1).reshape(N * Ho * Wo, kh * kw * Cin)

    y = matmul_bias_act(patches, wmat, b2d, act, out_dtype)
    return y.reshape(N, Ho, Wo, Cout)


# -----------------------------------------------------------------------------
# ConvTranspose2d (k=3, stride 2, pad 1, output_padding 1) — sub-pixel form.
# Output pixel (2m+py, 2n+px) only receives kernel taps ky with 2*dh+ky = py+1,
# reading x[m+dh]; so the whole layer is one 2x2 stride-1 conv over the
# high-side-padded input with a (4*Cin, 4*Cout) weight (one column block per
# output phase), followed by a phase interleave.
# -----------------------------------------------------------------------------
def _tap_index(phase, d):
    if phase == 0:
        return 1 if d == 0 else None
    return 2 if d == 0 else 0


def conv_transpose2d_subpixel(x_nhwc, w_all, b_all2d, *, act, out_dtype):
    N, H, W, Cin = x_nhwc.shape
    Cout = w_all.shape[1] // 4

    # High-side zero pad so (m+1, n+1) reads beyond the edge contribute zero.
    xp = jnp.pad(x_nhwc, ((0, 0), (0, 1), (0, 1), (0, 0)))

    # 2x2 stride-1 patches over the un-dilated input, ordering (dh, dw, Cin).
    cols = [xp[:, dh:dh + H, dw:dw + W, :] for dh in (0, 1) for dw in (0, 1)]
    patches = jnp.concatenate(cols, axis=-1).reshape(N * H * W, 4 * Cin)

    y = matmul_bias_act(patches, w_all, b_all2d, act, out_dtype)  # (N*H*W, 4*Cout)

    # Interleave the 4 phases: (N, H, W, py, px, Cout) -> (N, 2H, 2W, Cout)
    y = y.reshape(N, H, W, 2, 2, Cout)
    y = jnp.transpose(y, (0, 1, 3, 2, 4, 5)).reshape(N, 2 * H, 2 * W, Cout)
    return y


# -----------------------------------------------------------------------------
# One-time parameter preparation (layout + dtype), hoisted out of the forward.
# -----------------------------------------------------------------------------
def prepare_params(params):
    p = {}
    # Encoder convs: (Cout, Cin, kh, kw) -> (kh*kw*Cin, Cout) bf16
    for name in ("enc1", "enc2", "enc3"):
        w = params[name + "_w"]
        Cout, Cin, kh, kw = w.shape
        wmat = jnp.transpose(w, (2, 3, 1, 0)).reshape(kh * kw * Cin, Cout)
        p[name + "_w"] = wmat.astype(jnp.bfloat16)
        p[name + "_b"] = params[name + "_b"].astype(jnp.float32).reshape(1, -1)

    # Decoder transposed convs: (Cin, Cout, kh, kw) -> (4*Cin, 4*Cout) bf16
    for name in ("dec1", "dec2", "dec3"):
        w = params[name + "_w"]
        Cin, Cout, kh, kw = w.shape
        blocks = []
        for py in (0, 1):
            for px in (0, 1):
                w4 = jnp.zeros((2, 2, Cin, Cout), w.dtype)
                for dh in (0, 1):
                    for dw in (0, 1):
                        i = _tap_index(py, dh)
                        j = _tap_index(px, dw)
                        if i is not None and j is not None:
                            w4 = w4.at[dh, dw].set(w[:, :, i, j])
                blocks.append(w4.reshape(4 * Cin, Cout))
        p[name + "_w"] = jnp.concatenate(blocks, axis=-1).astype(jnp.bfloat16)
        p[name + "_b"] = jnp.tile(params[name + "_b"], 4).astype(jnp.float32).reshape(1, -1)
    return p


# -----------------------------------------------------------------------------
# Autoencoder forward (NCHW in / NCHW out, matching PyTorch)
# -----------------------------------------------------------------------------
def autoencoder_forward(x_nchw, p):
    x = jnp.transpose(x_nchw, (0, 2, 3, 1)).astype(jnp.bfloat16)   # NCHW -> NHWC

    # encoder: Conv2d(3->64)/ReLU, Conv2d(64->128)/ReLU, Conv2d(128->256)/ReLU
    x = conv2d(x, p["enc1_w"], p["enc1_b"], stride=2, padding=1, kh=3, kw=3,
               act="relu", out_dtype=jnp.bfloat16)
    x = conv2d(x, p["enc2_w"], p["enc2_b"], stride=2, padding=1, kh=3, kw=3,
               act="relu", out_dtype=jnp.bfloat16)
    x = conv2d(x, p["enc3_w"], p["enc3_b"], stride=2, padding=1, kh=3, kw=3,
               act="relu", out_dtype=jnp.bfloat16)

    # decoder: ConvTranspose2d(256->128)/ReLU, (128->64)/ReLU, (64->3)/Sigmoid
    x = conv_transpose2d_subpixel(x, p["dec1_w"], p["dec1_b"], act="relu",
                                  out_dtype=jnp.bfloat16)
    x = conv_transpose2d_subpixel(x, p["dec2_w"], p["dec2_b"], act="relu",
                                  out_dtype=jnp.bfloat16)
    x = conv_transpose2d_subpixel(x, p["dec3_w"], p["dec3_b"], act="sigmoid",
                                  out_dtype=jnp.float32)

    return jnp.transpose(x, (0, 3, 1, 2))   # NHWC -> NCHW, f32


# -----------------------------------------------------------------------------
# Pure-JAX f32 reference (lax convolutions) for correctness verification.
# -----------------------------------------------------------------------------
def _ref_conv2d(x, w_oihw, b, stride, padding):
    w_hwio = jnp.transpose(w_oihw, (2, 3, 1, 0))
    y = jax.lax.conv_general_dilated(
        x, w_hwio, window_strides=(stride, stride),
        padding=((padding, padding), (padding, padding)),
        dimension_numbers=("NHWC", "HWIO", "NHWC"))
    return y + b


def _ref_conv_transpose2d(x, w_iohw, b, stride, padding, output_padding):
    kh = w_iohw.shape[2]
    w_hwio = jnp.transpose(w_iohw[:, :, ::-1, ::-1], (2, 3, 0, 1))
    lo = kh - 1 - padding
    hi = kh - 1 - padding + output_padding
    y = jax.lax.conv_general_dilated(
        x, w_hwio, window_strides=(1, 1),
        padding=((lo, hi), (lo, hi)),
        lhs_dilation=(stride, stride),
        dimension_numbers=("NHWC", "HWIO", "NHWC"))
    return y + b


def reference_forward(x_nchw, params):
    x = jnp.transpose(x_nchw, (0, 2, 3, 1)).astype(jnp.float32)
    x = jax.nn.relu(_ref_conv2d(x, params["enc1_w"], params["enc1_b"], 2, 1))
    x = jax.nn.relu(_ref_conv2d(x, params["enc2_w"], params["enc2_b"], 2, 1))
    x = jax.nn.relu(_ref_conv2d(x, params["enc3_w"], params["enc3_b"], 2, 1))
    x = jax.nn.relu(_ref_conv_transpose2d(x, params["dec1_w"], params["dec1_b"], 2, 1, 1))
    x = jax.nn.relu(_ref_conv_transpose2d(x, params["dec2_w"], params["dec2_b"], 2, 1, 1))
    x = jax.nn.sigmoid(_ref_conv_transpose2d(x, params["dec3_w"], params["dec3_b"], 2, 1, 1))
    return jnp.transpose(x, (0, 3, 1, 2))


def init_params(key):
    ks = jax.random.split(key, 12)
    scale = 0.05

    def w(k, shape):
        return jax.random.normal(k, shape, jnp.float32) * scale

    def b(k, n):
        return jax.random.normal(k, (n,), jnp.float32) * scale

    return {
        # Conv2d weights: (Cout, Cin, kh, kw)
        "enc1_w": w(ks[0], (64, 3, 3, 3)),    "enc1_b": b(ks[1], 64),
        "enc2_w": w(ks[2], (128, 64, 3, 3)),  "enc2_b": b(ks[3], 128),
        "enc3_w": w(ks[4], (256, 128, 3, 3)), "enc3_b": b(ks[5], 256),
        # ConvTranspose2d weights: (Cin, Cout, kh, kw)
        "dec1_w": w(ks[6], (256, 128, 3, 3)), "dec1_b": b(ks[7], 128),
        "dec2_w": w(ks[8], (128, 64, 3, 3)),  "dec2_b": b(ks[9], 64),
        "dec3_w": w(ks[10], (64, 3, 3, 3)),   "dec3_b": b(ks[11], 3),
    }


if __name__ == "__main__":
    key = jax.random.PRNGKey(0)
    pkey, xkey = jax.random.split(key)
    params = init_params(pkey)
    prepared = prepare_params(params)   # one-time weight layout / dtype prep

    # Small NCHW input consistent with the module's 3-channel conv stack.
    x = jax.random.uniform(xkey, (2, 3, 16, 16), jnp.float32)

    fwd = jax.jit(autoencoder_forward)
    y = fwd(x, prepared)
    jax.block_until_ready(y)

    assert y.shape == (2, 3, 16, 16), y.shape
    assert y.dtype == jnp.float32
    # sigmoid output range sanity check
    assert bool(jnp.all((y >= 0.0) & (y <= 1.0)))

    # Numerical check against a pure-JAX f32 reference (bf16 MXU path inside
    # the Pallas kernels -> loose tolerance, large margin at these magnitudes).
    y_ref = reference_forward(x, params)
    err = float(jnp.max(jnp.abs(y - y_ref)))
    assert err < 3e-2, f"max abs error vs reference: {err}"

    print("KERNEL_OK")
</pallas_src>

<mosaic_0001>
module attributes {stable_mosaic.version = 11 : i64} {
  func.func @_matmul_bias_act_kernel(%arg0: i32, %arg1: memref<128x27xbf16, #tpu.memory_space<vmem>>, %arg2: memref<27x64xbf16, #tpu.memory_space<vmem>>, %arg3: memref<1x64xf32, #tpu.memory_space<vmem>>, %arg4: memref<128x64xbf16, #tpu.memory_space<vmem>>) attributes {dimension_semantics = [#tpu.dimension_semantics<parallel>], iteration_bounds = array<i64: 1>, scalar_prefetch = 0 : i64, scratch_operands = 0 : i64, tpu.core_type = #tpu.core_type<tc>, window_params = [{transform_indices = @transform_0, window_bounds = array<i64: 128, 27>}, {pipeline_mode = #tpu.pipeline_mode<synchronous>, transform_indices = @transform_1, window_bounds = array<i64: 27, 64>}, {pipeline_mode = #tpu.pipeline_mode<synchronous>, transform_indices = @transform_2, window_bounds = array<i64: 1, 64>}, {transform_indices = @transform_3, window_bounds = array<i64: 128, 64>}]} {
    %c0 = arith.constant 0 : index
    %c0_0 = arith.constant 0 : index
    %0 = vector.load %arg1[%c0, %c0_0] : memref<128x27xbf16, #tpu.memory_space<vmem>>, vector<128x27xbf16>
    %c0_1 = arith.constant 0 : index
    %c0_2 = arith.constant 0 : index
    %1 = vector.load %arg2[%c0_1, %c0_2] : memref<27x64xbf16, #tpu.memory_space<vmem>>, vector<27x64xbf16>
    %cst = arith.constant dense<0.000000e+00> : vector<128x64xf32>
    %2 = tpu.matmul %0, %1, %cst {dimension_numbers = #tpu.dot_dimension_numbers<[1], [0], [0], [1], [0, 0, 1, 1], [], []>} : vector<128x27xbf16>, vector<27x64xbf16>, vector<128x64xf32> -> vector<128x64xf32>
    %c0_3 = arith.constant 0 : index
    %c0_4 = arith.constant 0 : index
    %3 = vector.load %arg3[%c0_3, %c0_4] : memref<1x64xf32, #tpu.memory_space<vmem>>, vector<1x64xf32>
    %4 = vector.broadcast %3 : vector<1x64xf32> to vector<128x64xf32>
    %5 = arith.addf %2, %4 : vector<128x64xf32>
    %cst_5 = arith.constant 0.000000e+00 : f32
    %6 = vector.broadcast %cst_5 : f32 to vector<128x64xf32>
    %7 = arith.maximumf %5, %6 : vector<128x64xf32>
    %8 = arith.truncf %7 : vector<128x64xf32> to vector<128x64xbf16>
    %c0_6 = arith.constant 0 : index
    %c0_7 = arith.constant 0 : index
    %9 = vector.load %arg4[%c0_6, %c0_7] : memref<128x64xbf16, #tpu.memory_space<vmem>>, vector<128x64xbf16>
    tpu.vector_store %arg4[%c0_6, %c0_7], %8 {strides = array<i32>} : memref<128x64xbf16, #tpu.memory_space<vmem>>, vector<128x64xbf16>,
    return
  }
  func.func @transform_0(%arg0: i32) -> (i32, i32) {
    %c0_i32 = arith.constant 0 : i32
    %c0_i32_0 = arith.constant 0 : i32
    return %arg0, %c0_i32 : i32, i32
  }
  func.func @transform_1(%arg0: i32) -> (i32, i32) {
    %c0_i32 = arith.constant 0 : i32
    %c0_i32_0 = arith.constant 0 : i32
    %c0_i32_1 = arith.constant 0 : i32
    return %c0_i32, %c0_i32_0 : i32, i32
  }
  func.func @transform_2(%arg0: i32) -> (i32, i32) {
    %c0_i32 = arith.constant 0 : i32
    %c0_i32_0 = arith.constant 0 : i32
    %c0_i32_1 = arith.constant 0 : i32
    return %c0_i32, %c0_i32_0 : i32, i32
  }
  func.func @transform_3(%arg0: i32) -> (i32, i32) {
    %c0_i32 = arith.constant 0 : i32
    %c0_i32_0 = arith.constant 0 : i32
    return %arg0, %c0_i32 : i32, i32
  }
}

module attributes {stable_mosaic.version = 11 : i64} {
  func.func @_matmul_bias_act_kernel(%arg0: i32, %arg1: memref<32x576xbf16, #tpu.memory_space<vmem>>, %arg2: memref<576x128xbf16, #tpu.memory_space<vmem>>, %arg3: memref<1x128xf32, #tpu.memory_space<vmem>>, %arg4: memref<32x128xbf16, #tpu.memory_space<vmem>>) attributes {dimension_semantics = [#tpu.dimension_semantics<parallel>], iteration_bounds = array<i64: 1>, scalar_prefetch = 0 : i64, scratch_operands = 0 : i64, tpu.core_type = #tpu.core_type<tc>, window_params = [{transform_indices = @transform_0, window_bounds = array<i64: 32, 576>}, {pipeline_mode = #tpu.pipeline_mode<synchronous>, transform_indices = @transform_1, window_bounds = array<i64: 576, 128>}, {pipeline_mode = #tpu.pipeline_mode<synchronous>, transform_indices = @transform_2, window_bounds = array<i64: 1, 128>}, {transform_indices = @transform_3, window_bounds = array<i64: 32, 128>}]} {
    %c0 = arith.constant 0 : index
    %c0_0 = arith.constant 0 : index
    %0 = vector.load %arg1[%c0, %c0_0] : memref<32x576xbf16, #tpu.memory_space<vmem>>, vector<32x576xbf16>
    %c0_1 = arith.constant 0 : index
    %c0_2 = arith.constant 0 : index
    %1 = vector.load %arg2[%c0_1, %c0_2] : memref<576x128xbf16, #tpu.memory_space<vmem>>, vector<576x128xbf16>
    %cst = arith.constant dense<0.000000e+00> : vector<32x128xf32>
    %2 = tpu.matmul %0, %1, %cst {dimension_numbers = #tpu.dot_dimension_numbers<[1], [0], [0], [1], [0, 0, 1, 1], [], []>} : vector<32x576xbf16>, vector<576x128xbf16>, vector<32x128xf32> -> vector<32x128xf32>
    %c0_3 = arith.constant 0 : index
    %c0_4 = arith.constant 0 : index
    %3 = vector.load %arg3[%c0_3, %c0_4] : memref<1x128xf32, #tpu.memory_space<vmem>>, vector<1x128xf32>
    %4 = vector.broadcast %3 : vector<1x128xf32> to vector<32x128xf32>
    %5 = arith.addf %2, %4 : vector<32x128xf32>
    %cst_5 = arith.constant 0.000000e+00 : f32
    %6 = vector.broadcast %cst_5 : f32 to vector<32x128xf32>
    %7 = arith.maximumf %5, %6 : vector<32x128xf32>
    %8 = arith.truncf %7 : vector<32x128xf32> to vector<32x128xbf16>
    %c0_6 = arith.constant 0 : index
    %c0_7 = arith.constant 0 : index
    %9 = vector.load %arg4[%c0_6, %c0_7] : memref<32x128xbf16, #tpu.memory_space<vmem>>, vector<32x128xbf16>
    tpu.vector_store %arg4[%c0_6, %c0_7], %8 {strides = array<i32>} : memref<32x128xbf16, #tpu.memory_space<vmem>>, vector<32x128xbf16>,
    return
  }
  func.func @transform_0(%arg0: i32) -> (i32, i32) {
    %c0_i32 = arith.constant 0 : i32
    %c0_i32_0 = arith.constant 0 : i32
    return %arg0, %c0_i32 : i32, i32
  }
  func.func @transform_1(%arg0: i32) -> (i32, i32) {
    %c0_i32 = arith.constant 0 : i32
    %c0_i32_0 = arith.constant 0 : i32
    %c0_i32_1 = arith.constant 0 : i32
    return %c0_i32, %c0_i32_0 : i32, i32
  }
  func.func @transform_2(%arg0: i32) -> (i32, i32) {
    %c0_i32 = arith.constant 0 : i32
    %c0_i32_0 = arith.constant 0 : i32
    %c0_i32_1 = arith.constant 0 : i32
    return %c0_i32, %c0_i32_0 : i32, i32
  }
  func.func @transform_3(%arg0: i32) -> (i32, i32) {
    %c0_i32 = arith.constant 0 : i32
    %c0_i32_0 = arith.constant 0 : i32
    return %arg0, %c0_i32 : i32, i32
  }
}

module attributes {stable_mosaic.version = 11 : i64} {
  func.func @_matmul_bias_act_kernel(%arg0: i32, %arg1: memref<8x1152xbf16, #tpu.memory_space<vmem>>, %arg2: memref<1152x256xbf16, #tpu.memory_space<vmem>>, %arg3: memref<1x256xf32, #tpu.memory_space<vmem>>, %arg4: memref<8x256xbf16, #tpu.memory_space<vmem>>) attributes {dimension_semantics = [#tpu.dimension_semantics<parallel>], iteration_bounds = array<i64: 1>, scalar_prefetch = 0 : i64, scratch_operands = 0 : i64, tpu.core_type = #tpu.core_type<tc>, window_params = [{transform_indices = @transform_0, window_bounds = array<i64: 8, 1152>}, {pipeline_mode = #tpu.pipeline_mode<synchronous>, transform_indices = @transform_1, window_bounds = array<i64: 1152, 256>}, {pipeline_mode = #tpu.pipeline_mode<synchronous>, transform_indices = @transform_2, window_bounds = array<i64: 1, 256>}, {transform_indices = @transform_3, window_bounds = array<i64: 8, 256>}]} {
    %c0 = arith.constant 0 : index
    %c0_0 = arith.constant 0 : index
    %0 = vector.load %arg1[%c0, %c0_0] : memref<8x1152xbf16, #tpu.memory_space<vmem>>, vector<8x1152xbf16>
    %c0_1 = arith.constant 0 : index
    %c0_2 = arith.constant 0 : index
    %1 = vector.load %arg2[%c0_1, %c0_2] : memref<1152x256xbf16, #tpu.memory_space<vmem>>, vector<1152x256xbf16>
    %cst = arith.constant dense<0.000000e+00> : vector<8x256xf32>
    %2 = tpu.matmul %0, %1, %cst {dimension_numbers = #tpu.dot_dimension_numbers<[1], [0], [0], [1], [0, 0, 1, 1], [], []>} : vector<8x1152xbf16>, vector<1152x256xbf16>, vector<8x256xf32> -> vector<8x256xf32>
    %c0_3 = arith.constant 0 : index
    %c0_4 = arith.constant 0 : index
    %3 = vector.load %arg3[%c0_3, %c0_4] : memref<1x256xf32, #tpu.memory_space<vmem>>, vector<1x256xf32>
    %4 = vector.broadcast %3 : vector<1x256xf32> to vector<8x256xf32>
    %5 = arith.addf %2, %4 : vector<8x256xf32>
    %cst_5 = arith.constant 0.000000e+00 : f32
    %6 = vector.broadcast %cst_5 : f32 to vector<8x256xf32>
    %7 = arith.maximumf %5, %6 : vector<8x256xf32>
    %8 = arith.truncf %7 : vector<8x256xf32> to vector<8x256xbf16>
    %c0_6 = arith.constant 0 : index
    %c0_7 = arith.constant 0 : index
    %9 = vector.load %arg4[%c0_6, %c0_7] : memref<8x256xbf16, #tpu.memory_space<vmem>>, vector<8x256xbf16>
    tpu.vector_store %arg4[%c0_6, %c0_7], %8 {strides = array<i32>} : memref<8x256xbf16, #tpu.memory_space<vmem>>, vector<8x256xbf16>,
    return
  }
  func.func @transform_0(%arg0: i32) -> (i32, i32) {
    %c0_i32 = arith.constant 0 : i32
    %c0_i32_0 = arith.constant 0 : i32
    return %arg0, %c0_i32 : i32, i32
  }
  func.func @transform_1(%arg0: i32) -> (i32, i32) {
    %c0_i32 = arith.constant 0 : i32
    %c0_i32_0 = arith.constant 0 : i32
    %c0_i32_1 = arith.constant 0 : i32
    return %c0_i32, %c0_i32_0 : i32, i32
  }
  func.func @transform_2(%arg0: i32) -> (i32, i32) {
    %c0_i32 = arith.constant 0 : i32
    %c0_i32_0 = arith.constant 0 : i32
    %c0_i32_1 = arith.constant 0 : i32
    return %c0_i32, %c0_i32_0 : i32, i32
  }
  func.func @transform_3(%arg0: i32) -> (i32, i32) {
    %c0_i32 = arith.constant 0 : i32
    %c0_i32_0 = arith.constant 0 : i32
    return %arg0, %c0_i32 : i32, i32
  }
}

module attributes {stable_mosaic.version = 11 : i64} {
  func.func @_matmul_bias_act_kernel(%arg0: i32, %arg1: memref<8x1024xbf16, #tpu.memory_space<vmem>>, %arg2: memref<1024x512xbf16, #tpu.memory_space<vmem>>, %arg3: memref<1x512xf32, #tpu.memory_space<vmem>>, %arg4: memref<8x512xbf16, #tpu.memory_space<vmem>>) attributes {dimension_semantics = [#tpu.dimension_semantics<parallel>], iteration_bounds = array<i64: 1>, scalar_prefetch = 0 : i64, scratch_operands = 0 : i64, tpu.core_type = #tpu.core_type<tc>, window_params = [{transform_indices = @transform_0, window_bounds = array<i64: 8, 1024>}, {pipeline_mode = #tpu.pipeline_mode<synchronous>, transform_indices = @transform_1, window_bounds = array<i64: 1024, 512>}, {pipeline_mode = #tpu.pipeline_mode<synchronous>, transform_indices = @transform_2, window_bounds = array<i64: 1, 512>}, {transform_indices = @transform_3, window_bounds = array<i64: 8, 512>}]} {
    %c0 = arith.constant 0 : index
    %c0_0 = arith.constant 0 : index
    %0 = vector.load %arg1[%c0, %c0_0] : memref<8x1024xbf16, #tpu.memory_space<vmem>>, vector<8x1024xbf16>
    %c0_1 = arith.constant 0 : index
    %c0_2 = arith.constant 0 : index
    %1 = vector.load %arg2[%c0_1, %c0_2] : memref<1024x512xbf16, #tpu.memory_space<vmem>>, vector<1024x512xbf16>
    %cst = arith.constant dense<0.000000e+00> : vector<8x512xf32>
    %2 = tpu.matmul %0, %1, %cst {dimension_numbers = #tpu.dot_dimension_numbers<[1], [0], [0], [1], [0, 0, 1, 1], [], []>} : vector<8x1024xbf16>, vector<1024x512xbf16>, vector<8x512xf32> -> vector<8x512xf32>
    %c0_3 = arith.constant 0 : index
    %c0_4 = arith.constant 0 : index
    %3 = vector.load %arg3[%c0_3, %c0_4] : memref<1x512xf32, #tpu.memory_space<vmem>>, vector<1x512xf32>
    %4 = vector.broadcast %3 : vector<1x512xf32> to vector<8x512xf32>
    %5 = arith.addf %2, %4 : vector<8x512xf32>
    %cst_5 = arith.constant 0.000000e+00 : f32
    %6 = vector.broadcast %cst_5 : f32 to vector<8x512xf32>
    %7 = arith.maximumf %5, %6 : vector<8x512xf32>
    %8 = arith.truncf %7 : vector<8x512xf32> to vector<8x512xbf16>
    %c0_6 = arith.constant 0 : index
    %c0_7 = arith.constant 0 : index
    %9 = vector.load %arg4[%c0_6, %c0_7] : memref<8x512xbf16, #tpu.memory_space<vmem>>, vector<8x512xbf16>
    tpu.vector_store %arg4[%c0_6, %c0_7], %8 {strides = array<i32>} : memref<8x512xbf16, #tpu.memory_space<vmem>>, vector<8x512xbf16>,
    return
  }
  func.func @transform_0(%arg0: i32) -> (i32, i32) {
    %c0_i32 = arith.constant 0 : i32
    %c0_i32_0 = arith.constant 0 : i32
    return %arg0, %c0_i32 : i32, i32
  }
  func.func @transform_1(%arg0: i32) -> (i32, i32) {
    %c0_i32 = arith.constant 0 : i32
    %c0_i32_0 = arith.constant 0 : i32
    %c0_i32_1 = arith.constant 0 : i32
    return %c0_i32, %c0_i32_0 : i32, i32
  }
  func.func @transform_2(%arg0: i32) -> (i32, i32) {
    %c0_i32 = arith.constant 0 : i32
    %c0_i32_0 = arith.constant 0 : i32
    %c0_i32_1 = arith.constant 0 : i32
    return %c0_i32, %c0_i32_0 : i32, i32
  }
  func.func @transform_3(%arg0: i32) -> (i32, i32) {
    %c0_i32 = arith.constant 0 : i32
    %c0_i32_0 = arith.constant 0 : i32
    return %arg0, %c0_i32 : i32, i32
  }
}

module attributes {stable_mosaic.version = 11 : i64} {
  func.func @_matmul_bias_act_kernel(%arg0: i32, %arg1: memref<32x512xbf16, #tpu.memory_space<vmem>>, %arg2: memref<512x256xbf16, #tpu.memory_space<vmem>>, %arg3: memref<1x256xf32, #tpu.memory_space<vmem>>, %arg4: memref<32x256xbf16, #tpu.memory_space<vmem>>) attributes {dimension_semantics = [#tpu.dimension_semantics<parallel>], iteration_bounds = array<i64: 1>, scalar_prefetch = 0 : i64, scratch_operands = 0 : i64, tpu.core_type = #tpu.core_type<tc>, window_params = [{transform_indices = @transform_0, window_bounds = array<i64: 32, 512>}, {pipeline_mode = #tpu.pipeline_mode<synchronous>, transform_indices = @transform_1, window_bounds = array<i64: 512, 256>}, {pipeline_mode = #tpu.pipeline_mode<synchronous>, transform_indices = @transform_2, window_bounds = array<i64: 1, 256>}, {transform_indices = @transform_3, window_bounds = array<i64: 32, 256>}]} {
    %c0 = arith.constant 0 : index
    %c0_0 = arith.constant 0 : index
    %0 = vector.load %arg1[%c0, %c0_0] : memref<32x512xbf16, #tpu.memory_space<vmem>>, vector<32x512xbf16>
    %c0_1 = arith.constant 0 : index
    %c0_2 = arith.constant 0 : index
    %1 = vector.load %arg2[%c0_1, %c0_2] : memref<512x256xbf16, #tpu.memory_space<vmem>>, vector<512x256xbf16>
    %cst = arith.constant dense<0.000000e+00> : vector<32x256xf32>
    %2 = tpu.matmul %0, %1, %cst {dimension_numbers = #tpu.dot_dimension_numbers<[1], [0], [0], [1], [0, 0, 1, 1], [], []>} : vector<32x512xbf16>, vector<512x256xbf16>, vector<32x256xf32> -> vector<32x256xf32>
    %c0_3 = arith.constant 0 : index
    %c0_4 = arith.constant 0 : index
    %3 = vector.load %arg3[%c0_3, %c0_4] : memref<1x256xf32, #tpu.memory_space<vmem>>, vector<1x256xf32>
    %4 = vector.broadcast %3 : vector<1x256xf32> to vector<32x256xf32>
    %5 = arith.addf %2, %4 : vector<32x256xf32>
    %cst_5 = arith.constant 0.000000e+00 : f32
    %6 = vector.broadcast %cst_5 : f32 to vector<32x256xf32>
    %7 = arith.maximumf %5, %6 : vector<32x256xf32>
    %8 = arith.truncf %7 : vector<32x256xf32> to vector<32x256xbf16>
    %c0_6 = arith.constant 0 : index
    %c0_7 = arith.constant 0 : index
    %9 = vector.load %arg4[%c0_6, %c0_7] : memref<32x256xbf16, #tpu.memory_space<vmem>>, vector<32x256xbf16>
    tpu.vector_store %arg4[%c0_6, %c0_7], %8 {strides = array<i32>} : memref<32x256xbf16, #tpu.memory_space<vmem>>, vector<32x256xbf16>,
    return
  }
  func.func @transform_0(%arg0: i32) -> (i32, i32) {
    %c0_i32 = arith.constant 0 : i32
    %c0_i32_0 = arith.constant 0 : i32
    return %arg0, %c0_i32 : i32, i32
  }
  func.func @transform_1(%arg0: i32) -> (i32, i32) {
    %c0_i32 = arith.constant 0 : i32
    %c0_i32_0 = arith.constant 0 : i32
    %c0_i32_1 = arith.constant 0 : i32
    return %c0_i32, %c0_i32_0 : i32, i32
  }
  func.func @transform_2(%arg0: i32) -> (i32, i32) {
    %c0_i32 = arith.constant 0 : i32
    %c0_i32_0 = arith.constant 0 : i32
    %c0_i32_1 = arith.constant 0 : i32
    return %c0_i32, %c0_i32_0 : i32, i32
  }
  func.func @transform_3(%arg0: i32) -> (i32, i32) {
    %c0_i32 = arith.constant 0 : i32
    %c0_i32_0 = arith.constant 0 : i32
    return %arg0, %c0_i32 : i32, i32
  }
}

module attributes {stable_mosaic.version = 11 : i64} {
  func.func @_matmul_bias_act_kernel(%arg0: i32, %arg1: memref<128x256xbf16, #tpu.memory_space<vmem>>, %arg2: memref<256x12xbf16, #tpu.memory_space<vmem>>, %arg3: memref<1x12xf32, #tpu.memory_space<vmem>>, %arg4: memref<128x12xf32, #tpu.memory_space<vmem>>) attributes {dimension_semantics = [#tpu.dimension_semantics<parallel>], iteration_bounds = array<i64: 1>, scalar_prefetch = 0 : i64, scratch_operands = 0 : i64, tpu.core_type = #tpu.core_type<tc>, window_params = [{transform_indices = @transform_0, window_bounds = array<i64: 128, 256>}, {pipeline_mode = #tpu.pipeline_mode<synchronous>, transform_indices = @transform_1, window_bounds = array<i64: 256, 12>}, {pipeline_mode = #tpu.pipeline_mode<synchronous>, transform_indices = @transform_2, window_bounds = array<i64: 1, 12>}, {transform_indices = @transform_3, window_bounds = array<i64: 128, 12>}]} {
    %c0 = arith.constant 0 : index
    %c0_0 = arith.constant 0 : index
    %0 = vector.load %arg1[%c0, %c0_0] : memref<128x256xbf16, #tpu.memory_space<vmem>>, vector<128x256xbf16>
    %c0_1 = arith.constant 0 : index
    %c0_2 = arith.constant 0 : index
    %1 = vector.load %arg2[%c0_1, %c0_2] : memref<256x12xbf16, #tpu.memory_space<vmem>>, vector<256x12xbf16>
    %cst = arith.constant dense<0.000000e+00> : vector<128x12xf32>
    %2 = tpu.matmul %0, %1, %cst {dimension_numbers = #tpu.dot_dimension_numbers<[1], [0], [0], [1], [0, 0, 1, 1], [], []>} : vector<128x256xbf16>, vector<256x12xbf16>, vector<128x12xf32> -> vector<128x12xf32>
    %c0_3 = arith.constant 0 : index
    %c0_4 = arith.constant 0 : index
    %3 = vector.load %arg3[%c0_3, %c0_4] : memref<1x12xf32, #tpu.memory_space<vmem>>, vector<1x12xf32>
    %4 = vector.broadcast %3 : vector<1x12xf32> to vector<128x12xf32>
    %5 = arith.addf %2, %4 : vector<128x12xf32>
    %cst_5 = arith.constant 0.000000e+00 : f32
    %6 = vector.broadcast %cst_5 : f32 to vector<128x12xf32>
    %7 = arith.subf %6, %5 : vector<128x12xf32>
    %8 = math.exp %7 : vector<128x12xf32>
    %cst_6 = arith.constant 1.000000e+00 : f32
    %9 = vector.broadcast %cst_6 : f32 to vector<128x12xf32>
    %10 = arith.addf %9, %8 : vector<128x12xf32>
    %11 = tpu.reciprocal %10 : vector<128x12xf32> -> vector<128x12xf32>
    %c0_7 = arith.constant 0 : index
    %c0_8 = arith.constant 0 : index
    %12 = vector.load %arg4[%c0_7, %c0_8] : memref<128x12xf32, #tpu.memory_space<vmem>>, vector<128x12xf32>
    tpu.vector_store %arg4[%c0_7, %c0_8], %11 {strides = array<i32>} : memref<128x12xf32, #tpu.memory_space<vmem>>, vector<128x12xf32>,
    return
  }
  func.func @transform_0(%arg0: i32) -> (i32, i32) {
    %c0_i32 = arith.constant 0 : i32
    %c0_i32_0 = arith.constant 0 : i32
    return %arg0, %c0_i32 : i32, i32
  }
  func.func @transform_1(%arg0: i32) -> (i32, i32) {
    %c0_i32 = arith.constant 0 : i32
    %c0_i32_0 = arith.constant 0 : i32
    %c0_i32_1 = arith.constant 0 : i32
    return %c0_i32, %c0_i32_0 : i32, i32
  }
  func.func @transform_2(%arg0: i32) -> (i32, i32) {
    %c0_i32 = arith.constant 0 : i32
    %c0_i32_0 = arith.constant 0 : i32
    %c0_i32_1 = arith.constant 0 : i32
    return %c0_i32, %c0_i32_0 : i32, i32
  }
  func.func @transform_3(%arg0: i32) -> (i32, i32) {
    %c0_i32 = arith.constant 0 : i32
    %c0_i32_0 = arith.constant 0 : i32
    return %arg0, %c0_i32 : i32, i32
  }
}

</mosaic_0001>

<llo_original>
// kernel: autoencoder_forward.6
$region0: #{autoencoder_forward.6}
  #allocation0 [shape = 'u32[]', space=smem, size = 0x4, offset = 0x4, fixed_abs, tag = 'smem constant byte address 0x4 - core index']
  #allocation1 [shape = 'u32[144,128]{1,0:T(1,128)}', space=vmem, size = 0x12000, scoped, tag = 'internal scratch']
  %s0 = inlined_call_operand.vmem [shape: bf16[128,27], index: 0, kind: input, shape index: {}]
  %s1 = inlined_call_operand.vmem [shape: bf16[27,64], index: 1, kind: input, shape index: {}]
  %s2 = inlined_call_operand.vmem [shape: f32[1,64], index: 2, kind: input, shape index: {}]
  %s3 = inlined_call_operand.vmem [shape: bf16[128,64], index: 3, kind: output, shape index: {}]
  %s4 = sld [smem:[#allocation0]]
  $region22: #{autoencoder_forward.6} parent=0
    _
  %s6 = ssub.s32 1, %s4
  %s7 = scalar_select 0, %s6, %s4
  // Predicated region
  $region2: #{autoencoder_forward.6} parent=0 // pred_check
    _
  $region3: #{autoencoder_forward.6} parent=0 // pred_check_branch
    %9 = sbr.rel (0) target = $region5
  $region4: #{autoencoder_forward.6} parent=0 // pred_region
    _
  $region5: #{autoencoder_forward.6} parent=0 // pred_fallthru
    _
  // Predicated region
  $region6: #{autoencoder_forward.6} parent=0 // pred_check
    _
  $region7: #{autoencoder_forward.6} parent=0 // pred_check_branch
    %11 = sbr.rel (0) target = $region9
  $region8: #{autoencoder_forward.6} parent=0 // pred_region
    _
  $region9: #{autoencoder_forward.6} parent=0 // pred_fallthru
    _
  // Predicated region
  $region10: #{autoencoder_forward.6} parent=0 // pred_check
    _
  $region11: #{autoencoder_forward.6} parent=0 // pred_check_branch
    %13 = sbr.rel (0) target = $region13
  $region12: #{autoencoder_forward.6} parent=0 // pred_region
    _
  $region13: #{autoencoder_forward.6} parent=0 // pred_fallthru
    _
  %v15 = vld [vmem:[%s0] sm:$0xf]
  %v16 = vld [vmem:[%s0 + $0x4] sm:$0xf]
  %v17 = vld [vmem:[%s0 + $0x8] sm:$0xf]
  %v18 = vld [vmem:[%s0 + $0xc] sm:$0xf]
  %v19 = vld [vmem:[%s0 + $0x10] sm:$0xf]
  %v20 = vld [vmem:[%s0 + $0x14] sm:$0xf]
  %v21 = vld [vmem:[%s0 + $0x18] sm:$0xf]
  %v22 = vld [vmem:[%s0 + $0x1c] sm:$0xf]
  %v23 = vld [vmem:[%s0 + $0x20] sm:$0xf]
  %v24 = vld [vmem:[%s0 + $0x24] sm:$0xf]
  %v25 = vld [vmem:[%s0 + $0x28] sm:$0xf]
  %v26 = vld [vmem:[%s0 + $0x2c] sm:$0xf]
  %v27 = vld [vmem:[%s0 + $0x30] sm:$0xf]
  %v28 = vld [vmem:[%s0 + $0x34] sm:$0xf]
  %v29 = vld [vmem:[%s0 + $0x38] sm:$0xf]
  %v30 = vld [vmem:[%s0 + $0x3c] sm:$0xf]
  %v31 = vld [vmem:[%s1] sm:$0xf]
  %v32 = vld [vmem:[%s1 + $0x4] sm:$0xf]
  %v33 = vld [vmem:[%s1 + $0x8] sm:$0xf]
  %v34 = vld [vmem:[%s1 + $0xc] sm:$0x3]
  %v35 = vld [vmem:[%s2] sm:$0x1]
  %v37 = vlaneseq
  %v38 = vshrl.u32 %v37, 7
  %v39 = vsub.s32 0, %v38
  %v40 = vrot.slane %v35, %v39
  %v58 = vunpack.c.l.b16 %v15
  %v59 = vunpack.c.l.b16 %v16
  %v60 = vunpack.c.l.b16 %v17
  %v61 = vunpack.c.l.b16 %v18
  %v62 = vunpack.c.l.b16 %v19
  %v63 = vunpack.c.l.b16 %v20
  %v64 = vunpack.c.l.b16 %v21
  %v65 = vunpack.c.l.b16 %v22
  %v66 = vunpack.c.l.b16 %v23
  %v67 = vunpack.c.l.b16 %v24
  %v68 = vunpack.c.l.b16 %v25
  %v69 = vunpack.c.l.b16 %v26
  %v70 = vunpack.c.l.b16 %v27
  %v71 = vunpack.c.l.b16 %v28
  %v72 = vunpack.c.l.b16 %v29
  %v73 = vunpack.c.l.b16 %v30
  %v74 = vpack.c.b16 %v59, %v58
  %v75 = vpack.c.b16 %v61, %v60
  %v76 = vpack.c.b16 %v63, %v62
  %v77 = vpack.c.b16 %v65, %v64
  %v78 = vpack.c.b16 %v67, %v66
  %v79 = vpack.c.b16 %v69, %v68
  %v80 = vpack.c.b16 %v71, %v70
  %v81 = vpack.c.b16 %v73, %v72
  %v86 = vunpack.c.l.b16 %v31
  %v87 = vunpack.c.l.b16 %v32
  %v88 = vunpack.c.l.b16 %v33
  %v89 = vunpack.c.l.b16 %v34
  %v90 = vpack.c.b16 %v87, %v86
  %v91 = vpack.c.b16 %v89, %v88
  %vm93 = vcmask 220160
  %v95 = vsel %vm93, %v74, 0
  %v98 = vsel %vm93, %v75, 0
  %v101 = vsel %vm93, %v76, 0
  %v104 = vsel %vm93, %v77, 0
  %v107 = vsel %vm93, %v78, 0
  %v110 = vsel %vm93, %v79, 0
  %v113 = vsel %vm93, %v80, 0
  %v116 = vsel %vm93, %v81, 0
  %vm118 = vcmask 1044480
  %vm119 = vcmask 1045504
  %v120 = vsel %vm118, 4294967295, 65535
  %v121 = vsel %vm119, %v120, 0
  %v123 = vand.u32 %v91, %v121
  %125 = vmatprep.subr.bf16.mxu0 0
  %126 = vmatpush1.bf16.msra.mxu0 %v90
  %127 = vmatprep.subr.bf16.mxu0 0
  %128 = vmatpush1.bf16.msra.mxu0 %v123
  %129 = vmatprep.subr.bf16.mxu0 0
  %130 = vmatpush1.bf16.msra.mxu0 0
  %131 = vmatprep.subr.bf16.mxu0 0
  %132 = vmatpush1.bf16.msra.mxu0 0
  %133 = vmatprep.subr.bf16.mxu0 0
  %134 = vmatpush1.bf16.msra.mxu0 0
  %135 = vmatprep.subr.bf16.mxu0 0
  %136 = vmatpush1.bf16.msra.mxu0 0
  %137 = vmatprep.subr.bf16.mxu0 0
  %138 = vmatpush1.bf16.msra.mxu0 0
  %139 = vmatprep.subr.bf16.mxu0 0
  %140 = vmatpush1.bf16.msra.mxu0 0
  %141 = vmatprep.subr.bf16.mxu0 0
  %142 = vmatpush1.bf16.msra.mxu0 0
  %143 = vmatprep.subr.bf16.mxu0 0
  %144 = vmatpush1.bf16.msra.mxu0 0
  %145 = vmatprep.subr.bf16.mxu0 0
  %146 = vmatpush1.bf16.msra.mxu0 0
  %147 = vmatprep.subr.bf16.mxu0 0
  %148 = vmatpush1.bf16.msra.mxu0 0
  %149 = vmatprep.subr.bf16.mxu0 0
  %150 = vmatpush1.bf16.msra.mxu0 0
  %151 = vmatprep.subr.bf16.mxu0 0
  %152 = vmatpush1.bf16.msra.mxu0 0
  %153 = vmatprep.subr.bf16.mxu0 0
  %154 = vmatpush1.bf16.msra.mxu0 0
  %155 = vmatprep.subr.bf16.mxu0 0
  %156 = vmatpush1.bf16.msra.mxu0 0
  %157 = vmatprep.mubr.bf16.mxu0 0
  %158 = vmatmul.mubr.bf16.gmra.mrb[0].mxu0 %v95
  %v159 = vpop.f32.mrb[0].mxu0
  %v160 = vadd.f32 %v40, %v159
  %v161 = vpop.f32.mrb[0].mxu0
  %v162 = vpop.f32.mrb[0].mxu0
  %v163 = vadd.f32 %v40, %v162
  %v164 = vpop.f32.mrb[0].mxu0
  %165 = vmatprep.mubr.bf16.mxu0 0
  %166 = vmatmul.mubr.bf16.gmra.mrb[0].mxu0 %v98
  %v167 = vpop.f32.mrb[0].mxu0
  %v168 = vadd.f32 %v40, %v167
  %v169 = vpop.f32.mrb[0].mxu0
  %v170 = vpop.f32.mrb[0].mxu0
  %v171 = vadd.f32 %v40, %v170
  %v172 = vpop.f32.mrb[0].mxu0
  %173 = vmatprep.mubr.bf16.mxu0 0
  %174 = vmatmul.mubr.bf16.gmra.mrb[0].mxu0 %v101
  %v175 = vpop.f32.mrb[0].mxu0
  %v176 = vadd.f32 %v40, %v175
  %v177 = vpop.f32.mrb[0].mxu0
  %v178 = vpop.f32.mrb[0].mxu0
  %v179 = vadd.f32 %v40, %v178
  %v180 = vpop.f32.mrb[0].mxu0
  %181 = vmatprep.mubr.bf16.mxu0 0
  %182 = vmatmul.mubr.bf16.gmra.mrb[0].mxu0 %v104
  %v183 = vpop.f32.mrb[0].mxu0
  %v184 = vadd.f32 %v40, %v183
  %v185 = vpop.f32.mrb[0].mxu0
  %v186 = vpop.f32.mrb[0].mxu0
  %v187 = vadd.f32 %v40, %v186
  %v188 = vpop.f32.mrb[0].mxu0
  %189 = vmatprep.mubr.bf16.mxu0 0
  %190 = vmatmul.mubr.bf16.gmra.mrb[0].mxu0 %v107
  %v191 = vpop.f32.mrb[0].mxu0
  %v192 = vadd.f32 %v40, %v191
  %v193 = vpop.f32.mrb[0].mxu0
  %v194 = vpop.f32.mrb[0].mxu0
  %v195 = vadd.f32 %v40, %v194
  %v196 = vpop.f32.mrb[0].mxu0
  %197 = vmatprep.mubr.bf16.mxu0 0
  %198 = vmatmul.mubr.bf16.gmra.mrb[0].mxu0 %v110
  %v199 = vpop.f32.mrb[0].mxu0
  %v200 = vadd.f32 %v40, %v199
  %v201 = vpop.f32.mrb[0].mxu0
  %v202 = vpop.f32.mrb[0].mxu0
  %v203 = vadd.f32 %v40, %v202
  %v204 = vpop.f32.mrb[0].mxu0
  %205 = vmatprep.mubr.bf16.mxu0 0
  %206 = vmatmul.mubr.bf16.gmra.mrb[0].mxu0 %v113
  %v207 = vpop.f32.mrb[0].mxu0
  %v208 = vadd.f32 %v40, %v207
  %v209 = vpop.f32.mrb[0].mxu0
  %v210 = vpop.f32.mrb[0].mxu0
  %v211 = vadd.f32 %v40, %v210
  %v212 = vpop.f32.mrb[0].mxu0
  %213 = vmatprep.mubr.bf16.mxu0 0
  %214 = vmatmul.mubr.bf16.gmra.mrb[0].mxu0 %v116
  %v215 = vpop.f32.mrb[0].mxu0
  %v216 = vadd.f32 %v40, %v215
  %v217 = vpop.f32.mrb[0].mxu0
  %v218 = vpop.f32.mrb[0].mxu0
  %v219 = vadd.f32 %v40, %v218
  %v220 = vpop.f32.mrb[0].mxu0
  %221 = vdwg.mxu0
  %v222 = vmax.f32 %v160, 0.0
  %v223 = vmax.f32 %v163, 0.0
  %v224 = vmax.f32 %v168, 0.0
  %v225 = vmax.f32 %v171, 0.0
  %v226 = vmax.f32 %v176, 0.0
  %v227 = vmax.f32 %v179, 0.0
  %v228 = vmax.f32 %v184, 0.0
  %v229 = vmax.f32 %v187, 0.0
  %v230 = vmax.f32 %v192, 0.0
  %v231 = vmax.f32 %v195, 0.0
  %v232 = vmax.f32 %v200, 0.0
  %v233 = vmax.f32 %v203, 0.0
  %v234 = vmax.f32 %v208, 0.0
  %v235 = vmax.f32 %v211, 0.0
  %v236 = vmax.f32 %v216, 0.0
  %v237 = vmax.f32 %v219, 0.0
  %v238 = vpack.c.bf16 %v223, %v222
  %v239 = vpack.c.bf16 %v225, %v224
  %v240 = vpack.c.bf16 %v227, %v226
  %v241 = vpack.c.bf16 %v229, %v228
  %v242 = vpack.c.bf16 %v231, %v230
  %v243 = vpack.c.bf16 %v233, %v232
  %v244 = vpack.c.bf16 %v235, %v234
  %v245 = vpack.c.bf16 %v237, %v236
  %v254 = vunpack.c.l.b16 %v238
  %v255 = vunpack.c.h.b16 %v238
  %v256 = vunpack.c.l.b16 %v239
  %v257 = vunpack.c.h.b16 %v239
  %v258 = vunpack.c.l.b16 %v240
  %v259 = vunpack.c.h.b16 %v240
  %v260 = vunpack.c.l.b16 %v241
  %v261 = vunpack.c.h.b16 %v241
  %v262 = vunpack.c.l.b16 %v242
  %v263 = vunpack.c.h.b16 %v242
  %v264 = vunpack.c.l.b16 %v243
  %v265 = vunpack.c.h.b16 %v243
  %v266 = vunpack.c.l.b16 %v244
  %v267 = vunpack.c.h.b16 %v244
  %v268 = vunpack.c.l.b16 %v245
  %v269 = vunpack.c.h.b16 %v245
  %v270 = vpack.c.b16 %v254, %v254
  %v271 = vpack.c.b16 %v255, %v255
  %v272 = vpack.c.b16 %v256, %v256
  %v273 = vpack.c.b16 %v257, %v257
  %v274 = vpack.c.b16 %v258, %v258
  %v275 = vpack.c.b16 %v259, %v259
  %v276 = vpack.c.b16 %v260, %v260
  %v277 = vpack.c.b16 %v261, %v261
  %v278 = vpack.c.b16 %v262, %v262
  %v279 = vpack.c.b16 %v263, %v263
  %v280 = vpack.c.b16 %v264, %v264
  %v281 = vpack.c.b16 %v265, %v265
  %v282 = vpack.c.b16 %v266, %v266
  %v283 = vpack.c.b16 %v267, %v267
  %v284 = vpack.c.b16 %v268, %v268
  %v285 = vpack.c.b16 %v269, %v269
  %vm302 = vcmask 519168
  %303 = vst.msk [vmem:[%s3] sm:$0xf] %vm302, %v270
  %304 = vst.msk [vmem:[%s3 + $0x4] sm:$0xf] %vm302, %v271
  %305 = vst.msk [vmem:[%s3 + $0x8] sm:$0xf] %vm302, %v272
  %306 = vst.msk [vmem:[%s3 + $0xc] sm:$0xf] %vm302, %v273
  %307 = vst.msk [vmem:[%s3 + $0x10] sm:$0xf] %vm302, %v274
  %308 = vst.msk [vmem:[%s3 + $0x14] sm:$0xf] %vm302, %v275
  %309 = vst.msk [vmem:[%s3 + $0x18] sm:$0xf] %vm302, %v276
  %310 = vst.msk [vmem:[%s3 + $0x1c] sm:$0xf] %vm302, %v277
  %311 = vst.msk [vmem:[%s3 + $0x20] sm:$0xf] %vm302, %v278
  %312 = vst.msk [vmem:[%s3 + $0x24] sm:$0xf] %vm302, %v279
  %313 = vst.msk [vmem:[%s3 + $0x28] sm:$0xf] %vm302, %v280
  %314 = vst.msk [vmem:[%s3 + $0x2c] sm:$0xf] %vm302, %v281
  %315 = vst.msk [vmem:[%s3 + $0x30] sm:$0xf] %vm302, %v282
  %316 = vst.msk [vmem:[%s3 + $0x34] sm:$0xf] %vm302, %v283
  %317 = vst.msk [vmem:[%s3 + $0x38] sm:$0xf] %vm302, %v284
  %318 = vst.msk [vmem:[%s3 + $0x3c] sm:$0xf] %vm302, %v285
  // Predicated region
  $region14: #{autoencoder_forward.6} parent=0 // pred_check
    _
  $region15: #{autoencoder_forward.6} parent=0 // pred_check_branch
    %320 = sbr.rel (0) target = $region17
  $region16: #{autoencoder_forward.6} parent=0 // pred_region
    _
  $region17: #{autoencoder_forward.6} parent=0 // pred_fallthru
    _
  // Predicated region
  $region18: #{autoencoder_forward.6} parent=0 // pred_check
    _
  $region19: #{autoencoder_forward.6} parent=0 // pred_check_branch
    %322 = sbr.rel (0) target = $region21
  $region20: #{autoencoder_forward.6} parent=0 // pred_region
    _
  $region21: #{autoencoder_forward.6} parent=0 // pred_fallthru
    _

// kernel: autoencoder_forward.7
$region0: #{autoencoder_forward.7}
  #allocation0 [shape = 'u32[]', space=smem, size = 0x4, offset = 0x4, fixed_abs, tag = 'smem constant byte address 0x4 - core index']
  #allocation1 [shape = 'u32[144,128]{1,0:T(1,128)}', space=vmem, size = 0x12000, scoped, tag = 'internal scratch']
  %s0 = inlined_call_operand.vmem [shape: bf16[32,576], index: 0, kind: input, shape index: {}]
  %s1 = inlined_call_operand.vmem [shape: bf16[576,128], index: 1, kind: input, shape index: {}]
  %s2 = inlined_call_operand.vmem [shape: f32[1,128], index: 2, kind: input, shape index: {}]
  %s3 = inlined_call_operand.vmem [shape: bf16[32,128], index: 3, kind: output, shape index: {}]
  %s4 = sld [smem:[#allocation0]]
  $region22: #{autoencoder_forward.7} parent=0
    _
  %s6 = ssub.s32 1, %s4
  %s7 = scalar_select 0, %s6, %s4
  // Predicated region
  $region2: #{autoencoder_forward.7} parent=0 // pred_check
    _
  $region3: #{autoencoder_forward.7} parent=0 // pred_check_branch
    %9 = sbr.rel (0) target = $region5
  $region4: #{autoencoder_forward.7} parent=0 // pred_region
    _
  $region5: #{autoencoder_forward.7} parent=0 // pred_fallthru
    _
  // Predicated region
  $region6: #{autoencoder_forward.7} parent=0 // pred_check
    _
  $region7: #{autoencoder_forward.7} parent=0 // pred_check_branch
    %11 = sbr.rel (0) target = $region9
  $region8: #{autoencoder_forward.7} parent=0 // pred_region
    _
  $region9: #{autoencoder_forward.7} parent=0 // pred_fallthru
    _
  // Predicated region
  $region10: #{autoencoder_forward.7} parent=0 // pred_check
    _
  $region11: #{autoencoder_forward.7} parent=0 // pred_check_branch
    %13 = sbr.rel (0) target = $region13
  $region12: #{autoencoder_forward.7} parent=0 // pred_region
    _
  $region13: #{autoencoder_forward.7} parent=0 // pred_fallthru
    _
  %v15 = vld [vmem:[%s0] sm:$0xff]
  %v16 = vld [vmem:[%s0 + $0x8] sm:$0xff]
  %v17 = vld [vmem:[%s0 + $0x10] sm:$0xf]
  %v18 = vld [vmem:[%s0 + $0x14] sm:$0xff]
  %v19 = vld [vmem:[%s0 + $0x1c] sm:$0xff]
  %v20 = vld [vmem:[%s0 + $0x24] sm:$0xf]
  %v21 = vld [vmem:[%s0 + $0x28] sm:$0xff]
  %v22 = vld [vmem:[%s0 + $0x30] sm:$0xff]
  %v23 = vld [vmem:[%s0 + $0x38] sm:$0xf]
  %v24 = vld [vmem:[%s0 + $0x3c] sm:$0xff]
  %v25 = vld [vmem:[%s0 + $0x44] sm:$0xff]
  %v26 = vld [vmem:[%s0 + $0x4c] sm:$0xf]
  %v27 = vld [vmem:[%s1] sm:$0xf]
  %v28 = vld [vmem:[%s1 + $0x4] sm:$0xf]
  %v29 = vld [vmem:[%s1 + $0x8] sm:$0xf]
  %v30 = vld [vmem:[%s1 + $0xc] sm:$0xf]
  %v31 = vld [vmem:[%s1 + $0x10] sm:$0xf]
  %v32 = vld [vmem:[%s1 + $0x14] sm:$0xf]
  %v33 = vld [vmem:[%s1 + $0x18] sm:$0xf]
  %v34 = vld [vmem:[%s1 + $0x1c] sm:$0xf]
  %v35 = vld [vmem:[%s1 + $0x20] sm:$0xf]
  %v36 = vld [vmem:[%s1 + $0x24] sm:$0xf]
  %v37 = vld [vmem:[%s1 + $0x28] sm:$0xf]
  %v38 = vld [vmem:[%s1 + $0x2c] sm:$0xf]
  %v39 = vld [vmem:[%s1 + $0x30] sm:$0xf]
  %v40 = vld [vmem:[%s1 + $0x34] sm:$0xf]
  %v41 = vld [vmem:[%s1 + $0x38] sm:$0xf]
  %v42 = vld [vmem:[%s1 + $0x3c] sm:$0xf]
  %v43 = vld [vmem:[%s1 + $0x40] sm:$0xf]
  %v44 = vld [vmem:[%s1 + $0x44] sm:$0xf]
  %v45 = vld [vmem:[%s1 + $0x48] sm:$0xf]
  %v46 = vld [vmem:[%s1 + $0x4c] sm:$0xf]
  %v47 = vld [vmem:[%s1 + $0x50] sm:$0xf]
  %v48 = vld [vmem:[%s1 + $0x54] sm:$0xf]
  %v49 = vld [vmem:[%s1 + $0x58] sm:$0xf]
  %v50 = vld [vmem:[%s1 + $0x5c] sm:$0xf]
  %v51 = vld [vmem:[%s1 + $0x60] sm:$0xf]
  %v52 = vld [vmem:[%s1 + $0x64] sm:$0xf]
  %v53 = vld [vmem:[%s1 + $0x68] sm:$0xf]
  %v54 = vld [vmem:[%s1 + $0x6c] sm:$0xf]
  %v55 = vld [vmem:[%s1 + $0x70] sm:$0xf]
  %v56 = vld [vmem:[%s1 + $0x74] sm:$0xf]
  %v57 = vld [vmem:[%s1 + $0x78] sm:$0xf]
  %v58 = vld [vmem:[%s1 + $0x7c] sm:$0xf]
  %v59 = vld [vmem:[%s1 + $0x80] sm:$0xf]
  %v60 = vld [vmem:[%s1 + $0x84] sm:$0xf]
  %v61 = vld [vmem:[%s1 + $0x88] sm:$0xf]
  %v62 = vld [vmem:[%s1 + $0x8c] sm:$0xf]
  %v63 = vld [vmem:[%s1 + $0x90] sm:$0xf]
  %v64 = vld [vmem:[%s1 + $0x94] sm:$0xf]
  %v65 = vld [vmem:[%s1 + $0x98] sm:$0xf]
  %v66 = vld [vmem:[%s1 + $0x9c] sm:$0xf]
  %v67 = vld [vmem:[%s1 + $0xa0] sm:$0xf]
  %v68 = vld [vmem:[%s1 + $0xa4] sm:$0xf]
  %v69 = vld [vmem:[%s1 + $0xa8] sm:$0xf]
  %v70 = vld [vmem:[%s1 + $0xac] sm:$0xf]
  %v71 = vld [vmem:[%s1 + $0xb0] sm:$0xf]
  %v72 = vld [vmem:[%s1 + $0xb4] sm:$0xf]
  %v73 = vld [vmem:[%s1 + $0xb8] sm:$0xf]
  %v74 = vld [vmem:[%s1 + $0xbc] sm:$0xf]
  %v75 = vld [vmem:[%s1 + $0xc0] sm:$0xf]
  %v76 = vld [vmem:[%s1 + $0xc4] sm:$0xf]
  %v77 = vld [vmem:[%s1 + $0xc8] sm:$0xf]
  %v78 = vld [vmem:[%s1 + $0xcc] sm:$0xf]
  %v79 = vld [vmem:[%s1 + $0xd0] sm:$0xf]
  %v80 = vld [vmem:[%s1 + $0xd4] sm:$0xf]
  %v81 = vld [vmem:[%s1 + $0xd8] sm:$0xf]
  %v82 = vld [vmem:[%s1 + $0xdc] sm:$0xf]
  %v83 = vld [vmem:[%s1 + $0xe0] sm:$0xf]
  %v84 = vld [vmem:[%s1 + $0xe4] sm:$0xf]
  %v85 = vld [vmem:[%s1 + $0xe8] sm:$0xf]
  %v86 = vld [vmem:[%s1 + $0xec] sm:$0xf]
  %v87 = vld [vmem:[%s1 + $0xf0] sm:$0xf]
  %v88 = vld [vmem:[%s1 + $0xf4] sm:$0xf]
  %v89 = vld [vmem:[%s1 + $0xf8] sm:$0xf]
  %v90 = vld [vmem:[%s1 + $0xfc] sm:$0xf]
  %v91 = vld [vmem:[%s1 + $0x100] sm:$0xf]
  %v92 = vld [vmem:[%s1 + $0x104] sm:$0xf]
  %v93 = vld [vmem:[%s1 + $0x108] sm:$0xf]
  %v94 = vld [vmem:[%s1 + $0x10c] sm:$0xf]
  %v95 = vld [vmem:[%s1 + $0x110] sm:$0xf]
  %v96 = vld [vmem:[%s1 + $0x114] sm:$0xf]
  %v97 = vld [vmem:[%s1 + $0x118] sm:$0xf]
  %v98 = vld [vmem:[%s1 + $0x11c] sm:$0xf]
  %v99 = vld [vmem:[%s2] sm:$0x1]
  %v101 = vlaneseq
  %v102 = vshrl.u32 %v101, 7
  %v103 = vsub.s32 0, %v102
  %v104 = vrot.slane %v99, %v103
  %v118 = vunpack.c.l.b16 %v15
  %v119 = vunpack.c.h.b16 %v15
  %v120 = vunpack.c.l.b16 %v16
  %v121 = vunpack.c.h.b16 %v16
  %v122 = vunpack.c.l.b16 %v17
  %v123 = vunpack.c.l.b16 %v18
  %v124 = vunpack.c.h.b16 %v18
  %v125 = vunpack.c.l.b16 %v19
  %v126 = vunpack.c.h.b16 %v19
  %v127 = vunpack.c.l.b16 %v20
  %v128 = vunpack.c.l.b16 %v21
  %v129 = vunpack.c.h.b16 %v21
  %v130 = vunpack.c.l.b16 %v22
  %v131 = vunpack.c.h.b16 %v22
  %v132 = vunpack.c.l.b16 %v23
  %v133 = vunpack.c.l.b16 %v24
  %v134 = vunpack.c.h.b16 %v24
  %v135 = vunpack.c.l.b16 %v25
  %v136 = vunpack.c.h.b16 %v25
  %v137 = vunpack.c.l.b16 %v26
  %v138 = vpack.c.b16 %v123, %v118
  %v139 = vpack.c.b16 %v124, %v119
  %v140 = vpack.c.b16 %v125, %v120
  %v141 = vpack.c.b16 %v126, %v121
  %v142 = vpack.c.b16 %v127, %v122
  %v143 = vpack.c.b16 %v133, %v128
  %v144 = vpack.c.b16 %v134, %v129
  %v145 = vpack.c.b16 %v135, %v130
  %v146 = vpack.c.b16 %v136, %v131
  %v147 = vpack.c.b16 %v137, %v132
  %v228 = vunpack.c.l.b16 %v27
  %v229 = vunpack.c.l.b16 %v28
  %v230 = vunpack.c.l.b16 %v29
  %v231 = vunpack.c.l.b16 %v30
  %v232 = vunpack.c.l.b16 %v31
  %v233 = vunpack.c.l.b16 %v32
  %v234 = vunpack.c.l.b16 %v33
  %v235 = vunpack.c.l.b16 %v34
  %v236 = vunpack.c.l.b16 %v35
  %v237 = vunpack.c.l.b16 %v36
  %v238 = vunpack.c.l.b16 %v37
  %v239 = vunpack.c.l.b16 %v38
  %v240 = vunpack.c.l.b16 %v39
  %v241 = vunpack.c.l.b16 %v40
  %v242 = vunpack.c.l.b16 %v41
  %v243 = vunpack.c.l.b16 %v42
  %v244 = vunpack.c.l.b16 %v43
  %v245 = vunpack.c.l.b16 %v44
  %v246 = vunpack.c.l.b16 %v45
  %v247 = vunpack.c.l.b16 %v46
  %v248 = vunpack.c.l.b16 %v47
  %v249 = vunpack.c.l.b16 %v48
  %v250 = vunpack.c.l.b16 %v49
  %v251 = vunpack.c.l.b16 %v50
  %v252 = vunpack.c.l.b16 %v51
  %v253 = vunpack.c.l.b16 %v52
  %v254 = vunpack.c.l.b16 %v53
  %v255 = vunpack.c.l.b16 %v54
  %v256 = vunpack.c.l.b16 %v55
  %v257 = vunpack.c.l.b16 %v56
  %v258 = vunpack.c.l.b16 %v57
  %v259 = vunpack.c.l.b16 %v58
  %v260 = vunpack.c.l.b16 %v59
  %v261 = vunpack.c.l.b16 %v60
  %v262 = vunpack.c.l.b16 %v61
  %v263 = vunpack.c.l.b16 %v62
  %v264 = vunpack.c.l.b16 %v63
  %v265 = vunpack.c.l.b16 %v64
  %v266 = vunpack.c.l.b16 %v65
  %v267 = vunpack.c.l.b16 %v66
  %v268 = vunpack.c.l.b16 %v67
  %v269 = vunpack.c.l.b16 %v68
  %v270 = vunpack.c.l.b16 %v69
  %v271 = vunpack.c.l.b16 %v70
  %v272 = vunpack.c.l.b16 %v71
  %v273 = vunpack.c.l.b16 %v72
  %v274 = vunpack.c.l.b16 %v73
  %v275 = vunpack.c.l.b16 %v74
  %v276 = vunpack.c.l.b16 %v75
  %v277 = vunpack.c.l.b16 %v76
  %v278 = vunpack.c.l.b16 %v77
  %v279 = vunpack.c.l.b16 %v78
  %v280 = vunpack.c.l.b16 %v79
  %v281 = vunpack.c.l.b16 %v80
  %v282 = vunpack.c.l.b16 %v81
  %v283 = vunpack.c.l.b16 %v82
  %v284 = vunpack.c.l.b16 %v83
  %v285 = vunpack.c.l.b16 %v84
  %v286 = vunpack.c.l.b16 %v85
  %v287 = vunpack.c.l.b16 %v86
  %v288 = vunpack.c.l.b16 %v87
  %v289 = vunpack.c.l.b16 %v88
  %v290 = vunpack.c.l.b16 %v89
  %v291 = vunpack.c.l.b16 %v90
  %v292 = vunpack.c.l.b16 %v91
  %v293 = vunpack.c.l.b16 %v92
  %v294 = vunpack.c.l.b16 %v93
  %v295 = vunpack.c.l.b16 %v94
  %v296 = vunpack.c.l.b16 %v95
  %v297 = vunpack.c.l.b16 %v96
  %v298 = vunpack.c.l.b16 %v97
  %v299 = vunpack.c.l.b16 %v98
  %v300 = vpack.c.b16 %v229, %v228
  %v301 = vpack.c.b16 %v231, %v230
  %v302 = vpack.c.b16 %v233, %v232
  %v303 = vpack.c.b16 %v235, %v234
  %v304 = vpack.c.b16 %v237, %v236
  %v305 = vpack.c.b16 %v239, %v238
  %v306 = vpack.c.b16 %v241, %v240
  %v307 = vpack.c.b16 %v243, %v242
  %v308 = vpack.c.b16 %v245, %v244
  %v309 = vpack.c.b16 %v247, %v246
  %v310 = vpack.c.b16 %v249, %v248
  %v311 = vpack.c.b16 %v251, %v250
  %v312 = vpack.c.b16 %v253, %v252
  %v313 = vpack.c.b16 %v255, %v254
  %v314 = vpack.c.b16 %v257, %v256
  %v315 = vpack.c.b16 %v259, %v258
  %v316 = vpack.c.b16 %v261, %v260
  %v317 = vpack.c.b16 %v263, %v262
  %v318 = vpack.c.b16 %v265, %v264
  %v319 = vpack.c.b16 %v267, %v266
  %v320 = vpack.c.b16 %v269, %v268
  %v321 = vpack.c.b16 %v271, %v270
  %v322 = vpack.c.b16 %v273, %v272
  %v323 = vpack.c.b16 %v275, %v274
  %v324 = vpack.c.b16 %v277, %v276
  %v325 = vpack.c.b16 %v279, %v278
  %v326 = vpack.c.b16 %v281, %v280
  %v327 = vpack.c.b16 %v283, %v282
  %v328 = vpack.c.b16 %v285, %v284
  %v329 = vpack.c.b16 %v287, %v286
  %v330 = vpack.c.b16 %v289, %v288
  %v331 = vpack.c.b16 %v291, %v290
  %v332 = vpack.c.b16 %v293, %v292
  %v333 = vpack.c.b16 %v295, %v294
  %v334 = vpack.c.b16 %v297, %v296
  %v335 = vpack.c.b16 %v299, %v298
  %vm372 = vcmask 523264
  %v374 = vsel %vm372, %v142, 0
  %v377 = vsel %vm372, %v147, 0
  %379 = vmatprep.subr.bf16.mxu0 0
  %380 = vmatpush1.bf16.msra.mxu0 %v300
  %381 = vmatprep.subr.bf16.mxu0 0
  %382 = vmatpush1.bf16.msra.mxu0 %v301
  %383 = vmatprep.subr.bf16.mxu0 0
  %384 = vmatpush1.bf16.msra.mxu0 %v302
  %385 = vmatprep.subr.bf16.mxu0 0
  %386 = vmatpush1.bf16.msra.mxu0 %v303
  %387 = vmatprep.subr.bf16.mxu0 0
  %388 = vmatpush1.bf16.msra.mxu0 %v304
  %389 = vmatprep.subr.bf16.mxu0 0
  %390 = vmatpush1.bf16.msra.mxu0 %v305
  %391 = vmatprep.subr.bf16.mxu0 0
  %392 = vmatpush1.bf16.msra.mxu0 %v306
  %393 = vmatprep.subr.bf16.mxu0 0
  %394 = vmatpush1.bf16.msra.mxu0 %v307
  %395 = vmatprep.subr.bf16.mxu0 0
  %396 = vmatpush1.bf16.msra.mxu0 %v308
  %397 = vmatprep.subr.bf16.mxu0 0
  %398 = vmatpush1.bf16.msra.mxu0 %v309
  %399 = vmatprep.subr.bf16.mxu0 0
  %400 = vmatpush1.bf16.msra.mxu0 %v310
  %401 = vmatprep.subr.bf16.mxu0 0
  %402 = vmatpush1.bf16.msra.mxu0 %v311
  %403 = vmatprep.subr.bf16.mxu0 0
  %404 = vmatpush1.bf16.msra.mxu0 %v312
  %405 = vmatprep.subr.bf16.mxu0 0
  %406 = vmatpush1.bf16.msra.mxu0 %v313
  %407 = vmatprep.subr.bf16.mxu0 0
  %408 = vmatpush1.bf16.msra.mxu0 %v314
  %409 = vmatprep.subr.bf16.mxu0 0
  %410 = vmatpush1.bf16.msra.mxu0 %v315
  %411 = vmatprep.mubr.bf16.mxu0 %v139
  %412 = vmatmul.mubr.bf16.gmra.mrb[0].mxu0 %v138
  %v413 = vpop.f32.mrb[0].mxu0
  %v414 = vadd.f32 %v104, %v413
  %v415 = vpop.f32.mrb[0].mxu0
  %v416 = vpop.f32.mrb[0].mxu0
  %v417 = vadd.f32 %v104, %v416
  %v418 = vpop.f32.mrb[0].mxu0
  %419 = vmatprep.mubr.bf16.mxu0 %v144
  %420 = vmatmul.mubr.bf16.gmra.mrb[0].mxu0 %v143
  %v421 = vpop.f32.mrb[0].mxu0
  %v422 = vadd.f32 %v104, %v421
  %v423 = vpop.f32.mrb[0].mxu0
  %v424 = vpop.f32.mrb[0].mxu0
  %v425 = vadd.f32 %v104, %v424
  %v426 = vpop.f32.mrb[0].mxu0
  %427 = vdwg.mxu0
  %428 = vmatprep.subr.bf16.mxu0 0
  %429 = vmatpush1.bf16.msra.mxu0 %v316
  %430 = vmatprep.subr.bf16.mxu0 0
  %431 = vmatpush1.bf16.msra.mxu0 %v317
  %432 = vmatprep.subr.bf16.mxu0 0
  %433 = vmatpush1.bf16.msra.mxu0 %v318
  %434 = vmatprep.subr.bf16.mxu0 0
  %435 = vmatpush1.bf16.msra.mxu0 %v319
  %436 = vmatprep.subr.bf16.mxu0 0
  %437 = vmatpush1.bf16.msra.mxu0 %v320
  %438 = vmatprep.subr.bf16.mxu0 0
  %439 = vmatpush1.bf16.msra.mxu0 %v321
  %440 = vmatprep.subr.bf16.mxu0 0
  %441 = vmatpush1.bf16.msra.mxu0 %v322
  %442 = vmatprep.subr.bf16.mxu0 0
  %443 = vmatpush1.bf16.msra.mxu0 %v323
  %444 = vmatprep.subr.bf16.mxu0 0
  %445 = vmatpush1.bf16.msra.mxu0 %v324
  %446 = vmatprep.subr.bf16.mxu0 0
  %447 = vmatpush1.bf16.msra.mxu0 %v325
  %448 = vmatprep.subr.bf16.mxu0 0
  %449 = vmatpush1.bf16.msra.mxu0 %v326
  %450 = vmatprep.subr.bf16.mxu0 0
  %451 = vmatpush1.bf16.msra.mxu0 %v327
  %452 = vmatprep.subr.bf16.mxu0 0
  %453 = vmatpush1.bf16.msra.mxu0 %v328
  %454 = vmatprep.subr.bf16.mxu0 0
  %455 = vmatpush1.bf16.msra.mxu0 %v329
  %456 = vmatprep.subr.bf16.mxu0 0
  %457 = vmatpush1.bf16.msra.mxu0 %v330
  %458 = vmatprep.subr.bf16.mxu0 0
  %459 = vmatpush1.bf16.msra.mxu0 %v331
  %460 = vmatprep.mubr.bf16.mxu0 %v141
  %461 = vmatmul.mubr.bf16.gmra.mrb[0].mxu0 %v140
  %v462 = vpop.f32.mrb[0].mxu0
  %v463 = vadd.f32 %v414, %v462
  %v464 = vpop.f32.mrb[0].mxu0
  %v465 = vpop.f32.mrb[0].mxu0
  %v466 = vadd.f32 %v417, %v465
  %v467 = vpop.f32.mrb[0].mxu0
  %468 = vmatprep.mubr.bf16.mxu0 %v146
  %469 = vmatmul.mubr.bf16.gmra.mrb[0].mxu0 %v145
  %v470 = vpop.f32.mrb[0].mxu0
  %v471 = vadd.f32 %v422, %v470
  %v472 = vpop.f32.mrb[0].mxu0
  %v473 = vpop.f32.mrb[0].mxu0
  %v474 = vadd.f32 %v425, %v473
  %v475 = vpop.f32.mrb[0].mxu0
  %476 = vdwg.mxu0
  %477 = vmatprep.subr.bf16.mxu0 0
  %478 = vmatpush1.bf16.msra.mxu0 %v332
  %479 = vmatprep.subr.bf16.mxu0 0
  %480 = vmatpush1.bf16.msra.mxu0 %v333
  %481 = vmatprep.subr.bf16.mxu0 0
  %482 = vmatpush1.bf16.msra.mxu0 %v334
  %483 = vmatprep.subr.bf16.mxu0 0
  %484 = vmatpush1.bf16.msra.mxu0 %v335
  %485 = vmatprep.subr.bf16.mxu0 0
  %486 = vmatpush1.bf16.msra.mxu0 0
  %487 = vmatprep.subr.bf16.mxu0 0
  %488 = vmatpush1.bf16.msra.mxu0 0
  %489 = vmatprep.subr.bf16.mxu0 0
  %490 = vmatpush1.bf16.msra.mxu0 0
  %491 = vmatprep.subr.bf16.mxu0 0
  %492 = vmatpush1.bf16.msra.mxu0 0
  %493 = vmatprep.subr.bf16.mxu0 0
  %494 = vmatpush1.bf16.msra.mxu0 0
  %495 = vmatprep.subr.bf16.mxu0 0
  %496 = vmatpush1.bf16.msra.mxu0 0
  %497 = vmatprep.subr.bf16.mxu0 0
  %498 = vmatpush1.bf16.msra.mxu0 0
  %499 = vmatprep.subr.bf16.mxu0 0
  %500 = vmatpush1.bf16.msra.mxu0 0
  %501 = vmatprep.subr.bf16.mxu0 0
  %502 = vmatpush1.bf16.msra.mxu0 0
  %503 = vmatprep.subr.bf16.mxu0 0
  %504 = vmatpush1.bf16.msra.mxu0 0
  %505 = vmatprep.subr.bf16.mxu0 0
  %506 = vmatpush1.bf16.msra.mxu0 0
  %507 = vmatprep.subr.bf16.mxu0 0
  %508 = vmatpush1.bf16.msra.mxu0 0
  %509 = vmatprep.mubr.bf16.mxu0 0
  %510 = vmatmul.mubr.bf16.gmra.mrb[0].mxu0 %v374
  %v511 = vpop.f32.mrb[0].mxu0
  %v512 = vadd.f32 %v463, %v511
  %v513 = vpop.f32.mrb[0].mxu0
  %v514 = vpop.f32.mrb[0].mxu0
  %v515 = vadd.f32 %v466, %v514
  %v516 = vpop.f32.mrb[0].mxu0
  %517 = vmatprep.mubr.bf16.mxu0 0
  %518 = vmatmul.mubr.bf16.gmra.mrb[0].mxu0 %v377
  %v519 = vpop.f32.mrb[0].mxu0
  %v520 = vadd.f32 %v471, %v519
  %v521 = vpop.f32.mrb[0].mxu0
  %v522 = vpop.f32.mrb[0].mxu0
  %v523 = vadd.f32 %v474, %v522
  %v524 = vpop.f32.mrb[0].mxu0
  %525 = vdwg.mxu0
  %v526 = vmax.f32 %v512, 0.0
  %v527 = vmax.f32 %v515, 0.0
  %v528 = vmax.f32 %v520, 0.0
  %v529 = vmax.f32 %v523, 0.0
  %v530 = vpack.c.bf16 %v527, %v526
  %v531 = vpack.c.bf16 %v529, %v528
  %v534 = vunpack.c.l.b16 %v530
  %v535 = vunpack.c.h.b16 %v530
  %v536 = vunpack.c.l.b16 %v531
  %v537 = vunpack.c.h.b16 %v531
  %v538 = vpack.c.b16 %v534, %v534
  %v539 = vpack.c.b16 %v535, %v535
  %v540 = vpack.c.b16 %v536, %v536
  %v541 = vpack.c.b16 %v537, %v537
  %546 = vst [vmem:[%s3] sm:$0xf] %v538
  %547 = vst [vmem:[%s3 + $0x4] sm:$0xf] %v539
  %548 = vst [vmem:[%s3 + $0x8] sm:$0xf] %v540
  %549 = vst [vmem:[%s3 + $0xc] sm:$0xf] %v541
  // Predicated region
  $region14: #{autoencoder_forward.7} parent=0 // pred_check
    _
  $region15: #{autoencoder_forward.7} parent=0 // pred_check_branch
    %551 = sbr.rel (0) target = $region17
  $region16: #{autoencoder_forward.7} parent=0 // pred_region
    _
  $region17: #{autoencoder_forward.7} parent=0 // pred_fallthru
    _
  // Predicated region
  $region18: #{autoencoder_forward.7} parent=0 // pred_check
    _
  $region19: #{autoencoder_forward.7} parent=0 // pred_check_branch
    %553 = sbr.rel (0) target = $region21
  $region20: #{autoencoder_forward.7} parent=0 // pred_region
    _
  $region21: #{autoencoder_forward.7} parent=0 // pred_fallthru
    _

// kernel: autoencoder_forward.8
$region0: #{autoencoder_forward.8}
  #allocation0 [shape = 'u32[]', space=smem, size = 0x4, offset = 0x4, fixed_abs, tag = 'smem constant byte address 0x4 - core index']
  #allocation1 [shape = 'u32[144,128]{1,0:T(1,128)}', space=vmem, size = 0x12000, scoped, tag = 'internal scratch']
  %s0 = inlined_call_operand.vmem [shape: bf16[8,1152], index: 0, kind: input, shape index: {}]
  %s1 = inlined_call_operand.vmem [shape: bf16[1152,256], index: 1, kind: input, shape index: {}]
  %s2 = inlined_call_operand.vmem [shape: f32[1,256], index: 2, kind: input, shape index: {}]
  %s3 = inlined_call_operand.vmem [shape: bf16[8,256], index: 3, kind: output, shape index: {}]
  %s4 = sld [smem:[#allocation0]]
  $region22: #{autoencoder_forward.8} parent=0
    _
  %s6 = ssub.s32 1, %s4
  %s7 = scalar_select 0, %s6, %s4
  // Predicated region
  $region2: #{autoencoder_forward.8} parent=0 // pred_check
    _
  $region3: #{autoencoder_forward.8} parent=0 // pred_check_branch
    %9 = sbr.rel (0) target = $region5
  $region4: #{autoencoder_forward.8} parent=0 // pred_region
    _
  $region5: #{autoencoder_forward.8} parent=0 // pred_fallthru
    _
  // Predicated region
  $region6: #{autoencoder_forward.8} parent=0 // pred_check
    _
  $region7: #{autoencoder_forward.8} parent=0 // pred_check_branch
    %11 = sbr.rel (0) target = $region9
  $region8: #{autoencoder_forward.8} parent=0 // pred_region
    _
  $region9: #{autoencoder_forward.8} parent=0 // pred_fallthru
    _
  // Predicated region
  $region10: #{autoencoder_forward.8} parent=0 // pred_check
    _
  $region11: #{autoencoder_forward.8} parent=0 // pred_check_branch
    %13 = sbr.rel (0) target = $region13
  $region12: #{autoencoder_forward.8} parent=0 // pred_region
    _
  $region13: #{autoencoder_forward.8} parent=0 // pred_fallthru
    _
  %v15 = vld [vmem:[%s0] sm:$0xff]
  %v16 = vld [vmem:[%s0 + $0x8] sm:$0xff]
  %v17 = vld [vmem:[%s0 + $0x10] sm:$0xff]
  %v18 = vld [vmem:[%s0 + $0x18] sm:$0xff]
  %v19 = vld [vmem:[%s0 + $0x20] sm:$0xf]
  %v20 = vld [vmem:[%s1] sm:$0xff]
  %v21 = vld [vmem:[%s1 + $0x8] sm:$0xff]
  %v22 = vld [vmem:[%s1 + $0x10] sm:$0xff]
  %v23 = vld [vmem:[%s1 + $0x18] sm:$0xff]
  %v24 = vld [vmem:[%s1 + $0x20] sm:$0xff]
  %v25 = vld [vmem:[%s1 + $0x28] sm:$0xff]
  %v26 = vld [vmem:[%s1 + $0x30] sm:$0xff]
  %v27 = vld [vmem:[%s1 + $0x38] sm:$0xff]
  %v28 = vld [vmem:[%s1 + $0x40] sm:$0xff]
  %v29 = vld [vmem:[%s1 + $0x48] sm:$0xff]
  %v30 = vld [vmem:[%s1 + $0x50] sm:$0xff]
  %v31 = vld [vmem:[%s1 + $0x58] sm:$0xff]
  %v32 = vld [vmem:[%s1 + $0x60] sm:$0xff]
  %v33 = vld [vmem:[%s1 + $0x68] sm:$0xff]
  %v34 = vld [vmem:[%s1 + $0x70] sm:$0xff]
  %v35 = vld [vmem:[%s1 + $0x78] sm:$0xff]
  %v36 = vld [vmem:[%s1 + $0x80] sm:$0xff]
  %v37 = vld [vmem:[%s1 + $0x88] sm:$0xff]
  %v38 = vld [vmem:[%s1 + $0x90] sm:$0xff]
  %v39 = vld [vmem:[%s1 + $0x98] sm:$0xff]
  %v40 = vld [vmem:[%s1 + $0xa0] sm:$0xff]
  %v41 = vld [vmem:[%s1 + $0xa8] sm:$0xff]
  %v42 = vld [vmem:[%s1 + $0xb0] sm:$0xff]
  %v43 = vld [vmem:[%s1 + $0xb8] sm:$0xff]
  %v44 = vld [vmem:[%s1 + $0xc0] sm:$0xff]
  %v45 = vld [vmem:[%s1 + $0xc8] sm:$0xff]
  %v46 = vld [vmem:[%s1 + $0xd0] sm:$0xff]
  %v47 = vld [vmem:[%s1 + $0xd8] sm:$0xff]
  %v48 = vld [vmem:[%s1 + $0xe0] sm:$0xff]
  %v49 = vld [vmem:[%s1 + $0xe8] sm:$0xff]
  %v50 = vld [vmem:[%s1 + $0xf0] sm:$0xff]
  %v51 = vld [vmem:[%s1 + $0xf8] sm:$0xff]
  %v52 = vld [vmem:[%s1 + $0x100] sm:$0xff]
  %v53 = vld [vmem:[%s1 + $0x108] sm:$0xff]
  %v54 = vld [vmem:[%s1 + $0x110] sm:$0xff]
  %v55 = vld [vmem:[%s1 + $0x118] sm:$0xff]
  %v56 = vld [vmem:[%s1 + $0x120] sm:$0xff]
  %v57 = vld [vmem:[%s1 + $0x128] sm:$0xff]
  %v58 = vld [vmem:[%s1 + $0x130] sm:$0xff]
  %v59 = vld [vmem:[%s1 + $0x138] sm:$0xff]
  %v60 = vld [vmem:[%s1 + $0x140] sm:$0xff]
  %v61 = vld [vmem:[%s1 + $0x148] sm:$0xff]
  %v62 = vld [vmem:[%s1 + $0x150] sm:$0xff]
  %v63 = vld [vmem:[%s1 + $0x158] sm:$0xff]
  %v64 = vld [vmem:[%s1 + $0x160] sm:$0xff]
  %v65 = vld [vmem:[%s1 + $0x168] sm:$0xff]
  %v66 = vld [vmem:[%s1 + $0x170] sm:$0xff]
  %v67 = vld [vmem:[%s1 + $0x178] sm:$0xff]
  %v68 = vld [vmem:[%s1 + $0x180] sm:$0xff]
  %v69 = vld [vmem:[%s1 + $0x188] sm:$0xff]
  %v70 = vld [vmem:[%s1 + $0x190] sm:$0xff]
  %v71 = vld [vmem:[%s1 + $0x198] sm:$0xff]
  %v72 = vld [vmem:[%s1 + $0x1a0] sm:$0xff]
  %v73 = vld [vmem:[%s1 + $0x1a8] sm:$0xff]
  %v74 = vld [vmem:[%s1 + $0x1b0] sm:$0xff]
  %v75 = vld [vmem:[%s1 + $0x1b8] sm:$0xff]
  %v76 = vld [vmem:[%s1 + $0x1c0] sm:$0xff]
  %v77 = vld [vmem:[%s1 + $0x1c8] sm:$0xff]
  %v78 = vld [vmem:[%s1 + $0x1d0] sm:$0xff]
  %v79 = vld [vmem:[%s1 + $0x1d8] sm:$0xff]
  %v80 = vld [vmem:[%s1 + $0x1e0] sm:$0xff]
  %v81 = vld [vmem:[%s1 + $0x1e8] sm:$0xff]
  %v82 = vld [vmem:[%s1 + $0x1f0] sm:$0xff]
  %v83 = vld [vmem:[%s1 + $0x1f8] sm:$0xff]
  %v84 = vld [vmem:[%s1 + $0x200] sm:$0xff]
  %v85 = vld [vmem:[%s1 + $0x208] sm:$0xff]
  %v86 = vld [vmem:[%s1 + $0x210] sm:$0xff]
  %v87 = vld [vmem:[%s1 + $0x218] sm:$0xff]
  %v88 = vld [vmem:[%s1 + $0x220] sm:$0xff]
  %v89 = vld [vmem:[%s1 + $0x228] sm:$0xff]
  %v90 = vld [vmem:[%s1 + $0x230] sm:$0xff]
  %v91 = vld [vmem:[%s1 + $0x238] sm:$0xff]
  %v92 = vld [vmem:[%s1 + $0x240] sm:$0xff]
  %v93 = vld [vmem:[%s1 + $0x248] sm:$0xff]
  %v94 = vld [vmem:[%s1 + $0x250] sm:$0xff]
  %v95 = vld [vmem:[%s1 + $0x258] sm:$0xff]
  %v96 = vld [vmem:[%s1 + $0x260] sm:$0xff]
  %v97 = vld [vmem:[%s1 + $0x268] sm:$0xff]
  %v98 = vld [vmem:[%s1 + $0x270] sm:$0xff]
  %v99 = vld [vmem:[%s1 + $0x278] sm:$0xff]
  %v100 = vld [vmem:[%s1 + $0x280] sm:$0xff]
  %v101 = vld [vmem:[%s1 + $0x288] sm:$0xff]
  %v102 = vld [vmem:[%s1 + $0x290] sm:$0xff]
  %v103 = vld [vmem:[%s1 + $0x298] sm:$0xff]
  %v104 = vld [vmem:[%s1 + $0x2a0] sm:$0xff]
  %v105 = vld [vmem:[%s1 + $0x2a8] sm:$0xff]
  %v106 = vld [vmem:[%s1 + $0x2b0] sm:$0xff]
  %v107 = vld [vmem:[%s1 + $0x2b8] sm:$0xff]
  %v108 = vld [vmem:[%s1 + $0x2c0] sm:$0xff]
  %v109 = vld [vmem:[%s1 + $0x2c8] sm:$0xff]
  %v110 = vld [vmem:[%s1 + $0x2d0] sm:$0xff]
  %v111 = vld [vmem:[%s1 + $0x2d8] sm:$0xff]
  %v112 = vld [vmem:[%s1 + $0x2e0] sm:$0xff]
  %v113 = vld [vmem:[%s1 + $0x2e8] sm:$0xff]
  %v114 = vld [vmem:[%s1 + $0x2f0] sm:$0xff]
  %v115 = vld [vmem:[%s1 + $0x2f8] sm:$0xff]
  %v116 = vld [vmem:[%s1 + $0x300] sm:$0xff]
  %v117 = vld [vmem:[%s1 + $0x308] sm:$0xff]
  %v118 = vld [vmem:[%s1 + $0x310] sm:$0xff]
  %v119 = vld [vmem:[%s1 + $0x318] sm:$0xff]
  %v120 = vld [vmem:[%s1 + $0x320] sm:$0xff]
  %v121 = vld [vmem:[%s1 + $0x328] sm:$0xff]
  %v122 = vld [vmem:[%s1 + $0x330] sm:$0xff]
  %v123 = vld [vmem:[%s1 + $0x338] sm:$0xff]
  %v124 = vld [vmem:[%s1 + $0x340] sm:$0xff]
  %v125 = vld [vmem:[%s1 + $0x348] sm:$0xff]
  %v126 = vld [vmem:[%s1 + $0x350] sm:$0xff]
  %v127 = vld [vmem:[%s1 + $0x358] sm:$0xff]
  %v128 = vld [vmem:[%s1 + $0x360] sm:$0xff]
  %v129 = vld [vmem:[%s1 + $0x368] sm:$0xff]
  %v130 = vld [vmem:[%s1 + $0x370] sm:$0xff]
  %v131 = vld [vmem:[%s1 + $0x378] sm:$0xff]
  %v132 = vld [vmem:[%s1 + $0x380] sm:$0xff]
  %v133 = vld [vmem:[%s1 + $0x388] sm:$0xff]
  %v134 = vld [vmem:[%s1 + $0x390] sm:$0xff]
  %v135 = vld [vmem:[%s1 + $0x398] sm:$0xff]
  %v136 = vld [vmem:[%s1 + $0x3a0] sm:$0xff]
  %v137 = vld [vmem:[%s1 + $0x3a8] sm:$0xff]
  %v138 = vld [vmem:[%s1 + $0x3b0] sm:$0xff]
  %v139 = vld [vmem:[%s1 + $0x3b8] sm:$0xff]
  %v140 = vld [vmem:[%s1 + $0x3c0] sm:$0xff]
  %v141 = vld [vmem:[%s1 + $0x3c8] sm:$0xff]
  %v142 = vld [vmem:[%s1 + $0x3d0] sm:$0xff]
  %v143 = vld [vmem:[%s1 + $0x3d8] sm:$0xff]
  %v144 = vld [vmem:[%s1 + $0x3e0] sm:$0xff]
  %v145 = vld [vmem:[%s1 + $0x3e8] sm:$0xff]
  %v146 = vld [vmem:[%s1 + $0x3f0] sm:$0xff]
  %v147 = vld [vmem:[%s1 + $0x3f8] sm:$0xff]
  %v148 = vld [vmem:[%s1 + $0x400] sm:$0xff]
  %v149 = vld [vmem:[%s1 + $0x408] sm:$0xff]
  %v150 = vld [vmem:[%s1 + $0x410] sm:$0xff]
  %v151 = vld [vmem:[%s1 + $0x418] sm:$0xff]
  %v152 = vld [vmem:[%s1 + $0x420] sm:$0xff]
  %v153 = vld [vmem:[%s1 + $0x428] sm:$0xff]
  %v154 = vld [vmem:[%s1 + $0x430] sm:$0xff]
  %v155 = vld [vmem:[%s1 + $0x438] sm:$0xff]
  %v156 = vld [vmem:[%s1 + $0x440] sm:$0xff]
  %v157 = vld [vmem:[%s1 + $0x448] sm:$0xff]
  %v158 = vld [vmem:[%s1 + $0x450] sm:$0xff]
  %v159 = vld [vmem:[%s1 + $0x458] sm:$0xff]
  %v160 = vld [vmem:[%s1 + $0x460] sm:$0xff]
  %v161 = vld [vmem:[%s1 + $0x468] sm:$0xff]
  %v162 = vld [vmem:[%s1 + $0x470] sm:$0xff]
  %v163 = vld [vmem:[%s1 + $0x478] sm:$0xff]
  %v164 = vld [vmem:[%s2] sm:$0x3]
  %v166 = vlaneseq
  %v167 = vshrl.u32 %v166, 7
  %v168 = vsub.s32 0, %v167
  %v169 = vrot.slane %v164, %v168
  %v170 = vlaneseq
  %v171 = vshrl.u32 %v170, 7
  %v172 = vsub.s32 1, %v171
  %v173 = vrot.slane %v164, %v172
  %v181 = vunpack.c.l.b16 %v15
  %v182 = vunpack.c.h.b16 %v15
  %v183 = vunpack.c.l.b16 %v16
  %v184 = vunpack.c.h.b16 %v16
  %v185 = vunpack.c.l.b16 %v17
  %v186 = vunpack.c.h.b16 %v17
  %v187 = vunpack.c.l.b16 %v18
  %v188 = vunpack.c.h.b16 %v18
  %v189 = vunpack.c.l.b16 %v19
  %v190 = vpack.c.b16 %v181, %v181
  %v191 = vpack.c.b16 %v182, %v182
  %v192 = vpack.c.b16 %v183, %v183
  %v193 = vpack.c.b16 %v184, %v184
  %v194 = vpack.c.b16 %v185, %v185
  %v195 = vpack.c.b16 %v186, %v186
  %v196 = vpack.c.b16 %v187, %v187
  %v197 = vpack.c.b16 %v188, %v188
  %v198 = vpack.c.b16 %v189, %v189
  %v352 = vunpack.c.l.b16 %v20
  %v353 = vunpack.c.h.b16 %v20
  %v354 = vunpack.c.l.b16 %v21
  %v355 = vunpack.c.h.b16 %v21
  %v356 = vunpack.c.l.b16 %v22
  %v357 = vunpack.c.h.b16 %v22
  %v358 = vunpack.c.l.b16 %v23
  %v359 = vunpack.c.h.b16 %v23
  %v360 = vunpack.c.l.b16 %v24
  %v361 = vunpack.c.h.b16 %v24
  %v362 = vunpack.c.l.b16 %v25
  %v363 = vunpack.c.h.b16 %v25
  %v364 = vunpack.c.l.b16 %v26
  %v365 = vunpack.c.h.b16 %v26
  %v366 = vunpack.c.l.b16 %v27
  %v367 = vunpack.c.h.b16 %v27
  %v368 = vunpack.c.l.b16 %v28
  %v369 = vunpack.c.h.b16 %v28
  %v370 = vunpack.c.l.b16 %v29
  %v371 = vunpack.c.h.b16 %v29
  %v372 = vunpack.c.l.b16 %v30
  %v373 = vunpack.c.h.b16 %v30
  %v374 = vunpack.c.l.b16 %v31
  %v375 = vunpack.c.h.b16 %v31
  %v376 = vunpack.c.l.b16 %v32
  %v377 = vunpack.c.h.b16 %v32
  %v378 = vunpack.c.l.b16 %v33
  %v379 = vunpack.c.h.b16 %v33
  %v380 = vunpack.c.l.b16 %v34
  %v381 = vunpack.c.h.b16 %v34
  %v382 = vunpack.c.l.b16 %v35
  %v383 = vunpack.c.h.b16 %v35
  %v384 = vunpack.c.l.b16 %v36
  %v385 = vunpack.c.h.b16 %v36
  %v386 = vunpack.c.l.b16 %v37
  %v387 = vunpack.c.h.b16 %v37
  %v388 = vunpack.c.l.b16 %v38
  %v389 = vunpack.c.h.b16 %v38
  %v390 = vunpack.c.l.b16 %v39
  %v391 = vunpack.c.h.b16 %v39
  %v392 = vunpack.c.l.b16 %v40
  %v393 = vunpack.c.h.b16 %v40
  %v394 = vunpack.c.l.b16 %v41
  %v395 = vunpack.c.h.b16 %v41
  %v396 = vunpack.c.l.b16 %v42
  %v397 = vunpack.c.h.b16 %v42
  %v398 = vunpack.c.l.b16 %v43
  %v399 = vunpack.c.h.b16 %v43
  %v400 = vunpack.c.l.b16 %v44
  %v401 = vunpack.c.h.b16 %v44
  %v402 = vunpack.c.l.b16 %v45
  %v403 = vunpack.c.h.b16 %v45
  %v404 = vunpack.c.l.b16 %v46
  %v405 = vunpack.c.h.b16 %v46
  %v406 = vunpack.c.l.b16 %v47
  %v407 = vunpack.c.h.b16 %v47
  %v408 = vunpack.c.l.b16 %v48
  %v409 = vunpack.c.h.b16 %v48
  %v410 = vunpack.c.l.b16 %v49
  %v411 = vunpack.c.h.b16 %v49
  %v412 = vunpack.c.l.b16 %v50
  %v413 = vunpack.c.h.b16 %v50
  %v414 = vunpack.c.l.b16 %v51
  %v415 = vunpack.c.h.b16 %v51
  %v416 = vunpack.c.l.b16 %v52
  %v417 = vunpack.c.h.b16 %v52
  %v418 = vunpack.c.l.b16 %v53
  %v419 = vunpack.c.h.b16 %v53
  %v420 = vunpack.c.l.b16 %v54
  %v421 = vunpack.c.h.b16 %v54
  %v422 = vunpack.c.l.b16 %v55
  %v423 = vunpack.c.h.b16 %v55
  %v424 = vunpack.c.l.b16 %v56
  %v425 = vunpack.c.h.b16 %v56
  %v426 = vunpack.c.l.b16 %v57
  %v427 = vunpack.c.h.b16 %v57
  %v428 = vunpack.c.l.b16 %v58
  %v429 = vunpack.c.h.b16 %v58
  %v430 = vunpack.c.l.b16 %v59
  %v431 = vunpack.c.h.b16 %v59
  %v432 = vunpack.c.l.b16 %v60
  %v433 = vunpack.c.h.b16 %v60
  %v434 = vunpack.c.l.b16 %v61
  %v435 = vunpack.c.h.b16 %v61
  %v436 = vunpack.c.l.b16 %v62
  %v437 = vunpack.c.h.b16 %v62
  %v438 = vunpack.c.l.b16 %v63
  %v439 = vunpack.c.h.b16 %v63
  %v440 = vunpack.c.l.b16 %v64
  %v441 = vunpack.c.h.b16 %v64
  %v442 = vunpack.c.l.b16 %v65
  %v443 = vunpack.c.h.b16 %v65
  %v444 = vunpack.c.l.b16 %v66
  %v445 = vunpack.c.h.b16 %v66
  %v446 = vunpack.c.l.b16 %v67
  %v447 = vunpack.c.h.b16 %v67
  %v448 = vunpack.c.l.b16 %v68
  %v449 = vunpack.c.h.b16 %v68
  %v450 = vunpack.c.l.b16 %v69
  %v451 = vunpack.c.h.b16 %v69
  %v452 = vunpack.c.l.b16 %v70
  %v453 = vunpack.c.h.b16 %v70
  %v454 = vunpack.c.l.b16 %v71
  %v455 = vunpack.c.h.b16 %v71
  %v456 = vunpack.c.l.b16 %v72
  %v457 = vunpack.c.h.b16 %v72
  %v458 = vunpack.c.l.b16 %v73
  %v459 = vunpack.c.h.b16 %v73
  %v460 = vunpack.c.l.b16 %v74
  %v461 = vunpack.c.h.b16 %v74
  %v462 = vunpack.c.l.b16 %v75
  %v463 = vunpack.c.h.b16 %v75
  %v464 = vunpack.c.l.b16 %v76
  %v465 = vunpack.c.h.b16 %v76
  %v466 = vunpack.c.l.b16 %v77
  %v467 = vunpack.c.h.b16 %v77
  %v468 = vunpack.c.l.b16 %v78
  %v469 = vunpack.c.h.b16 %v78
  %v470 = vunpack.c.l.b16 %v79
  %v471 = vunpack.c.h.b16 %v79
  %v472 = vunpack.c.l.b16 %v80
  %v473 = vunpack.c.h.b16 %v80
  %v474 = vunpack.c.l.b16 %v81
  %v475 = vunpack.c.h.b16 %v81
  %v476 = vunpack.c.l.b16 %v82
  %v477 = vunpack.c.h.b16 %v82
  %v478 = vunpack.c.l.b16 %v83
  %v479 = vunpack.c.h.b16 %v83
  %v480 = vunpack.c.l.b16 %v84
  %v481 = vunpack.c.h.b16 %v84
  %v482 = vunpack.c.l.b16 %v85
  %v483 = vunpack.c.h.b16 %v85
  %v484 = vunpack.c.l.b16 %v86
  %v485 = vunpack.c.h.b16 %v86
  %v486 = vunpack.c.l.b16 %v87
  %v487 = vunpack.c.h.b16 %v87
  %v488 = vunpack.c.l.b16 %v88
  %v489 = vunpack.c.h.b16 %v88
  %v490 = vunpack.c.l.b16 %v89
  %v491 = vunpack.c.h.b16 %v89
  %v492 = vunpack.c.l.b16 %v90
  %v493 = vunpack.c.h.b16 %v90
  %v494 = vunpack.c.l.b16 %v91
  %v495 = vunpack.c.h.b16 %v91
  %v496 = vunpack.c.l.b16 %v92
  %v497 = vunpack.c.h.b16 %v92
  %v498 = vunpack.c.l.b16 %v93
  %v499 = vunpack.c.h.b16 %v93
  %v500 = vunpack.c.l.b16 %v94
  %v501 = vunpack.c.h.b16 %v94
  %v502 = vunpack.c.l.b16 %v95
  %v503 = vunpack.c.h.b16 %v95
  %v504 = vunpack.c.l.b16 %v96
  %v505 = vunpack.c.h.b16 %v96
  %v506 = vunpack.c.l.b16 %v97
  %v507 = vunpack.c.h.b16 %v97
  %v508 = vunpack.c.l.b16 %v98
  %v509 = vunpack.c.h.b16 %v98
  %v510 = vunpack.c.l.b16 %v99
  %v511 = vunpack.c.h.b16 %v99
  %v512 = vunpack.c.l.b16 %v100
  %v513 = vunpack.c.h.b16 %v100
  %v514 = vunpack.c.l.b16 %v101
  %v515 = vunpack.c.h.b16 %v101
  %v516 = vunpack.c.l.b16 %v102
  %v517 = vunpack.c.h.b16 %v102
  %v518 = vunpack.c.l.b16 %v103
  %v519 = vunpack.c.h.b16 %v103
  %v520 = vunpack.c.l.b16 %v104
  %v521 = vunpack.c.h.b16 %v104
  %v522 = vunpack.c.l.b16 %v105
  %v523 = vunpack.c.h.b16 %v105
  %v524 = vunpack.c.l.b16 %v106
  %v525 = vunpack.c.h.b16 %v106
  %v526 = vunpack.c.l.b16 %v107
  %v527 = vunpack.c.h.b16 %v107
  %v528 = vunpack.c.l.b16 %v108
  %v529 = vunpack.c.h.b16 %v108
  %v530 = vunpack.c.l.b16 %v109
  %v531 = vunpack.c.h.b16 %v109
  %v532 = vunpack.c.l.b16 %v110
  %v533 = vunpack.c.h.b16 %v110
  %v534 = vunpack.c.l.b16 %v111
  %v535 = vunpack.c.h.b16 %v111
  %v536 = vunpack.c.l.b16 %v112
  %v537 = vunpack.c.h.b16 %v112
  %v538 = vunpack.c.l.b16 %v113
  %v539 = vunpack.c.h.b16 %v113
  %v540 = vunpack.c.l.b16 %v114
  %v541 = vunpack.c.h.b16 %v114
  %v542 = vunpack.c.l.b16 %v115
  %v543 = vunpack.c.h.b16 %v115
  %v544 = vunpack.c.l.b16 %v116
  %v545 = vunpack.c.h.b16 %v116
  %v546 = vunpack.c.l.b16 %v117
  %v547 = vunpack.c.h.b16 %v117
  %v548 = vunpack.c.l.b16 %v118
  %v549 = vunpack.c.h.b16 %v118
  %v550 = vunpack.c.l.b16 %v119
  %v551 = vunpack.c.h.b16 %v119
  %v552 = vunpack.c.l.b16 %v120
  %v553 = vunpack.c.h.b16 %v120
  %v554 = vunpack.c.l.b16 %v121
  %v555 = vunpack.c.h.b16 %v121
  %v556 = vunpack.c.l.b16 %v122
  %v557 = vunpack.c.h.b16 %v122
  %v558 = vunpack.c.l.b16 %v123
  %v559 = vunpack.c.h.b16 %v123
  %v560 = vunpack.c.l.b16 %v124
  %v561 = vunpack.c.h.b16 %v124
  %v562 = vunpack.c.l.b16 %v125
  %v563 = vunpack.c.h.b16 %v125
  %v564 = vunpack.c.l.b16 %v126
  %v565 = vunpack.c.h.b16 %v126
  %v566 = vunpack.c.l.b16 %v127
  %v567 = vunpack.c.h.b16 %v127
  %v568 = vunpack.c.l.b16 %v128
  %v569 = vunpack.c.h.b16 %v128
  %v570 = vunpack.c.l.b16 %v129
  %v571 = vunpack.c.h.b16 %v129
  %v572 = vunpack.c.l.b16 %v130
  %v573 = vunpack.c.h.b16 %v130
  %v574 = vunpack.c.l.b16 %v131
  %v575 = vunpack.c.h.b16 %v131
  %v576 = vunpack.c.l.b16 %v132
  %v577 = vunpack.c.h.b16 %v132
  %v578 = vunpack.c.l.b16 %v133
  %v579 = vunpack.c.h.b16 %v133
  %v580 = vunpack.c.l.b16 %v134
  %v581 = vunpack.c.h.b16 %v134
  %v582 = vunpack.c.l.b16 %v135
  %v583 = vunpack.c.h.b16 %v135
  %v584 = vunpack.c.l.b16 %v136
  %v585 = vunpack.c.h.b16 %v136
  %v586 = vunpack.c.l.b16 %v137
  %v587 = vunpack.c.h.b16 %v137
  %v588 = vunpack.c.l.b16 %v138
  %v589 = vunpack.c.h.b16 %v138
  %v590 = vunpack.c.l.b16 %v139
  %v591 = vunpack.c.h.b16 %v139
  %v592 = vunpack.c.l.b16 %v140
  %v593 = vunpack.c.h.b16 %v140
  %v594 = vunpack.c.l.b16 %v141
  %v595 = vunpack.c.h.b16 %v141
  %v596 = vunpack.c.l.b16 %v142
  %v597 = vunpack.c.h.b16 %v142
  %v598 = vunpack.c.l.b16 %v143
  %v599 = vunpack.c.h.b16 %v143
  %v600 = vunpack.c.l.b16 %v144
  %v601 = vunpack.c.h.b16 %v144
  %v602 = vunpack.c.l.b16 %v145
  %v603 = vunpack.c.h.b16 %v145
  %v604 = vunpack.c.l.b16 %v146
  %v605 = vunpack.c.h.b16 %v146
  %v606 = vunpack.c.l.b16 %v147
  %v607 = vunpack.c.h.b16 %v147
  %v608 = vunpack.c.l.b16 %v148
  %v609 = vunpack.c.h.b16 %v148
  %v610 = vunpack.c.l.b16 %v149
  %v611 = vunpack.c.h.b16 %v149
  %v612 = vunpack.c.l.b16 %v150
  %v613 = vunpack.c.h.b16 %v150
  %v614 = vunpack.c.l.b16 %v151
  %v615 = vunpack.c.h.b16 %v151
  %v616 = vunpack.c.l.b16 %v152
  %v617 = vunpack.c.h.b16 %v152
  %v618 = vunpack.c.l.b16 %v153
  %v619 = vunpack.c.h.b16 %v153
  %v620 = vunpack.c.l.b16 %v154
  %v621 = vunpack.c.h.b16 %v154
  %v622 = vunpack.c.l.b16 %v155
  %v623 = vunpack.c.h.b16 %v155
  %v624 = vunpack.c.l.b16 %v156
  %v625 = vunpack.c.h.b16 %v156
  %v626 = vunpack.c.l.b16 %v157
  %v627 = vunpack.c.h.b16 %v157
  %v628 = vunpack.c.l.b16 %v158
  %v629 = vunpack.c.h.b16 %v158
  %v630 = vunpack.c.l.b16 %v159
  %v631 = vunpack.c.h.b16 %v159
  %v632 = vunpack.c.l.b16 %v160
  %v633 = vunpack.c.h.b16 %v160
  %v634 = vunpack.c.l.b16 %v161
  %v635 = vunpack.c.h.b16 %v161
  %v636 = vunpack.c.l.b16 %v162
  %v637 = vunpack.c.h.b16 %v162
  %v638 = vunpack.c.l.b16 %v163
  %v639 = vunpack.c.h.b16 %v163
  %v640 = vpack.c.b16 %v354, %v352
  %v641 = vpack.c.b16 %v355, %v353
  %v642 = vpack.c.b16 %v358, %v356
  %v643 = vpack.c.b16 %v359, %v357
  %v644 = vpack.c.b16 %v362, %v360
  %v645 = vpack.c.b16 %v363, %v361
  %v646 = vpack.c.b16 %v366, %v364
  %v647 = vpack.c.b16 %v367, %v365
  %v648 = vpack.c.b16 %v370, %v368
  %v649 = vpack.c.b16 %v371, %v369
  %v650 = vpack.c.b16 %v374, %v372
  %v651 = vpack.c.b16 %v375, %v373
  %v652 = vpack.c.b16 %v378, %v376
  %v653 = vpack.c.b16 %v379, %v377
  %v654 = vpack.c.b16 %v382, %v380
  %v655 = vpack.c.b16 %v383, %v381
  %v656 = vpack.c.b16 %v386, %v384
  %v657 = vpack.c.b16 %v387, %v385
  %v658 = vpack.c.b16 %v390, %v388
  %v659 = vpack.c.b16 %v391, %v389
  %v660 = vpack.c.b16 %v394, %v392
  %v661 = vpack.c.b16 %v395, %v393
  %v662 = vpack.c.b16 %v398, %v396
  %v663 = vpack.c.b16 %v399, %v397
  %v664 = vpack.c.b16 %v402, %v400
  %v665 = vpack.c.b16 %v403, %v401
  %v666 = vpack.c.b16 %v406, %v404
  %v667 = vpack.c.b16 %v407, %v405
  %v668 = vpack.c.b16 %v410, %v408
  %v669 = vpack.c.b16 %v411, %v409
  %v670 = vpack.c.b16 %v414, %v412
  %v671 = vpack.c.b16 %v415, %v413
  %v672 = vpack.c.b16 %v418, %v416
  %v673 = vpack.c.b16 %v419, %v417
  %v674 = vpack.c.b16 %v422, %v420
  %v675 = vpack.c.b16 %v423, %v421
  %v676 = vpack.c.b16 %v426, %v424
  %v677 = vpack.c.b16 %v427, %v425
  %v678 = vpack.c.b16 %v430, %v428
  %v679 = vpack.c.b16 %v431, %v429
  %v680 = vpack.c.b16 %v434, %v432
  %v681 = vpack.c.b16 %v435, %v433
  %v682 = vpack.c.b16 %v438, %v436
  %v683 = vpack.c.b16 %v439, %v437
  %v684 = vpack.c.b16 %v442, %v440
  %v685 = vpack.c.b16 %v443, %v441
  %v686 = vpack.c.b16 %v446, %v444
  %v687 = vpack.c.b16 %v447, %v445
  %v688 = vpack.c.b16 %v450, %v448
  %v689 = vpack.c.b16 %v451, %v449
  %v690 = vpack.c.b16 %v454, %v452
  %v691 = vpack.c.b16 %v455, %v453
  %v692 = vpack.c.b16 %v458, %v456
  %v693 = vpack.c.b16 %v459, %v457
  %v694 = vpack.c.b16 %v462, %v460
  %v695 = vpack.c.b16 %v463, %v461
  %v696 = vpack.c.b16 %v466, %v464
  %v697 = vpack.c.b16 %v467, %v465
  %v698 = vpack.c.b16 %v470, %v468
  %v699 = vpack.c.b16 %v471, %v469
  %v700 = vpack.c.b16 %v474, %v472
  %v701 = vpack.c.b16 %v475, %v473
  %v702 = vpack.c.b16 %v478, %v476
  %v703 = vpack.c.b16 %v479, %v477
  %v704 = vpack.c.b16 %v482, %v480
  %v705 = vpack.c.b16 %v483, %v481
  %v706 = vpack.c.b16 %v486, %v484
  %v707 = vpack.c.b16 %v487, %v485
  %v708 = vpack.c.b16 %v490, %v488
  %v709 = vpack.c.b16 %v491, %v489
  %v710 = vpack.c.b16 %v494, %v492
  %v711 = vpack.c.b16 %v495, %v493
  %v712 = vpack.c.b16 %v498, %v496
  %v713 = vpack.c.b16 %v499, %v497
  %v714 = vpack.c.b16 %v502, %v500
  %v715 = vpack.c.b16 %v503, %v501
  %v716 = vpack.c.b16 %v506, %v504
  %v717 = vpack.c.b16 %v507, %v505
  %v718 = vpack.c.b16 %v510, %v508
  %v719 = vpack.c.b16 %v511, %v509
  %v720 = vpack.c.b16 %v514, %v512
  %v721 = vpack.c.b16 %v515, %v513
  %v722 = vpack.c.b16 %v518, %v516
  %v723 = vpack.c.b16 %v519, %v517
  %v724 = vpack.c.b16 %v522, %v520
  %v725 = vpack.c.b16 %v523, %v521
  %v726 = vpack.c.b16 %v526, %v524
  %v727 = vpack.c.b16 %v527, %v525
  %v728 = vpack.c.b16 %v530, %v528
  %v729 = vpack.c.b16 %v531, %v529
  %v730 = vpack.c.b16 %v534, %v532
  %v731 = vpack.c.b16 %v535, %v533
  %v732 = vpack.c.b16 %v538, %v536
  %v733 = vpack.c.b16 %v539, %v537
  %v734 = vpack.c.b16 %v542, %v540
  %v735 = vpack.c.b16 %v543, %v541
  %v736 = vpack.c.b16 %v546, %v544
  %v737 = vpack.c.b16 %v547, %v545
  %v738 = vpack.c.b16 %v550, %v548
  %v739 = vpack.c.b16 %v551, %v549
  %v740 = vpack.c.b16 %v554, %v552
  %v741 = vpack.c.b16 %v555, %v553
  %v742 = vpack.c.b16 %v558, %v556
  %v743 = vpack.c.b16 %v559, %v557
  %v744 = vpack.c.b16 %v562, %v560
  %v745 = vpack.c.b16 %v563, %v561
  %v746 = vpack.c.b16 %v566, %v564
  %v747 = vpack.c.b16 %v567, %v565
  %v748 = vpack.c.b16 %v570, %v568
  %v749 = vpack.c.b16 %v571, %v569
  %v750 = vpack.c.b16 %v574, %v572
  %v751 = vpack.c.b16 %v575, %v573
  %v752 = vpack.c.b16 %v578, %v576
  %v753 = vpack.c.b16 %v579, %v577
  %v754 = vpack.c.b16 %v582, %v580
  %v755 = vpack.c.b16 %v583, %v581
  %v756 = vpack.c.b16 %v586, %v584
  %v757 = vpack.c.b16 %v587, %v585
  %v758 = vpack.c.b16 %v590, %v588
  %v759 = vpack.c.b16 %v591, %v589
  %v760 = vpack.c.b16 %v594, %v592
  %v761 = vpack.c.b16 %v595, %v593
  %v762 = vpack.c.b16 %v598, %v596
  %v763 = vpack.c.b16 %v599, %v597
  %v764 = vpack.c.b16 %v602, %v600
  %v765 = vpack.c.b16 %v603, %v601
  %v766 = vpack.c.b16 %v606, %v604
  %v767 = vpack.c.b16 %v607, %v605
  %v768 = vpack.c.b16 %v610, %v608
  %v769 = vpack.c.b16 %v611, %v609
  %v770 = vpack.c.b16 %v614, %v612
  %v771 = vpack.c.b16 %v615, %v613
  %v772 = vpack.c.b16 %v618, %v616
  %v773 = vpack.c.b16 %v619, %v617
  %v774 = vpack.c.b16 %v622, %v620
  %v775 = vpack.c.b16 %v623, %v621
  %v776 = vpack.c.b16 %v626, %v624
  %v777 = vpack.c.b16 %v627, %v625
  %v778 = vpack.c.b16 %v630, %v628
  %v779 = vpack.c.b16 %v631, %v629
  %v780 = vpack.c.b16 %v634, %v632
  %v781 = vpack.c.b16 %v635, %v633
  %v782 = vpack.c.b16 %v638, %v636
  %v783 = vpack.c.b16 %v639, %v637
  %928 = vmatprep.subr.bf16.mxu0 %v641
  %929 = vmatpush1.bf16.msra.mxu0 %v640
  %930 = vmatprep.subr.bf16.mxu0 %v643
  %931 = vmatpush1.bf16.msra.mxu0 %v642
  %932 = vmatprep.subr.bf16.mxu0 %v645
  %933 = vmatpush1.bf16.msra.mxu0 %v644
  %934 = vmatprep.subr.bf16.mxu0 %v647
  %935 = vmatpush1.bf16.msra.mxu0 %v646
  %936 = vmatprep.subr.bf16.mxu0 %v649
  %937 = vmatpush1.bf16.msra.mxu0 %v648
  %938 = vmatprep.subr.bf16.mxu0 %v651
  %939 = vmatpush1.bf16.msra.mxu0 %v650
  %940 = vmatprep.subr.bf16.mxu0 %v653
  %941 = vmatpush1.bf16.msra.mxu0 %v652
  %942 = vmatprep.subr.bf16.mxu0 %v655
  %943 = vmatpush1.bf16.msra.mxu0 %v654
  %944 = vmatprep.subr.bf16.mxu0 %v657
  %945 = vmatpush1.bf16.msra.mxu0 %v656
  %946 = vmatprep.subr.bf16.mxu0 %v659
  %947 = vmatpush1.bf16.msra.mxu0 %v658
  %948 = vmatprep.subr.bf16.mxu0 %v661
  %949 = vmatpush1.bf16.msra.mxu0 %v660
  %950 = vmatprep.subr.bf16.mxu0 %v663
  %951 = vmatpush1.bf16.msra.mxu0 %v662
  %952 = vmatprep.subr.bf16.mxu0 %v665
  %953 = vmatpush1.bf16.msra.mxu0 %v664
  %954 = vmatprep.subr.bf16.mxu0 %v667
  %955 = vmatpush1.bf16.msra.mxu0 %v666
  %956 = vmatprep.subr.bf16.mxu0 %v669
  %957 = vmatpush1.bf16.msra.mxu0 %v668
  %958 = vmatprep.subr.bf16.mxu0 %v671
  %959 = vmatpush1.bf16.msra.mxu0 %v670
  %960 = vmatprep.mubr.bf16.mxu0 %v191
  %961 = vmatmul.mubr.bf16.gmra.mrb[0].mxu0 %v190
  %v962 = vpop.f32.mrb[0].mxu0
  %v963 = vadd.f32 %v169, %v962
  %v964 = vpop.f32.mrb[0].mxu0
  %v965 = vadd.f32 %v173, %v964
  %v966 = vpop.f32.mrb[0].mxu0
  %v967 = vpop.f32.mrb[0].mxu0
  %968 = vdwg.mxu0
  %969 = vmatprep.subr.bf16.mxu0 %v673
  %970 = vmatpush1.bf16.msra.mxu0 %v672
  %971 = vmatprep.subr.bf16.mxu0 %v675
  %972 = vmatpush1.bf16.msra.mxu0 %v674
  %973 = vmatprep.subr.bf16.mxu0 %v677
  %974 = vmatpush1.bf16.msra.mxu0 %v676
  %975 = vmatprep.subr.bf16.mxu0 %v679
  %976 = vmatpush1.bf16.msra.mxu0 %v678
  %977 = vmatprep.subr.bf16.mxu0 %v681
  %978 = vmatpush1.bf16.msra.mxu0 %v680
  %979 = vmatprep.subr.bf16.mxu0 %v683
  %980 = vmatpush1.bf16.msra.mxu0 %v682
  %981 = vmatprep.subr.bf16.mxu0 %v685
  %982 = vmatpush1.bf16.msra.mxu0 %v684
  %983 = vmatprep.subr.bf16.mxu0 %v687
  %984 = vmatpush1.bf16.msra.mxu0 %v686
  %985 = vmatprep.subr.bf16.mxu0 %v689
  %986 = vmatpush1.bf16.msra.mxu0 %v688
  %987 = vmatprep.subr.bf16.mxu0 %v691
  %988 = vmatpush1.bf16.msra.mxu0 %v690
  %989 = vmatprep.subr.bf16.mxu0 %v693
  %990 = vmatpush1.bf16.msra.mxu0 %v692
  %991 = vmatprep.subr.bf16.mxu0 %v695
  %992 = vmatpush1.bf16.msra.mxu0 %v694
  %993 = vmatprep.subr.bf16.mxu0 %v697
  %994 = vmatpush1.bf16.msra.mxu0 %v696
  %995 = vmatprep.subr.bf16.mxu0 %v699
  %996 = vmatpush1.bf16.msra.mxu0 %v698
  %997 = vmatprep.subr.bf16.mxu0 %v701
  %998 = vmatpush1.bf16.msra.mxu0 %v700
  %999 = vmatprep.subr.bf16.mxu0 %v703
  %1000 = vmatpush1.bf16.msra.mxu0 %v702
  %1001 = vmatprep.mubr.bf16.mxu0 %v193
  %1002 = vmatmul.mubr.bf16.gmra.mrb[0].mxu0 %v192
  %v1003 = vpop.f32.mrb[0].mxu0
  %v1004 = vadd.f32 %v963, %v1003
  %v1005 = vpop.f32.mrb[0].mxu0
  %v1006 = vadd.f32 %v965, %v1005
  %v1007 = vpop.f32.mrb[0].mxu0
  %v1008 = vpop.f32.mrb[0].mxu0
  %1009 = vdwg.mxu0
  %1010 = vmatprep.subr.bf16.mxu0 %v705
  %1011 = vmatpush1.bf16.msra.mxu0 %v704
  %1012 = vmatprep.subr.bf16.mxu0 %v707
  %1013 = vmatpush1.bf16.msra.mxu0 %v706
  %1014 = vmatprep.subr.bf16.mxu0 %v709
  %1015 = vmatpush1.bf16.msra.mxu0 %v708
  %1016 = vmatprep.subr.bf16.mxu0 %v711
  %1017 = vmatpush1.bf16.msra.mxu0 %v710
  %1018 = vmatprep.subr.bf16.mxu0 %v713
  %1019 = vmatpush1.bf16.msra.mxu0 %v712
  %1020 = vmatprep.subr.bf16.mxu0 %v715
  %1021 = vmatpush1.bf16.msra.mxu0 %v714
  %1022 = vmatprep.subr.bf16.mxu0 %v717
  %1023 = vmatpush1.bf16.msra.mxu0 %v716
  %1024 = vmatprep.subr.bf16.mxu0 %v719
  %1025 = vmatpush1.bf16.msra.mxu0 %v718
  %1026 = vmatprep.subr.bf16.mxu0 %v721
  %1027 = vmatpush1.bf16.msra.mxu0 %v720
  %1028 = vmatprep.subr.bf16.mxu0 %v723
  %1029 = vmatpush1.bf16.msra.mxu0 %v722
  %1030 = vmatprep.subr.bf16.mxu0 %v725
  %1031 = vmatpush1.bf16.msra.mxu0 %v724
  %1032 = vmatprep.subr.bf16.mxu0 %v727
  %1033 = vmatpush1.bf16.msra.mxu0 %v726
  %1034 = vmatprep.subr.bf16.mxu0 %v729
  %1035 = vmatpush1.bf16.msra.mxu0 %v728
  %1036 = vmatprep.subr.bf16.mxu0 %v731
  %1037 = vmatpush1.bf16.msra.mxu0 %v730
  %1038 = vmatprep.subr.bf16.mxu0 %v733
  %1039 = vmatpush1.bf16.msra.mxu0 %v732
  %1040 = vmatprep.subr.bf16.mxu0 %v735
  %1041 = vmatpush1.bf16.msra.mxu0 %v734
  %1042 = vmatprep.mubr.bf16.mxu0 %v195
  %1043 = vmatmul.mubr.bf16.gmra.mrb[0].mxu0 %v194
  %v1044 = vpop.f32.mrb[0].mxu0
  %v1045 = vadd.f32 %v1004, %v1044
  %v1046 = vpop.f32.mrb[0].mxu0
  %v1047 = vadd.f32 %v1006, %v1046
  %v1048 = vpop.f32.mrb[0].mxu0
  %v1049 = vpop.f32.mrb[0].mxu0
  %1050 = vdwg.mxu0
  %1051 = vmatprep.subr.bf16.mxu0 %v737
  %1052 = vmatpush1.bf16.msra.mxu0 %v736
  %1053 = vmatprep.subr.bf16.mxu0 %v739
  %1054 = vmatpush1.bf16.msra.mxu0 %v738
  %1055 = vmatprep.subr.bf16.mxu0 %v741
  %1056 = vmatpush1.bf16.msra.mxu0 %v740
  %1057 = vmatprep.subr.bf16.mxu0 %v743
  %1058 = vmatpush1.bf16.msra.mxu0 %v742
  %1059 = vmatprep.subr.bf16.mxu0 %v745
  %1060 = vmatpush1.bf16.msra.mxu0 %v744
  %1061 = vmatprep.subr.bf16.mxu0 %v747
  %1062 = vmatpush1.bf16.msra.mxu0 %v746
  %1063 = vmatprep.subr.bf16.mxu0 %v749
  %1064 = vmatpush1.bf16.msra.mxu0 %v748
  %1065 = vmatprep.subr.bf16.mxu0 %v751
  %1066 = vmatpush1.bf16.msra.mxu0 %v750
  %1067 = vmatprep.subr.bf16.mxu0 %v753
  %1068 = vmatpush1.bf16.msra.mxu0 %v752
  %1069 = vmatprep.subr.bf16.mxu0 %v755
  %1070 = vmatpush1.bf16.msra.mxu0 %v754
  %1071 = vmatprep.subr.bf16.mxu0 %v757
  %1072 = vmatpush1.bf16.msra.mxu0 %v756
  %1073 = vmatprep.subr.bf16.mxu0 %v759
  %1074 = vmatpush1.bf16.msra.mxu0 %v758
  %1075 = vmatprep.subr.bf16.mxu0 %v761
  %1076 = vmatpush1.bf16.msra.mxu0 %v760
  %1077 = vmatprep.subr.bf16.mxu0 %v763
  %1078 = vmatpush1.bf16.msra.mxu0 %v762
  %1079 = vmatprep.subr.bf16.mxu0 %v765
  %1080 = vmatpush1.bf16.msra.mxu0 %v764
  %1081 = vmatprep.subr.bf16.mxu0 %v767
  %1082 = vmatpush1.bf16.msra.mxu0 %v766
  %1083 = vmatprep.mubr.bf16.mxu0 %v197
  %1084 = vmatmul.mubr.bf16.gmra.mrb[0].mxu0 %v196
  %v1085 = vpop.f32.mrb[0].mxu0
  %v1086 = vadd.f32 %v1045, %v1085
  %v1087 = vpop.f32.mrb[0].mxu0
  %v1088 = vadd.f32 %v1047, %v1087
  %v1089 = vpop.f32.mrb[0].mxu0
  %v1090 = vpop.f32.mrb[0].mxu0
  %1091 = vdwg.mxu0
  %1092 = vmatprep.subr.bf16.mxu0 %v769
  %1093 = vmatpush1.bf16.msra.mxu0 %v768
  %1094 = vmatprep.subr.bf16.mxu0 %v771
  %1095 = vmatpush1.bf16.msra.mxu0 %v770
  %1096 = vmatprep.subr.bf16.mxu0 %v773
  %1097 = vmatpush1.bf16.msra.mxu0 %v772
  %1098 = vmatprep.subr.bf16.mxu0 %v775
  %1099 = vmatpush1.bf16.msra.mxu0 %v774
  %1100 = vmatprep.subr.bf16.mxu0 %v777
  %1101 = vmatpush1.bf16.msra.mxu0 %v776
  %1102 = vmatprep.subr.bf16.mxu0 %v779
  %1103 = vmatpush1.bf16.msra.mxu0 %v778
  %1104 = vmatprep.subr.bf16.mxu0 %v781
  %1105 = vmatpush1.bf16.msra.mxu0 %v780
  %1106 = vmatprep.subr.bf16.mxu0 %v783
  %1107 = vmatpush1.bf16.msra.mxu0 %v782
  %1108 = vmatprep.subr.bf16.mxu0 0
  %1109 = vmatpush1.bf16.msra.mxu0 0
  %1110 = vmatprep.subr.bf16.mxu0 0
  %1111 = vmatpush1.bf16.msra.mxu0 0
  %1112 = vmatprep.subr.bf16.mxu0 0
  %1113 = vmatpush1.bf16.msra.mxu0 0
  %1114 = vmatprep.subr.bf16.mxu0 0
  %1115 = vmatpush1.bf16.msra.mxu0 0
  %1116 = vmatprep.subr.bf16.mxu0 0
  %1117 = vmatpush1.bf16.msra.mxu0 0
  %1118 = vmatprep.subr.bf16.mxu0 0
  %1119 = vmatpush1.bf16.msra.mxu0 0
  %1120 = vmatprep.subr.bf16.mxu0 0
  %1121 = vmatpush1.bf16.msra.mxu0 0
  %1122 = vmatprep.subr.bf16.mxu0 0
  %1123 = vmatpush1.bf16.msra.mxu0 0
  %1124 = vmatprep.mubr.bf16.mxu0 0
  %1125 = vmatmul.mubr.bf16.gmra.mrb[0].mxu0 %v198
  %v1126 = vpop.f32.mrb[0].mxu0
  %v1127 = vadd.f32 %v1086, %v1126
  %v1128 = vpop.f32.mrb[0].mxu0
  %v1129 = vadd.f32 %v1088, %v1128
  %v1130 = vpop.f32.mrb[0].mxu0
  %v1131 = vpop.f32.mrb[0].mxu0
  %1132 = vdwg.mxu0
  %v1133 = vmax.f32 %v1127, 0.0
  %v1134 = vmax.f32 %v1129, 0.0
  %v1135 = vpack.c.bf16 %v1133, %v1133
  %v1136 = vpack.c.bf16 %v1134, %v1134
  %v1139 = vunpack.c.l.b16 %v1135
  %v1140 = vunpack.c.l.b16 %v1136
  %v1141 = vpack.c.b16 %v1140, %v1139
  %1143 = vst [vmem:[%s3] sm:$0xff] %v1141
  // Predicated region
  $region14: #{autoencoder_forward.8} parent=0 // pred_check
    _
  $region15: #{autoencoder_forward.8} parent=0 // pred_check_branch
    %1145 = sbr.rel (0) target = $region17
  $region16: #{autoencoder_forward.8} parent=0 // pred_region
    _
  $region17: #{autoencoder_forward.8} parent=0 // pred_fallthru
    _
  // Predicated region
  $region18: #{autoencoder_forward.8} parent=0 // pred_check
    _
  $region19: #{autoencoder_forward.8} parent=0 // pred_check_branch
    %1147 = sbr.rel (0) target = $region21
  $region20: #{autoencoder_forward.8} parent=0 // pred_region
    _
  $region21: #{autoencoder_forward.8} parent=0 // pred_fallthru
    _

// kernel: autoencoder_forward.10
$region0: #{autoencoder_forward.10}
  #allocation0 [shape = 'u32[]', space=smem, size = 0x4, offset = 0x4, fixed_abs, tag = 'smem constant byte address 0x4 - core index']
  #allocation1 [shape = 'u32[144,128]{1,0:T(1,128)}', space=vmem, size = 0x12000, scoped, tag = 'internal scratch']
  %s0 = inlined_call_operand.vmem [shape: bf16[32,512], index: 0, kind: input, shape index: {}]
  %s1 = inlined_call_operand.vmem [shape: bf16[512,256], index: 1, kind: input, shape index: {}]
  %s2 = inlined_call_operand.vmem [shape: f32[1,256], index: 2, kind: input, shape index: {}]
  %s3 = inlined_call_operand.vmem [shape: bf16[32,256], index: 3, kind: output, shape index: {}]
  %s4 = sld [smem:[#allocation0]]
  $region22: #{autoencoder_forward.10} parent=0
    _
  %s6 = ssub.s32 1, %s4
  %s7 = scalar_select 0, %s6, %s4
  // Predicated region
  $region2: #{autoencoder_forward.10} parent=0 // pred_check
    _
  $region3: #{autoencoder_forward.10} parent=0 // pred_check_branch
    %9 = sbr.rel (0) target = $region5
  $region4: #{autoencoder_forward.10} parent=0 // pred_region
    _
  $region5: #{autoencoder_forward.10} parent=0 // pred_fallthru
    _
  // Predicated region
  $region6: #{autoencoder_forward.10} parent=0 // pred_check
    _
  $region7: #{autoencoder_forward.10} parent=0 // pred_check_branch
    %11 = sbr.rel (0) target = $region9
  $region8: #{autoencoder_forward.10} parent=0 // pred_region
    _
  $region9: #{autoencoder_forward.10} parent=0 // pred_fallthru
    _
  // Predicated region
  $region10: #{autoencoder_forward.10} parent=0 // pred_check
    _
  $region11: #{autoencoder_forward.10} parent=0 // pred_check_branch
    %13 = sbr.rel (0) target = $region13
  $region12: #{autoencoder_forward.10} parent=0 // pred_region
    _
  $region13: #{autoencoder_forward.10} parent=0 // pred_fallthru
    _
  %v14 = vld [vmem:[%s0] sm:$0xff]
  %v15 = vld [vmem:[%s0 + $0x8] sm:$0xff]
  %v16 = vld [vmem:[%s0 + $0x10] sm:$0xff]
  %v17 = vld [vmem:[%s0 + $0x18] sm:$0xff]
  %v18 = vld [vmem:[%s0 + $0x20] sm:$0xff]
  %v19 = vld [vmem:[%s0 + $0x28] sm:$0xff]
  %v20 = vld [vmem:[%s0 + $0x30] sm:$0xff]
  %v21 = vld [vmem:[%s0 + $0x38] sm:$0xff]
  %v22 = vld [vmem:[%s1] sm:$0xff]
  %v23 = vld [vmem:[%s1 + $0x8] sm:$0xff]
  %v24 = vld [vmem:[%s1 + $0x10] sm:$0xff]
  %v25 = vld [vmem:[%s1 + $0x18] sm:$0xff]
  %v26 = vld [vmem:[%s1 + $0x20] sm:$0xff]
  %v27 = vld [vmem:[%s1 + $0x28] sm:$0xff]
  %v28 = vld [vmem:[%s1 + $0x30] sm:$0xff]
  %v29 = vld [vmem:[%s1 + $0x38] sm:$0xff]
  %v30 = vld [vmem:[%s1 + $0x40] sm:$0xff]
  %v31 = vld [vmem:[%s1 + $0x48] sm:$0xff]
  %v32 = vld [vmem:[%s1 + $0x50] sm:$0xff]
  %v33 = vld [vmem:[%s1 + $0x58] sm:$0xff]
  %v34 = vld [vmem:[%s1 + $0x60] sm:$0xff]
  %v35 = vld [vmem:[%s1 + $0x68] sm:$0xff]
  %v36 = vld [vmem:[%s1 + $0x70] sm:$0xff]
  %v37 = vld [vmem:[%s1 + $0x78] sm:$0xff]
  %v38 = vld [vmem:[%s1 + $0x80] sm:$0xff]
  %v39 = vld [vmem:[%s1 + $0x88] sm:$0xff]
  %v40 = vld [vmem:[%s1 + $0x90] sm:$0xff]
  %v41 = vld [vmem:[%s1 + $0x98] sm:$0xff]
  %v42 = vld [vmem:[%s1 + $0xa0] sm:$0xff]
  %v43 = vld [vmem:[%s1 + $0xa8] sm:$0xff]
  %v44 = vld [vmem:[%s1 + $0xb0] sm:$0xff]
  %v45 = vld [vmem:[%s1 + $0xb8] sm:$0xff]
  %v46 = vld [vmem:[%s1 + $0xc0] sm:$0xff]
  %v47 = vld [vmem:[%s1 + $0xc8] sm:$0xff]
  %v48 = vld [vmem:[%s1 + $0xd0] sm:$0xff]
  %v49 = vld [vmem:[%s1 + $0xd8] sm:$0xff]
  %v50 = vld [vmem:[%s1 + $0xe0] sm:$0xff]
  %v51 = vld [vmem:[%s1 + $0xe8] sm:$0xff]
  %v52 = vld [vmem:[%s1 + $0xf0] sm:$0xff]
  %v53 = vld [vmem:[%s1 + $0xf8] sm:$0xff]
  %v54 = vld [vmem:[%s1 + $0x100] sm:$0xff]
  %v55 = vld [vmem:[%s1 + $0x108] sm:$0xff]
  %v56 = vld [vmem:[%s1 + $0x110] sm:$0xff]
  %v57 = vld [vmem:[%s1 + $0x118] sm:$0xff]
  %v58 = vld [vmem:[%s1 + $0x120] sm:$0xff]
  %v59 = vld [vmem:[%s1 + $0x128] sm:$0xff]
  %v60 = vld [vmem:[%s1 + $0x130] sm:$0xff]
  %v61 = vld [vmem:[%s1 + $0x138] sm:$0xff]
  %v62 = vld [vmem:[%s1 + $0x140] sm:$0xff]
  %v63 = vld [vmem:[%s1 + $0x148] sm:$0xff]
  %v64 = vld [vmem:[%s1 + $0x150] sm:$0xff]
  %v65 = vld [vmem:[%s1 + $0x158] sm:$0xff]
  %v66 = vld [vmem:[%s1 + $0x160] sm:$0xff]
  %v67 = vld [vmem:[%s1 + $0x168] sm:$0xff]
  %v68 = vld [vmem:[%s1 + $0x170] sm:$0xff]
  %v69 = vld [vmem:[%s1 + $0x178] sm:$0xff]
  %v70 = vld [vmem:[%s1 + $0x180] sm:$0xff]
  %v71 = vld [vmem:[%s1 + $0x188] sm:$0xff]
  %v72 = vld [vmem:[%s1 + $0x190] sm:$0xff]
  %v73 = vld [vmem:[%s1 + $0x198] sm:$0xff]
  %v74 = vld [vmem:[%s1 + $0x1a0] sm:$0xff]
  %v75 = vld [vmem:[%s1 + $0x1a8] sm:$0xff]
  %v76 = vld [vmem:[%s1 + $0x1b0] sm:$0xff]
  %v77 = vld [vmem:[%s1 + $0x1b8] sm:$0xff]
  %v78 = vld [vmem:[%s1 + $0x1c0] sm:$0xff]
  %v79 = vld [vmem:[%s1 + $0x1c8] sm:$0xff]
  %v80 = vld [vmem:[%s1 + $0x1d0] sm:$0xff]
  %v81 = vld [vmem:[%s1 + $0x1d8] sm:$0xff]
  %v82 = vld [vmem:[%s1 + $0x1e0] sm:$0xff]
  %v83 = vld [vmem:[%s1 + $0x1e8] sm:$0xff]
  %v84 = vld [vmem:[%s1 + $0x1f0] sm:$0xff]
  %v85 = vld [vmem:[%s1 + $0x1f8] sm:$0xff]
  %v86 = vld [vmem:[%s2] sm:$0x3]
  %v88 = vlaneseq
  %v89 = vshrl.u32 %v88, 7
  %v90 = vsub.s32 0, %v89
  %v91 = vrot.slane %v86, %v90
  %v92 = vlaneseq
  %v93 = vshrl.u32 %v92, 7
  %v94 = vsub.s32 1, %v93
  %v95 = vrot.slane %v86, %v94
  %v106 = vunpack.c.l.b16 %v14
  %v107 = vunpack.c.h.b16 %v14
  %v108 = vunpack.c.l.b16 %v15
  %v109 = vunpack.c.h.b16 %v15
  %v110 = vunpack.c.l.b16 %v16
  %v111 = vunpack.c.h.b16 %v16
  %v112 = vunpack.c.l.b16 %v17
  %v113 = vunpack.c.h.b16 %v17
  %v114 = vunpack.c.l.b16 %v18
  %v115 = vunpack.c.h.b16 %v18
  %v116 = vunpack.c.l.b16 %v19
  %v117 = vunpack.c.h.b16 %v19
  %v118 = vunpack.c.l.b16 %v20
  %v119 = vunpack.c.h.b16 %v20
  %v120 = vunpack.c.l.b16 %v21
  %v121 = vunpack.c.h.b16 %v21
  %v122 = vpack.c.b16 %v110, %v106
  %v123 = vpack.c.b16 %v111, %v107
  %v124 = vpack.c.b16 %v112, %v108
  %v125 = vpack.c.b16 %v113, %v109
  %v126 = vpack.c.b16 %v118, %v114
  %v127 = vpack.c.b16 %v119, %v115
  %v128 = vpack.c.b16 %v120, %v116
  %v129 = vpack.c.b16 %v121, %v117
  %v202 = vunpack.c.l.b16 %v22
  %v203 = vunpack.c.h.b16 %v22
  %v204 = vunpack.c.l.b16 %v23
  %v205 = vunpack.c.h.b16 %v23
  %v206 = vunpack.c.l.b16 %v24
  %v207 = vunpack.c.h.b16 %v24
  %v208 = vunpack.c.l.b16 %v25
  %v209 = vunpack.c.h.b16 %v25
  %v210 = vunpack.c.l.b16 %v26
  %v211 = vunpack.c.h.b16 %v26
  %v212 = vunpack.c.l.b16 %v27
  %v213 = vunpack.c.h.b16 %v27
  %v214 = vunpack.c.l.b16 %v28
  %v215 = vunpack.c.h.b16 %v28
  %v216 = vunpack.c.l.b16 %v29
  %v217 = vunpack.c.h.b16 %v29
  %v218 = vunpack.c.l.b16 %v30
  %v219 = vunpack.c.h.b16 %v30
  %v220 = vunpack.c.l.b16 %v31
  %v221 = vunpack.c.h.b16 %v31
  %v222 = vunpack.c.l.b16 %v32
  %v223 = vunpack.c.h.b16 %v32
  %v224 = vunpack.c.l.b16 %v33
  %v225 = vunpack.c.h.b16 %v33
  %v226 = vunpack.c.l.b16 %v34
  %v227 = vunpack.c.h.b16 %v34
  %v228 = vunpack.c.l.b16 %v35
  %v229 = vunpack.c.h.b16 %v35
  %v230 = vunpack.c.l.b16 %v36
  %v231 = vunpack.c.h.b16 %v36
  %v232 = vunpack.c.l.b16 %v37
  %v233 = vunpack.c.h.b16 %v37
  %v234 = vunpack.c.l.b16 %v38
  %v235 = vunpack.c.h.b16 %v38
  %v236 = vunpack.c.l.b16 %v39
  %v237 = vunpack.c.h.b16 %v39
  %v238 = vunpack.c.l.b16 %v40
  %v239 = vunpack.c.h.b16 %v40
  %v240 = vunpack.c.l.b16 %v41
  %v241 = vunpack.c.h.b16 %v41
  %v242 = vunpack.c.l.b16 %v42
  %v243 = vunpack.c.h.b16 %v42
  %v244 = vunpack.c.l.b16 %v43
  %v245 = vunpack.c.h.b16 %v43
  %v246 = vunpack.c.l.b16 %v44
  %v247 = vunpack.c.h.b16 %v44
  %v248 = vunpack.c.l.b16 %v45
  %v249 = vunpack.c.h.b16 %v45
  %v250 = vunpack.c.l.b16 %v46
  %v251 = vunpack.c.h.b16 %v46
  %v252 = vunpack.c.l.b16 %v47
  %v253 = vunpack.c.h.b16 %v47
  %v254 = vunpack.c.l.b16 %v48
  %v255 = vunpack.c.h.b16 %v48
  %v256 = vunpack.c.l.b16 %v49
  %v257 = vunpack.c.h.b16 %v49
  %v258 = vunpack.c.l.b16 %v50
  %v259 = vunpack.c.h.b16 %v50
  %v260 = vunpack.c.l.b16 %v51
  %v261 = vunpack.c.h.b16 %v51
  %v262 = vunpack.c.l.b16 %v52
  %v263 = vunpack.c.h.b16 %v52
  %v264 = vunpack.c.l.b16 %v53
  %v265 = vunpack.c.h.b16 %v53
  %v266 = vunpack.c.l.b16 %v54
  %v267 = vunpack.c.h.b16 %v54
  %v268 = vunpack.c.l.b16 %v55
  %v269 = vunpack.c.h.b16 %v55
  %v270 = vunpack.c.l.b16 %v56
  %v271 = vunpack.c.h.b16 %v56
  %v272 = vunpack.c.l.b16 %v57
  %v273 = vunpack.c.h.b16 %v57
  %v274 = vunpack.c.l.b16 %v58
  %v275 = vunpack.c.h.b16 %v58
  %v276 = vunpack.c.l.b16 %v59
  %v277 = vunpack.c.h.b16 %v59
  %v278 = vunpack.c.l.b16 %v60
  %v279 = vunpack.c.h.b16 %v60
  %v280 = vunpack.c.l.b16 %v61
  %v281 = vunpack.c.h.b16 %v61
  %v282 = vunpack.c.l.b16 %v62
  %v283 = vunpack.c.h.b16 %v62
  %v284 = vunpack.c.l.b16 %v63
  %v285 = vunpack.c.h.b16 %v63
  %v286 = vunpack.c.l.b16 %v64
  %v287 = vunpack.c.h.b16 %v64
  %v288 = vunpack.c.l.b16 %v65
  %v289 = vunpack.c.h.b16 %v65
  %v290 = vunpack.c.l.b16 %v66
  %v291 = vunpack.c.h.b16 %v66
  %v292 = vunpack.c.l.b16 %v67
  %v293 = vunpack.c.h.b16 %v67
  %v294 = vunpack.c.l.b16 %v68
  %v295 = vunpack.c.h.b16 %v68
  %v296 = vunpack.c.l.b16 %v69
  %v297 = vunpack.c.h.b16 %v69
  %v298 = vunpack.c.l.b16 %v70
  %v299 = vunpack.c.h.b16 %v70
  %v300 = vunpack.c.l.b16 %v71
  %v301 = vunpack.c.h.b16 %v71
  %v302 = vunpack.c.l.b16 %v72
  %v303 = vunpack.c.h.b16 %v72
  %v304 = vunpack.c.l.b16 %v73
  %v305 = vunpack.c.h.b16 %v73
  %v306 = vunpack.c.l.b16 %v74
  %v307 = vunpack.c.h.b16 %v74
  %v308 = vunpack.c.l.b16 %v75
  %v309 = vunpack.c.h.b16 %v75
  %v310 = vunpack.c.l.b16 %v76
  %v311 = vunpack.c.h.b16 %v76
  %v312 = vunpack.c.l.b16 %v77
  %v313 = vunpack.c.h.b16 %v77
  %v314 = vunpack.c.l.b16 %v78
  %v315 = vunpack.c.h.b16 %v78
  %v316 = vunpack.c.l.b16 %v79
  %v317 = vunpack.c.h.b16 %v79
  %v318 = vunpack.c.l.b16 %v80
  %v319 = vunpack.c.h.b16 %v80
  %v320 = vunpack.c.l.b16 %v81
  %v321 = vunpack.c.h.b16 %v81
  %v322 = vunpack.c.l.b16 %v82
  %v323 = vunpack.c.h.b16 %v82
  %v324 = vunpack.c.l.b16 %v83
  %v325 = vunpack.c.h.b16 %v83
  %v326 = vunpack.c.l.b16 %v84
  %v327 = vunpack.c.h.b16 %v84
  %v328 = vunpack.c.l.b16 %v85
  %v329 = vunpack.c.h.b16 %v85
  %v330 = vpack.c.b16 %v204, %v202
  %v331 = vpack.c.b16 %v205, %v203
  %v332 = vpack.c.b16 %v208, %v206
  %v333 = vpack.c.b16 %v209, %v207
  %v334 = vpack.c.b16 %v212, %v210
  %v335 = vpack.c.b16 %v213, %v211
  %v336 = vpack.c.b16 %v216, %v214
  %v337 = vpack.c.b16 %v217, %v215
  %v338 = vpack.c.b16 %v220, %v218
  %v339 = vpack.c.b16 %v221, %v219
  %v340 = vpack.c.b16 %v224, %v222
  %v341 = vpack.c.b16 %v225, %v223
  %v342 = vpack.c.b16 %v228, %v226
  %v343 = vpack.c.b16 %v229, %v227
  %v344 = vpack.c.b16 %v232, %v230
  %v345 = vpack.c.b16 %v233, %v231
  %v346 = vpack.c.b16 %v236, %v234
  %v347 = vpack.c.b16 %v237, %v235
  %v348 = vpack.c.b16 %v240, %v238
  %v349 = vpack.c.b16 %v241, %v239
  %v350 = vpack.c.b16 %v244, %v242
  %v351 = vpack.c.b16 %v245, %v243
  %v352 = vpack.c.b16 %v248, %v246
  %v353 = vpack.c.b16 %v249, %v247
  %v354 = vpack.c.b16 %v252, %v250
  %v355 = vpack.c.b16 %v253, %v251
  %v356 = vpack.c.b16 %v256, %v254
  %v357 = vpack.c.b16 %v257, %v255
  %v358 = vpack.c.b16 %v260, %v258
  %v359 = vpack.c.b16 %v261, %v259
  %v360 = vpack.c.b16 %v264, %v262
  %v361 = vpack.c.b16 %v265, %v263
  %v362 = vpack.c.b16 %v268, %v266
  %v363 = vpack.c.b16 %v269, %v267
  %v364 = vpack.c.b16 %v272, %v270
  %v365 = vpack.c.b16 %v273, %v271
  %v366 = vpack.c.b16 %v276, %v274
  %v367 = vpack.c.b16 %v277, %v275
  %v368 = vpack.c.b16 %v280, %v278
  %v369 = vpack.c.b16 %v281, %v279
  %v370 = vpack.c.b16 %v284, %v282
  %v371 = vpack.c.b16 %v285, %v283
  %v372 = vpack.c.b16 %v288, %v286
  %v373 = vpack.c.b16 %v289, %v287
  %v374 = vpack.c.b16 %v292, %v290
  %v375 = vpack.c.b16 %v293, %v291
  %v376 = vpack.c.b16 %v296, %v294
  %v377 = vpack.c.b16 %v297, %v295
  %v378 = vpack.c.b16 %v300, %v298
  %v379 = vpack.c.b16 %v301, %v299
  %v380 = vpack.c.b16 %v304, %v302
  %v381 = vpack.c.b16 %v305, %v303
  %v382 = vpack.c.b16 %v308, %v306
  %v383 = vpack.c.b16 %v309, %v307
  %v384 = vpack.c.b16 %v312, %v310
  %v385 = vpack.c.b16 %v313, %v311
  %v386 = vpack.c.b16 %v316, %v314
  %v387 = vpack.c.b16 %v317, %v315
  %v388 = vpack.c.b16 %v320, %v318
  %v389 = vpack.c.b16 %v321, %v319
  %v390 = vpack.c.b16 %v324, %v322
  %v391 = vpack.c.b16 %v325, %v323
  %v392 = vpack.c.b16 %v328, %v326
  %v393 = vpack.c.b16 %v329, %v327
  %458 = vmatprep.subr.bf16.mxu0 %v331
  %459 = vmatpush1.bf16.msra.mxu0 %v330
  %460 = vmatprep.subr.bf16.mxu0 %v333
  %461 = vmatpush1.bf16.msra.mxu0 %v332
  %462 = vmatprep.subr.bf16.mxu0 %v335
  %463 = vmatpush1.bf16.msra.mxu0 %v334
  %464 = vmatprep.subr.bf16.mxu0 %v337
  %465 = vmatpush1.bf16.msra.mxu0 %v336
  %466 = vmatprep.subr.bf16.mxu0 %v339
  %467 = vmatpush1.bf16.msra.mxu0 %v338
  %468 = vmatprep.subr.bf16.mxu0 %v341
  %469 = vmatpush1.bf16.msra.mxu0 %v340
  %470 = vmatprep.subr.bf16.mxu0 %v343
  %471 = vmatpush1.bf16.msra.mxu0 %v342
  %472 = vmatprep.subr.bf16.mxu0 %v345
  %473 = vmatpush1.bf16.msra.mxu0 %v344
  %474 = vmatprep.subr.bf16.mxu0 %v347
  %475 = vmatpush1.bf16.msra.mxu0 %v346
  %476 = vmatprep.subr.bf16.mxu0 %v349
  %477 = vmatpush1.bf16.msra.mxu0 %v348
  %478 = vmatprep.subr.bf16.mxu0 %v351
  %479 = vmatpush1.bf16.msra.mxu0 %v350
  %480 = vmatprep.subr.bf16.mxu0 %v353
  %481 = vmatpush1.bf16.msra.mxu0 %v352
  %482 = vmatprep.subr.bf16.mxu0 %v355
  %483 = vmatpush1.bf16.msra.mxu0 %v354
  %484 = vmatprep.subr.bf16.mxu0 %v357
  %485 = vmatpush1.bf16.msra.mxu0 %v356
  %486 = vmatprep.subr.bf16.mxu0 %v359
  %487 = vmatpush1.bf16.msra.mxu0 %v358
  %488 = vmatprep.subr.bf16.mxu0 %v361
  %489 = vmatpush1.bf16.msra.mxu0 %v360
  %490 = vmatprep.mubr.bf16.mxu0 %v123
  %491 = vmatmul.mubr.bf16.gmra.mrb[0].mxu0 %v122
  %v492 = vpop.f32.mrb[0].mxu0
  %v493 = vadd.f32 %v91, %v492
  %v494 = vpop.f32.mrb[0].mxu0
  %v495 = vadd.f32 %v95, %v494
  %v496 = vpop.f32.mrb[0].mxu0
  %v497 = vadd.f32 %v91, %v496
  %v498 = vpop.f32.mrb[0].mxu0
  %v499 = vadd.f32 %v95, %v498
  %500 = vmatprep.mubr.bf16.mxu0 %v127
  %501 = vmatmul.mubr.bf16.gmra.mrb[0].mxu0 %v126
  %v502 = vpop.f32.mrb[0].mxu0
  %v503 = vadd.f32 %v91, %v502
  %v504 = vpop.f32.mrb[0].mxu0
  %v505 = vadd.f32 %v95, %v504
  %v506 = vpop.f32.mrb[0].mxu0
  %v507 = vadd.f32 %v91, %v506
  %v508 = vpop.f32.mrb[0].mxu0
  %v509 = vadd.f32 %v95, %v508
  %510 = vdwg.mxu0
  %511 = vmatprep.subr.bf16.mxu0 %v363
  %512 = vmatpush1.bf16.msra.mxu0 %v362
  %513 = vmatprep.subr.bf16.mxu0 %v365
  %514 = vmatpush1.bf16.msra.mxu0 %v364
  %515 = vmatprep.subr.bf16.mxu0 %v367
  %516 = vmatpush1.bf16.msra.mxu0 %v366
  %517 = vmatprep.subr.bf16.mxu0 %v369
  %518 = vmatpush1.bf16.msra.mxu0 %v368
  %519 = vmatprep.subr.bf16.mxu0 %v371
  %520 = vmatpush1.bf16.msra.mxu0 %v370
  %521 = vmatprep.subr.bf16.mxu0 %v373
  %522 = vmatpush1.bf16.msra.mxu0 %v372
  %523 = vmatprep.subr.bf16.mxu0 %v375
  %524 = vmatpush1.bf16.msra.mxu0 %v374
  %525 = vmatprep.subr.bf16.mxu0 %v377
  %526 = vmatpush1.bf16.msra.mxu0 %v376
  %527 = vmatprep.subr.bf16.mxu0 %v379
  %528 = vmatpush1.bf16.msra.mxu0 %v378
  %529 = vmatprep.subr.bf16.mxu0 %v381
  %530 = vmatpush1.bf16.msra.mxu0 %v380
  %531 = vmatprep.subr.bf16.mxu0 %v383
  %532 = vmatpush1.bf16.msra.mxu0 %v382
  %533 = vmatprep.subr.bf16.mxu0 %v385
  %534 = vmatpush1.bf16.msra.mxu0 %v384
  %535 = vmatprep.subr.bf16.mxu0 %v387
  %536 = vmatpush1.bf16.msra.mxu0 %v386
  %537 = vmatprep.subr.bf16.mxu0 %v389
  %538 = vmatpush1.bf16.msra.mxu0 %v388
  %539 = vmatprep.subr.bf16.mxu0 %v391
  %540 = vmatpush1.bf16.msra.mxu0 %v390
  %541 = vmatprep.subr.bf16.mxu0 %v393
  %542 = vmatpush1.bf16.msra.mxu0 %v392
  %543 = vmatprep.mubr.bf16.mxu0 %v125
  %544 = vmatmul.mubr.bf16.gmra.mrb[0].mxu0 %v124
  %v545 = vpop.f32.mrb[0].mxu0
  %v546 = vadd.f32 %v493, %v545
  %v547 = vpop.f32.mrb[0].mxu0
  %v548 = vadd.f32 %v495, %v547
  %v549 = vpop.f32.mrb[0].mxu0
  %v550 = vadd.f32 %v497, %v549
  %v551 = vpop.f32.mrb[0].mxu0
  %v552 = vadd.f32 %v499, %v551
  %553 = vmatprep.mubr.bf16.mxu0 %v129
  %554 = vmatmul.mubr.bf16.gmra.mrb[0].mxu0 %v128
  %v555 = vpop.f32.mrb[0].mxu0
  %v556 = vadd.f32 %v503, %v555
  %v557 = vpop.f32.mrb[0].mxu0
  %v558 = vadd.f32 %v505, %v557
  %v559 = vpop.f32.mrb[0].mxu0
  %v560 = vadd.f32 %v507, %v559
  %v561 = vpop.f32.mrb[0].mxu0
  %v562 = vadd.f32 %v509, %v561
  %563 = vdwg.mxu0
  %v564 = vmax.f32 %v546, 0.0
  %v565 = vmax.f32 %v548, 0.0
  %v566 = vmax.f32 %v550, 0.0
  %v567 = vmax.f32 %v552, 0.0
  %v568 = vmax.f32 %v556, 0.0
  %v569 = vmax.f32 %v558, 0.0
  %v570 = vmax.f32 %v560, 0.0
  %v571 = vmax.f32 %v562, 0.0
  %v572 = vpack.c.bf16 %v566, %v564
  %v573 = vpack.c.bf16 %v567, %v565
  %v574 = vpack.c.bf16 %v570, %v568
  %v575 = vpack.c.bf16 %v571, %v569
  %v580 = vunpack.c.l.b16 %v572
  %v581 = vunpack.c.l.b16 %v573
  %v582 = vunpack.c.h.b16 %v572
  %v583 = vunpack.c.h.b16 %v573
  %v584 = vunpack.c.l.b16 %v574
  %v585 = vunpack.c.l.b16 %v575
  %v586 = vunpack.c.h.b16 %v574
  %v587 = vunpack.c.h.b16 %v575
  %v588 = vpack.c.b16 %v581, %v580
  %v589 = vpack.c.b16 %v583, %v582
  %v590 = vpack.c.b16 %v585, %v584
  %v591 = vpack.c.b16 %v587, %v586
  %596 = vst [vmem:[%s3] sm:$0xff] %v588
  %597 = vst [vmem:[%s3 + $0x8] sm:$0xff] %v589
  %598 = vst [vmem:[%s3 + $0x10] sm:$0xff] %v590
  %599 = vst [vmem:[%s3 + $0x18] sm:$0xff] %v591
  // Predicated region
  $region14: #{autoencoder_forward.10} parent=0 // pred_check
    _
  $region15: #{autoencoder_forward.10} parent=0 // pred_check_branch
    %601 = sbr.rel (0) target = $region17
  $region16: #{autoencoder_forward.10} parent=0 // pred_region
    _
  $region17: #{autoencoder_forward.10} parent=0 // pred_fallthru
    _
  // Predicated region
  $region18: #{autoencoder_forward.10} parent=0 // pred_check
    _
  $region19: #{autoencoder_forward.10} parent=0 // pred_check_branch
    %603 = sbr.rel (0) target = $region21
  $region20: #{autoencoder_forward.10} parent=0 // pred_region
    _
  $region21: #{autoencoder_forward.10} parent=0 // pred_fallthru
    _

// kernel: autoencoder_forward.9
$region0: #{autoencoder_forward.9}
  #allocation0 [shape = 'u32[]', space=smem, size = 0x4, offset = 0x4, fixed_abs, tag = 'smem constant byte address 0x4 - core index']
  #allocation1 [shape = 'u32[144,128]{1,0:T(1,128)}', space=vmem, size = 0x12000, scoped, tag = 'internal scratch']
  %s0 = inlined_call_operand.vmem [shape: bf16[8,1024], index: 0, kind: input, shape index: {}]
  %s1 = inlined_call_operand.vmem [shape: bf16[1024,512], index: 1, kind: input, shape index: {}]
  %s2 = inlined_call_operand.vmem [shape: f32[1,512], index: 2, kind: input, shape index: {}]
  %s3 = inlined_call_operand.vmem [shape: bf16[8,512], index: 3, kind: output, shape index: {}]
  %s4 = sld [smem:[#allocation0]]
  $region22: #{autoencoder_forward.9} parent=0
    _
  %s6 = ssub.s32 1, %s4
  %s7 = scalar_select 0, %s6, %s4
  // Predicated region
  $region2: #{autoencoder_forward.9} parent=0 // pred_check
    _
  $region3: #{autoencoder_forward.9} parent=0 // pred_check_branch
    %9 = sbr.rel (0) target = $region5
  $region4: #{autoencoder_forward.9} parent=0 // pred_region
    _
  $region5: #{autoencoder_forward.9} parent=0 // pred_fallthru
    _
  // Predicated region
  $region6: #{autoencoder_forward.9} parent=0 // pred_check
    _
  $region7: #{autoencoder_forward.9} parent=0 // pred_check_branch
    %11 = sbr.rel (0) target = $region9
  $region8: #{autoencoder_forward.9} parent=0 // pred_region
    _
  $region9: #{autoencoder_forward.9} parent=0 // pred_fallthru
    _
  // Predicated region
  $region10: #{autoencoder_forward.9} parent=0 // pred_check
    _
  $region11: #{autoencoder_forward.9} parent=0 // pred_check_branch
    %13 = sbr.rel (0) target = $region13
  $region12: #{autoencoder_forward.9} parent=0 // pred_region
    _
  $region13: #{autoencoder_forward.9} parent=0 // pred_fallthru
    _
  %v14 = vld [vmem:[%s0] sm:$0xff]
  %v15 = vld [vmem:[%s0 + $0x8] sm:$0xff]
  %v16 = vld [vmem:[%s0 + $0x10] sm:$0xff]
  %v17 = vld [vmem:[%s0 + $0x18] sm:$0xff]
  %v18 = vld [vmem:[%s1] sm:$0xff]
  %v19 = vld [vmem:[%s1 + $0x8] sm:$0xff]
  %v20 = vld [vmem:[%s1 + $0x10] sm:$0xff]
  %v21 = vld [vmem:[%s1 + $0x18] sm:$0xff]
  %v22 = vld [vmem:[%s1 + $0x20] sm:$0xff]
  %v23 = vld [vmem:[%s1 + $0x28] sm:$0xff]
  %v24 = vld [vmem:[%s1 + $0x30] sm:$0xff]
  %v25 = vld [vmem:[%s1 + $0x38] sm:$0xff]
  %v26 = vld [vmem:[%s1 + $0x40] sm:$0xff]
  %v27 = vld [vmem:[%s1 + $0x48] sm:$0xff]
  %v28 = vld [vmem:[%s1 + $0x50] sm:$0xff]
  %v29 = vld [vmem:[%s1 + $0x58] sm:$0xff]
  %v30 = vld [vmem:[%s1 + $0x60] sm:$0xff]
  %v31 = vld [vmem:[%s1 + $0x68] sm:$0xff]
  %v32 = vld [vmem:[%s1 + $0x70] sm:$0xff]
  %v33 = vld [vmem:[%s1 + $0x78] sm:$0xff]
  %v34 = vld [vmem:[%s1 + $0x80] sm:$0xff]
  %v35 = vld [vmem:[%s1 + $0x88] sm:$0xff]
  %v36 = vld [vmem:[%s1 + $0x90] sm:$0xff]
  %v37 = vld [vmem:[%s1 + $0x98] sm:$0xff]
  %v38 = vld [vmem:[%s1 + $0xa0] sm:$0xff]
  %v39 = vld [vmem:[%s1 + $0xa8] sm:$0xff]
  %v40 = vld [vmem:[%s1 + $0xb0] sm:$0xff]
  %v41 = vld [vmem:[%s1 + $0xb8] sm:$0xff]
  %v42 = vld [vmem:[%s1 + $0xc0] sm:$0xff]
  %v43 = vld [vmem:[%s1 + $0xc8] sm:$0xff]
  %v44 = vld [vmem:[%s1 + $0xd0] sm:$0xff]
  %v45 = vld [vmem:[%s1 + $0xd8] sm:$0xff]
  %v46 = vld [vmem:[%s1 + $0xe0] sm:$0xff]
  %v47 = vld [vmem:[%s1 + $0xe8] sm:$0xff]
  %v48 = vld [vmem:[%s1 + $0xf0] sm:$0xff]
  %v49 = vld [vmem:[%s1 + $0xf8] sm:$0xff]
  %v50 = vld [vmem:[%s1 + $0x100] sm:$0xff]
  %v51 = vld [vmem:[%s1 + $0x108] sm:$0xff]
  %v52 = vld [vmem:[%s1 + $0x110] sm:$0xff]
  %v53 = vld [vmem:[%s1 + $0x118] sm:$0xff]
  %v54 = vld [vmem:[%s1 + $0x120] sm:$0xff]
  %v55 = vld [vmem:[%s1 + $0x128] sm:$0xff]
  %v56 = vld [vmem:[%s1 + $0x130] sm:$0xff]
  %v57 = vld [vmem:[%s1 + $0x138] sm:$0xff]
  %v58 = vld [vmem:[%s1 + $0x140] sm:$0xff]
  %v59 = vld [vmem:[%s1 + $0x148] sm:$0xff]
  %v60 = vld [vmem:[%s1 + $0x150] sm:$0xff]
  %v61 = vld [vmem:[%s1 + $0x158] sm:$0xff]
  %v62 = vld [vmem:[%s1 + $0x160] sm:$0xff]
  %v63 = vld [vmem:[%s1 + $0x168] sm:$0xff]
  %v64 = vld [vmem:[%s1 + $0x170] sm:$0xff]
  %v65 = vld [vmem:[%s1 + $0x178] sm:$0xff]
  %v66 = vld [vmem:[%s1 + $0x180] sm:$0xff]
  %v67 = vld [vmem:[%s1 + $0x188] sm:$0xff]
  %v68 = vld [vmem:[%s1 + $0x190] sm:$0xff]
  %v69 = vld [vmem:[%s1 + $0x198] sm:$0xff]
  %v70 = vld [vmem:[%s1 + $0x1a0] sm:$0xff]
  %v71 = vld [vmem:[%s1 + $0x1a8] sm:$0xff]
  %v72 = vld [vmem:[%s1 + $0x1b0] sm:$0xff]
  %v73 = vld [vmem:[%s1 + $0x1b8] sm:$0xff]
  %v74 = vld [vmem:[%s1 + $0x1c0] sm:$0xff]
  %v75 = vld [vmem:[%s1 + $0x1c8] sm:$0xff]
  %v76 = vld [vmem:[%s1 + $0x1d0] sm:$0xff]
  %v77 = vld [vmem:[%s1 + $0x1d8] sm:$0xff]
  %v78 = vld [vmem:[%s1 + $0x1e0] sm:$0xff]
  %v79 = vld [vmem:[%s1 + $0x1e8] sm:$0xff]
  %v80 = vld [vmem:[%s1 + $0x1f0] sm:$0xff]
  %v81 = vld [vmem:[%s1 + $0x1f8] sm:$0xff]
  %v82 = vld [vmem:[%s1 + $0x200] sm:$0xff]
  %v83 = vld [vmem:[%s1 + $0x208] sm:$0xff]
  %v84 = vld [vmem:[%s1 + $0x210] sm:$0xff]
  %v85 = vld [vmem:[%s1 + $0x218] sm:$0xff]
  %v86 = vld [vmem:[%s1 + $0x220] sm:$0xff]
  %v87 = vld [vmem:[%s1 + $0x228] sm:$0xff]
  %v88 = vld [vmem:[%s1 + $0x230] sm:$0xff]
  %v89 = vld [vmem:[%s1 + $0x238] sm:$0xff]
  %v90 = vld [vmem:[%s1 + $0x240] sm:$0xff]
  %v91 = vld [vmem:[%s1 + $0x248] sm:$0xff]
  %v92 = vld [vmem:[%s1 + $0x250] sm:$0xff]
  %v93 = vld [vmem:[%s1 + $0x258] sm:$0xff]
  %v94 = vld [vmem:[%s1 + $0x260] sm:$0xff]
  %v95 = vld [vmem:[%s1 + $0x268] sm:$0xff]
  %v96 = vld [vmem:[%s1 + $0x270] sm:$0xff]
  %v97 = vld [vmem:[%s1 + $0x278] sm:$0xff]
  %v98 = vld [vmem:[%s1 + $0x280] sm:$0xff]
  %v99 = vld [vmem:[%s1 + $0x288] sm:$0xff]
  %v100 = vld [vmem:[%s1 + $0x290] sm:$0xff]
  %v101 = vld [vmem:[%s1 + $0x298] sm:$0xff]
  %v102 = vld [vmem:[%s1 + $0x2a0] sm:$0xff]
  %v103 = vld [vmem:[%s1 + $0x2a8] sm:$0xff]
  %v104 = vld [vmem:[%s1 + $0x2b0] sm:$0xff]
  %v105 = vld [vmem:[%s1 + $0x2b8] sm:$0xff]
  %v106 = vld [vmem:[%s1 + $0x2c0] sm:$0xff]
  %v107 = vld [vmem:[%s1 + $0x2c8] sm:$0xff]
  %v108 = vld [vmem:[%s1 + $0x2d0] sm:$0xff]
  %v109 = vld [vmem:[%s1 + $0x2d8] sm:$0xff]
  %v110 = vld [vmem:[%s1 + $0x2e0] sm:$0xff]
  %v111 = vld [vmem:[%s1 + $0x2e8] sm:$0xff]
  %v112 = vld [vmem:[%s1 + $0x2f0] sm:$0xff]
  %v113 = vld [vmem:[%s1 + $0x2f8] sm:$0xff]
  %v114 = vld [vmem:[%s1 + $0x300] sm:$0xff]
  %v115 = vld [vmem:[%s1 + $0x308] sm:$0xff]
  %v116 = vld [vmem:[%s1 + $0x310] sm:$0xff]
  %v117 = vld [vmem:[%s1 + $0x318] sm:$0xff]
  %v118 = vld [vmem:[%s1 + $0x320] sm:$0xff]
  %v119 = vld [vmem:[%s1 + $0x328] sm:$0xff]
  %v120 = vld [vmem:[%s1 + $0x330] sm:$0xff]
  %v121 = vld [vmem:[%s1 + $0x338] sm:$0xff]
  %v122 = vld [vmem:[%s1 + $0x340] sm:$0xff]
  %v123 = vld [vmem:[%s1 + $0x348] sm:$0xff]
  %v124 = vld [vmem:[%s1 + $0x350] sm:$0xff]
  %v125 = vld [vmem:[%s1 + $0x358] sm:$0xff]
  %v126 = vld [vmem:[%s1 + $0x360] sm:$0xff]
  %v127 = vld [vmem:[%s1 + $0x368] sm:$0xff]
  %v128 = vld [vmem:[%s1 + $0x370] sm:$0xff]
  %v129 = vld [vmem:[%s1 + $0x378] sm:$0xff]
  %v130 = vld [vmem:[%s1 + $0x380] sm:$0xff]
  %v131 = vld [vmem:[%s1 + $0x388] sm:$0xff]
  %v132 = vld [vmem:[%s1 + $0x390] sm:$0xff]
  %v133 = vld [vmem:[%s1 + $0x398] sm:$0xff]
  %v134 = vld [vmem:[%s1 + $0x3a0] sm:$0xff]
  %v135 = vld [vmem:[%s1 + $0x3a8] sm:$0xff]
  %v136 = vld [vmem:[%s1 + $0x3b0] sm:$0xff]
  %v137 = vld [vmem:[%s1 + $0x3b8] sm:$0xff]
  %v138 = vld [vmem:[%s1 + $0x3c0] sm:$0xff]
  %v139 = vld [vmem:[%s1 + $0x3c8] sm:$0xff]
  %v140 = vld [vmem:[%s1 + $0x3d0] sm:$0xff]
  %v141 = vld [vmem:[%s1 + $0x3d8] sm:$0xff]
  %v142 = vld [vmem:[%s1 + $0x3e0] sm:$0xff]
  %v143 = vld [vmem:[%s1 + $0x3e8] sm:$0xff]
  %v144 = vld [vmem:[%s1 + $0x3f0] sm:$0xff]
  %v145 = vld [vmem:[%s1 + $0x3f8] sm:$0xff]
  %v146 = vld [vmem:[%s1 + $0x400] sm:$0xff]
  %v147 = vld [vmem:[%s1 + $0x408] sm:$0xff]
  %v148 = vld [vmem:[%s1 + $0x410] sm:$0xff]
  %v149 = vld [vmem:[%s1 + $0x418] sm:$0xff]
  %v150 = vld [vmem:[%s1 + $0x420] sm:$0xff]
  %v151 = vld [vmem:[%s1 + $0x428] sm:$0xff]
  %v152 = vld [vmem:[%s1 + $0x430] sm:$0xff]
  %v153 = vld [vmem:[%s1 + $0x438] sm:$0xff]
  %v154 = vld [vmem:[%s1 + $0x440] sm:$0xff]
  %v155 = vld [vmem:[%s1 + $0x448] sm:$0xff]
  %v156 = vld [vmem:[%s1 + $0x450] sm:$0xff]
  %v157 = vld [vmem:[%s1 + $0x458] sm:$0xff]
  %v158 = vld [vmem:[%s1 + $0x460] sm:$0xff]
  %v159 = vld [vmem:[%s1 + $0x468] sm:$0xff]
  %v160 = vld [vmem:[%s1 + $0x470] sm:$0xff]
  %v161 = vld [vmem:[%s1 + $0x478] sm:$0xff]
  %v162 = vld [vmem:[%s1 + $0x480] sm:$0xff]
  %v163 = vld [vmem:[%s1 + $0x488] sm:$0xff]
  %v164 = vld [vmem:[%s1 + $0x490] sm:$0xff]
  %v165 = vld [vmem:[%s1 + $0x498] sm:$0xff]
  %v166 = vld [vmem:[%s1 + $0x4a0] sm:$0xff]
  %v167 = vld [vmem:[%s1 + $0x4a8] sm:$0xff]
  %v168 = vld [vmem:[%s1 + $0x4b0] sm:$0xff]
  %v169 = vld [vmem:[%s1 + $0x4b8] sm:$0xff]
  %v170 = vld [vmem:[%s1 + $0x4c0] sm:$0xff]
  %v171 = vld [vmem:[%s1 + $0x4c8] sm:$0xff]
  %v172 = vld [vmem:[%s1 + $0x4d0] sm:$0xff]
  %v173 = vld [vmem:[%s1 + $0x4d8] sm:$0xff]
  %v174 = vld [vmem:[%s1 + $0x4e0] sm:$0xff]
  %v175 = vld [vmem:[%s1 + $0x4e8] sm:$0xff]
  %v176 = vld [vmem:[%s1 + $0x4f0] sm:$0xff]
  %v177 = vld [vmem:[%s1 + $0x4f8] sm:$0xff]
  %v178 = vld [vmem:[%s1 + $0x500] sm:$0xff]
  %v179 = vld [vmem:[%s1 + $0x508] sm:$0xff]
  %v180 = vld [vmem:[%s1 + $0x510] sm:$0xff]
  %v181 = vld [vmem:[%s1 + $0x518] sm:$0xff]
  %v182 = vld [vmem:[%s1 + $0x520] sm:$0xff]
  %v183 = vld [vmem:[%s1 + $0x528] sm:$0xff]
  %v184 = vld [vmem:[%s1 + $0x530] sm:$0xff]
  %v185 = vld [vmem:[%s1 + $0x538] sm:$0xff]
  %v186 = vld [vmem:[%s1 + $0x540] sm:$0xff]
  %v187 = vld [vmem:[%s1 + $0x548] sm:$0xff]
  %v188 = vld [vmem:[%s1 + $0x550] sm:$0xff]
  %v189 = vld [vmem:[%s1 + $0x558] sm:$0xff]
  %v190 = vld [vmem:[%s1 + $0x560] sm:$0xff]
  %v191 = vld [vmem:[%s1 + $0x568] sm:$0xff]
  %v192 = vld [vmem:[%s1 + $0x570] sm:$0xff]
  %v193 = vld [vmem:[%s1 + $0x578] sm:$0xff]
  %v194 = vld [vmem:[%s1 + $0x580] sm:$0xff]
  %v195 = vld [vmem:[%s1 + $0x588] sm:$0xff]
  %v196 = vld [vmem:[%s1 + $0x590] sm:$0xff]
  %v197 = vld [vmem:[%s1 + $0x598] sm:$0xff]
  %v198 = vld [vmem:[%s1 + $0x5a0] sm:$0xff]
  %v199 = vld [vmem:[%s1 + $0x5a8] sm:$0xff]
  %v200 = vld [vmem:[%s1 + $0x5b0] sm:$0xff]
  %v201 = vld [vmem:[%s1 + $0x5b8] sm:$0xff]
  %v202 = vld [vmem:[%s1 + $0x5c0] sm:$0xff]
  %v203 = vld [vmem:[%s1 + $0x5c8] sm:$0xff]
  %v204 = vld [vmem:[%s1 + $0x5d0] sm:$0xff]
  %v205 = vld [vmem:[%s1 + $0x5d8] sm:$0xff]
  %v206 = vld [vmem:[%s1 + $0x5e0] sm:$0xff]
  %v207 = vld [vmem:[%s1 + $0x5e8] sm:$0xff]
  %v208 = vld [vmem:[%s1 + $0x5f0] sm:$0xff]
  %v209 = vld [vmem:[%s1 + $0x5f8] sm:$0xff]
  %v210 = vld [vmem:[%s1 + $0x600] sm:$0xff]
  %v211 = vld [vmem:[%s1 + $0x608] sm:$0xff]
  %v212 = vld [vmem:[%s1 + $0x610] sm:$0xff]
  %v213 = vld [vmem:[%s1 + $0x618] sm:$0xff]
  %v214 = vld [vmem:[%s1 + $0x620] sm:$0xff]
  %v215 = vld [vmem:[%s1 + $0x628] sm:$0xff]
  %v216 = vld [vmem:[%s1 + $0x630] sm:$0xff]
  %v217 = vld [vmem:[%s1 + $0x638] sm:$0xff]
  %v218 = vld [vmem:[%s1 + $0x640] sm:$0xff]
  %v219 = vld [vmem:[%s1 + $0x648] sm:$0xff]
  %v220 = vld [vmem:[%s1 + $0x650] sm:$0xff]
  %v221 = vld [vmem:[%s1 + $0x658] sm:$0xff]
  %v222 = vld [vmem:[%s1 + $0x660] sm:$0xff]
  %v223 = vld [vmem:[%s1 + $0x668] sm:$0xff]
  %v224 = vld [vmem:[%s1 + $0x670] sm:$0xff]
  %v225 = vld [vmem:[%s1 + $0x678] sm:$0xff]
  %v226 = vld [vmem:[%s1 + $0x680] sm:$0xff]
  %v227 = vld [vmem:[%s1 + $0x688] sm:$0xff]
  %v228 = vld [vmem:[%s1 + $0x690] sm:$0xff]
  %v229 = vld [vmem:[%s1 + $0x698] sm:$0xff]
  %v230 = vld [vmem:[%s1 + $0x6a0] sm:$0xff]
  %v231 = vld [vmem:[%s1 + $0x6a8] sm:$0xff]
  %v232 = vld [vmem:[%s1 + $0x6b0] sm:$0xff]
  %v233 = vld [vmem:[%s1 + $0x6b8] sm:$0xff]
  %v234 = vld [vmem:[%s1 + $0x6c0] sm:$0xff]
  %v235 = vld [vmem:[%s1 + $0x6c8] sm:$0xff]
  %v236 = vld [vmem:[%s1 + $0x6d0] sm:$0xff]
  %v237 = vld [vmem:[%s1 + $0x6d8] sm:$0xff]
  %v238 = vld [vmem:[%s1 + $0x6e0] sm:$0xff]
  %v239 = vld [vmem:[%s1 + $0x6e8] sm:$0xff]
  %v240 = vld [vmem:[%s1 + $0x6f0] sm:$0xff]
  %v241 = vld [vmem:[%s1 + $0x6f8] sm:$0xff]
  %v242 = vld [vmem:[%s1 + $0x700] sm:$0xff]
  %v243 = vld [vmem:[%s1 + $0x708] sm:$0xff]
  %v244 = vld [vmem:[%s1 + $0x710] sm:$0xff]
  %v245 = vld [vmem:[%s1 + $0x718] sm:$0xff]
  %v246 = vld [vmem:[%s1 + $0x720] sm:$0xff]
  %v247 = vld [vmem:[%s1 + $0x728] sm:$0xff]
  %v248 = vld [vmem:[%s1 + $0x730] sm:$0xff]
  %v249 = vld [vmem:[%s1 + $0x738] sm:$0xff]
  %v250 = vld [vmem:[%s1 + $0x740] sm:$0xff]
  %v251 = vld [vmem:[%s1 + $0x748] sm:$0xff]
  %v252 = vld [vmem:[%s1 + $0x750] sm:$0xff]
  %v253 = vld [vmem:[%s1 + $0x758] sm:$0xff]
  %v254 = vld [vmem:[%s1 + $0x760] sm:$0xff]
  %v255 = vld [vmem:[%s1 + $0x768] sm:$0xff]
  %v256 = vld [vmem:[%s1 + $0x770] sm:$0xff]
  %v257 = vld [vmem:[%s1 + $0x778] sm:$0xff]
  %v258 = vld [vmem:[%s1 + $0x780] sm:$0xff]
  %v259 = vld [vmem:[%s1 + $0x788] sm:$0xff]
  %v260 = vld [vmem:[%s1 + $0x790] sm:$0xff]
  %v261 = vld [vmem:[%s1 + $0x798] sm:$0xff]
  %v262 = vld [vmem:[%s1 + $0x7a0] sm:$0xff]
  %v263 = vld [vmem:[%s1 + $0x7a8] sm:$0xff]
  %v264 = vld [vmem:[%s1 + $0x7b0] sm:$0xff]
  %v265 = vld [vmem:[%s1 + $0x7b8] sm:$0xff]
  %v266 = vld [vmem:[%s1 + $0x7c0] sm:$0xff]
  %v267 = vld [vmem:[%s1 + $0x7c8] sm:$0xff]
  %v268 = vld [vmem:[%s1 + $0x7d0] sm:$0xff]
  %v269 = vld [vmem:[%s1 + $0x7d8] sm:$0xff]
  %v270 = vld [vmem:[%s1 + $0x7e0] sm:$0xff]
  %v271 = vld [vmem:[%s1 + $0x7e8] sm:$0xff]
  %v272 = vld [vmem:[%s1 + $0x7f0] sm:$0xff]
  %v273 = vld [vmem:[%s1 + $0x7f8] sm:$0xff]
  %v274 = vld [vmem:[%s2] sm:$0xf]
  %v276 = vlaneseq
  %v277 = vshrl.u32 %v276, 7
  %v278 = vsub.s32 0, %v277
  %v279 = vrot.slane %v274, %v278
  %v280 = vlaneseq
  %v281 = vshrl.u32 %v280, 7
  %v282 = vsub.s32 1, %v281
  %v283 = vrot.slane %v274, %v282
  %v284 = vlaneseq
  %v285 = vshrl.u32 %v284, 7
  %v286 = vsub.s32 2, %v285
  %v287 = vrot.slane %v274, %v286
  %v288 = vlaneseq
  %v289 = vshrl.u32 %v288, 7
  %v290 = vsub.s32 3, %v289
  %v291 = vrot.slane %v274, %v290
  %v300 = vunpack.c.l.b16 %v14
  %v301 = vunpack.c.h.b16 %v14
  %v302 = vunpack.c.l.b16 %v15
  %v303 = vunpack.c.h.b16 %v15
  %v304 = vunpack.c.l.b16 %v16
  %v305 = vunpack.c.h.b16 %v16
  %v306 = vunpack.c.l.b16 %v17
  %v307 = vunpack.c.h.b16 %v17
  %v308 = vpack.c.b16 %v300, %v300
  %v309 = vpack.c.b16 %v301, %v301
  %v310 = vpack.c.b16 %v302, %v302
  %v311 = vpack.c.b16 %v303, %v303
  %v312 = vpack.c.b16 %v304, %v304
  %v313 = vpack.c.b16 %v305, %v305
  %v314 = vpack.c.b16 %v306, %v306
  %v315 = vpack.c.b16 %v307, %v307
  %v580 = vunpack.c.l.b16 %v18
  %v581 = vunpack.c.h.b16 %v18
  %v582 = vunpack.c.l.b16 %v19
  %v583 = vunpack.c.h.b16 %v19
  %v584 = vunpack.c.l.b16 %v20
  %v585 = vunpack.c.h.b16 %v20
  %v586 = vunpack.c.l.b16 %v21
  %v587 = vunpack.c.h.b16 %v21
  %v588 = vunpack.c.l.b16 %v22
  %v589 = vunpack.c.h.b16 %v22
  %v590 = vunpack.c.l.b16 %v23
  %v591 = vunpack.c.h.b16 %v23
  %v592 = vunpack.c.l.b16 %v24
  %v593 = vunpack.c.h.b16 %v24
  %v594 = vunpack.c.l.b16 %v25
  %v595 = vunpack.c.h.b16 %v25
  %v596 = vunpack.c.l.b16 %v26
  %v597 = vunpack.c.h.b16 %v26
  %v598 = vunpack.c.l.b16 %v27
  %v599 = vunpack.c.h.b16 %v27
  %v600 = vunpack.c.l.b16 %v28
  %v601 = vunpack.c.h.b16 %v28
  %v602 = vunpack.c.l.b16 %v29
  %v603 = vunpack.c.h.b16 %v29
  %v604 = vunpack.c.l.b16 %v30
  %v605 = vunpack.c.h.b16 %v30
  %v606 = vunpack.c.l.b16 %v31
  %v607 = vunpack.c.h.b16 %v31
  %v608 = vunpack.c.l.b16 %v32
  %v609 = vunpack.c.h.b16 %v32
  %v610 = vunpack.c.l.b16 %v33
  %v611 = vunpack.c.h.b16 %v33
  %v612 = vunpack.c.l.b16 %v34
  %v613 = vunpack.c.h.b16 %v34
  %v614 = vunpack.c.l.b16 %v35
  %v615 = vunpack.c.h.b16 %v35
  %v616 = vunpack.c.l.b16 %v36
  %v617 = vunpack.c.h.b16 %v36
  %v618 = vunpack.c.l.b16 %v37
  %v619 = vunpack.c.h.b16 %v37
  %v620 = vunpack.c.l.b16 %v38
  %v621 = vunpack.c.h.b16 %v38
  %v622 = vunpack.c.l.b16 %v39
  %v623 = vunpack.c.h.b16 %v39
  %v624 = vunpack.c.l.b16 %v40
  %v625 = vunpack.c.h.b16 %v40
  %v626 = vunpack.c.l.b16 %v41
  %v627 = vunpack.c.h.b16 %v41
  %v628 = vunpack.c.l.b16 %v42
  %v629 = vunpack.c.h.b16 %v42
  %v630 = vunpack.c.l.b16 %v43
  %v631 = vunpack.c.h.b16 %v43
  %v632 = vunpack.c.l.b16 %v44
  %v633 = vunpack.c.h.b16 %v44
  %v634 = vunpack.c.l.b16 %v45
  %v635 = vunpack.c.h.b16 %v45
  %v636 = vunpack.c.l.b16 %v46
  %v637 = vunpack.c.h.b16 %v46
  %v638 = vunpack.c.l.b16 %v47
  %v639 = vunpack.c.h.b16 %v47
  %v640 = vunpack.c.l.b16 %v48
  %v641 = vunpack.c.h.b16 %v48
  %v642 = vunpack.c.l.b16 %v49
  %v643 = vunpack.c.h.b16 %v49
  %v644 = vunpack.c.l.b16 %v50
  %v645 = vunpack.c.h.b16 %v50
  %v646 = vunpack.c.l.b16 %v51
  %v647 = vunpack.c.h.b16 %v51
  %v648 = vunpack.c.l.b16 %v52
  %v649 = vunpack.c.h.b16 %v52
  %v650 = vunpack.c.l.b16 %v53
  %v651 = vunpack.c.h.b16 %v53
  %v652 = vunpack.c.l.b16 %v54
  %v653 = vunpack.c.h.b16 %v54
  %v654 = vunpack.c.l.b16 %v55
  %v655 = vunpack.c.h.b16 %v55
  %v656 = vunpack.c.l.b16 %v56
  %v657 = vunpack.c.h.b16 %v56
  %v658 = vunpack.c.l.b16 %v57
  %v659 = vunpack.c.h.b16 %v57
  %v660 = vunpack.c.l.b16 %v58
  %v661 = vunpack.c.h.b16 %v58
  %v662 = vunpack.c.l.b16 %v59
  %v663 = vunpack.c.h.b16 %v59
  %v664 = vunpack.c.l.b16 %v60
  %v665 = vunpack.c.h.b16 %v60
  %v666 = vunpack.c.l.b16 %v61
  %v667 = vunpack.c.h.b16 %v61
  %v668 = vunpack.c.l.b16 %v62
  %v669 = vunpack.c.h.b16 %v62
  %v670 = vunpack.c.l.b16 %v63
  %v671 = vunpack.c.h.b16 %v63
  %v672 = vunpack.c.l.b16 %v64
  %v673 = vunpack.c.h.b16 %v64
  %v674 = vunpack.c.l.b16 %v65
  %v675 = vunpack.c.h.b16 %v65
  %v676 = vunpack.c.l.b16 %v66
  %v677 = vunpack.c.h.b16 %v66
  %v678 = vunpack.c.l.b16 %v67
  %v679 = vunpack.c.h.b16 %v67
  %v680 = vunpack.c.l.b16 %v68
  %v681 = vunpack.c.h.b16 %v68
  %v682 = vunpack.c.l.b16 %v69
  %v683 = vunpack.c.h.b16 %v69
  %v684 = vunpack.c.l.b16 %v70
  %v685 = vunpack.c.h.b16 %v70
  %v686 = vunpack.c.l.b16 %v71
  %v687 = vunpack.c.h.b16 %v71
  %v688 = vunpack.c.l.b16 %v72
  %v689 = vunpack.c.h.b16 %v72
  %v690 = vunpack.c.l.b16 %v73
  %v691 = vunpack.c.h.b16 %v73
  %v692 = vunpack.c.l.b16 %v74
  %v693 = vunpack.c.h.b16 %v74
  %v694 = vunpack.c.l.b16 %v75
  %v695 = vunpack.c.h.b16 %v75
  %v696 = vunpack.c.l.b16 %v76
  %v697 = vunpack.c.h.b16 %v76
  %v698 = vunpack.c.l.b16 %v77
  %v699 = vunpack.c.h.b16 %v77
  %v700 = vunpack.c.l.b16 %v78
  %v701 = vunpack.c.h.b16 %v78
  %v702 = vunpack.c.l.b16 %v79
  %v703 = vunpack.c.h.b16 %v79
  %v704 = vunpack.c.l.b16 %v80
  %v705 = vunpack.c.h.b16 %v80
  %v706 = vunpack.c.l.b16 %v81
  %v707 = vunpack.c.h.b16 %v81
  %v708 = vunpack.c.l.b16 %v82
  %v709 = vunpack.c.h.b16 %v82
  %v710 = vunpack.c.l.b16 %v83
  %v711 = vunpack.c.h.b16 %v83
  %v712 = vunpack.c.l.b16 %v84
  %v713 = vunpack.c.h.b16 %v84
  %v714 = vunpack.c.l.b16 %v85
  %v715 = vunpack.c.h.b16 %v85
  %v716 = vunpack.c.l.b16 %v86
  %v717 = vunpack.c.h.b16 %v86
  %v718 = vunpack.c.l.b16 %v87
  %v719 = vunpack.c.h.b16 %v87
  %v720 = vunpack.c.l.b16 %v88
  %v721 = vunpack.c.h.b16 %v88
  %v722 = vunpack.c.l.b16 %v89
  %v723 = vunpack.c.h.b16 %v89
  %v724 = vunpack.c.l.b16 %v90
  %v725 = vunpack.c.h.b16 %v90
  %v726 = vunpack.c.l.b16 %v91
  %v727 = vunpack.c.h.b16 %v91
  %v728 = vunpack.c.l.b16 %v92
  %v729 = vunpack.c.h.b16 %v92
  %v730 = vunpack.c.l.b16 %v93
  %v731 = vunpack.c.h.b16 %v93
  %v732 = vunpack.c.l.b16 %v94
  %v733 = vunpack.c.h.b16 %v94
  %v734 = vunpack.c.l.b16 %v95
  %v735 = vunpack.c.h.b16 %v95
  %v736 = vunpack.c.l.b16 %v96
  %v737 = vunpack.c.h.b16 %v96
  %v738 = vunpack.c.l.b16 %v97
  %v739 = vunpack.c.h.b16 %v97
  %v740 = vunpack.c.l.b16 %v98
  %v741 = vunpack.c.h.b16 %v98
  %v742 = vunpack.c.l.b16 %v99
  %v743 = vunpack.c.h.b16 %v99
  %v744 = vunpack.c.l.b16 %v100
  %v745 = vunpack.c.h.b16 %v100
  %v746 = vunpack.c.l.b16 %v101
  %v747 = vunpack.c.h.b16 %v101
  %v748 = vunpack.c.l.b16 %v102
  %v749 = vunpack.c.h.b16 %v102
  %v750 = vunpack.c.l.b16 %v103
  %v751 = vunpack.c.h.b16 %v103
  %v752 = vunpack.c.l.b16 %v104
  %v753 = vunpack.c.h.b16 %v104
  %v754 = vunpack.c.l.b16 %v105
  %v755 = vunpack.c.h.b16 %v105
  %v756 = vunpack.c.l.b16 %v106
  %v757 = vunpack.c.h.b16 %v106
  %v758 = vunpack.c.l.b16 %v107
  %v759 = vunpack.c.h.b16 %v107
  %v760 = vunpack.c.l.b16 %v108
  %v761 = vunpack.c.h.b16 %v108
  %v762 = vunpack.c.l.b16 %v109
  %v763 = vunpack.c.h.b16 %v109
  %v764 = vunpack.c.l.b16 %v110
  %v765 = vunpack.c.h.b16 %v110
  %v766 = vunpack.c.l.b16 %v111
  %v767 = vunpack.c.h.b16 %v111
  %v768 = vunpack.c.l.b16 %v112
  %v769 = vunpack.c.h.b16 %v112
  %v770 = vunpack.c.l.b16 %v113
  %v771 = vunpack.c.h.b16 %v113
  %v772 = vunpack.c.l.b16 %v114
  %v773 = vunpack.c.h.b16 %v114
  %v774 = vunpack.c.l.b16 %v115
  %v775 = vunpack.c.h.b16 %v115
  %v776 = vunpack.c.l.b16 %v116
  %v777 = vunpack.c.h.b16 %v116
  %v778 = vunpack.c.l.b16 %v117
  %v779 = vunpack.c.h.b16 %v117
  %v780 = vunpack.c.l.b16 %v118
  %v781 = vunpack.c.h.b16 %v118
  %v782 = vunpack.c.l.b16 %v119
  %v783 = vunpack.c.h.b16 %v119
  %v784 = vunpack.c.l.b16 %v120
  %v785 = vunpack.c.h.b16 %v120
  %v786 = vunpack.c.l.b16 %v121
  %v787 = vunpack.c.h.b16 %v121
  %v788 = vunpack.c.l.b16 %v122
  %v789 = vunpack.c.h.b16 %v122
  %v790 = vunpack.c.l.b16 %v123
  %v791 = vunpack.c.h.b16 %v123
  %v792 = vunpack.c.l.b16 %v124
  %v793 = vunpack.c.h.b16 %v124
  %v794 = vunpack.c.l.b16 %v125
  %v795 = vunpack.c.h.b16 %v125
  %v796 = vunpack.c.l.b16 %v126
  %v797 = vunpack.c.h.b16 %v126
  %v798 = vunpack.c.l.b16 %v127
  %v799 = vunpack.c.h.b16 %v127
  %v800 = vunpack.c.l.b16 %v128
  %v801 = vunpack.c.h.b16 %v128
  %v802 = vunpack.c.l.b16 %v129
  %v803 = vunpack.c.h.b16 %v129
  %v804 = vunpack.c.l.b16 %v130
  %v805 = vunpack.c.h.b16 %v130
  %v806 = vunpack.c.l.b16 %v131
  %v807 = vunpack.c.h.b16 %v131
  %v808 = vunpack.c.l.b16 %v132
  %v809 = vunpack.c.h.b16 %v132
  %v810 = vunpack.c.l.b16 %v133
  %v811 = vunpack.c.h.b16 %v133
  %v812 = vunpack.c.l.b16 %v134
  %v813 = vunpack.c.h.b16 %v134
  %v814 = vunpack.c.l.b16 %v135
  %v815 = vunpack.c.h.b16 %v135
  %v816 = vunpack.c.l.b16 %v136
  %v817 = vunpack.c.h.b16 %v136
  %v818 = vunpack.c.l.b16 %v137
  %v819 = vunpack.c.h.b16 %v137
  %v820 = vunpack.c.l.b16 %v138
  %v821 = vunpack.c.h.b16 %v138
  %v822 = vunpack.c.l.b16 %v139
  %v823 = vunpack.c.h.b16 %v139
  %v824 = vunpack.c.l.b16 %v140
  %v825 = vunpack.c.h.b16 %v140
  %v826 = vunpack.c.l.b16 %v141
  %v827 = vunpack.c.h.b16 %v141
  %v828 = vunpack.c.l.b16 %v142
  %v829 = vunpack.c.h.b16 %v142
  %v830 = vunpack.c.l.b16 %v143
  %v831 = vunpack.c.h.b16 %v143
  %v832 = vunpack.c.l.b16 %v144
  %v833 = vunpack.c.h.b16 %v144
  %v834 = vunpack.c.l.b16 %v145
  %v835 = vunpack.c.h.b16 %v145
  %v836 = vunpack.c.l.b16 %v146
  %v837 = vunpack.c.h.b16 %v146
  %v838 = vunpack.c.l.b16 %v147
  %v839 = vunpack.c.h.b16 %v147
  %v840 = vunpack.c.l.b16 %v148
  %v841 = vunpack.c.h.b16 %v148
  %v842 = vunpack.c.l.b16 %v149
  %v843 = vunpack.c.h.b16 %v149
  %v844 = vunpack.c.l.b16 %v150
  %v845 = vunpack.c.h.b16 %v150
  %v846 = vunpack.c.l.b16 %v151
  %v847 = vunpack.c.h.b16 %v151
  %v848 = vunpack.c.l.b16 %v152
  %v849 = vunpack.c.h.b16 %v152
  %v850 = vunpack.c.l.b16 %v153
  %v851 = vunpack.c.h.b16 %v153
  %v852 = vunpack.c.l.b16 %v154
  %v853 = vunpack.c.h.b16 %v154
  %v854 = vunpack.c.l.b16 %v155
  %v855 = vunpack.c.h.b16 %v155
  %v856 = vunpack.c.l.b16 %v156
  %v857 = vunpack.c.h.b16 %v156
  %v858 = vunpack.c.l.b16 %v157
  %v859 = vunpack.c.h.b16 %v157
  %v860 = vunpack.c.l.b16 %v158
  %v861 = vunpack.c.h.b16 %v158
  %v862 = vunpack.c.l.b16 %v159
  %v863 = vunpack.c.h.b16 %v159
  %v864 = vunpack.c.l.b16 %v160
  %v865 = vunpack.c.h.b16 %v160
  %v866 = vunpack.c.l.b16 %v161
  %v867 = vunpack.c.h.b16 %v161
  %v868 = vunpack.c.l.b16 %v162
  %v869 = vunpack.c.h.b16 %v162
  %v870 = vunpack.c.l.b16 %v163
  %v871 = vunpack.c.h.b16 %v163
  %v872 = vunpack.c.l.b16 %v164
  %v873 = vunpack.c.h.b16 %v164
  %v874 = vunpack.c.l.b16 %v165
  %v875 = vunpack.c.h.b16 %v165
  %v876 = vunpack.c.l.b16 %v166
  %v877 = vunpack.c.h.b16 %v166
  %v878 = vunpack.c.l.b16 %v167
  %v879 = vunpack.c.h.b16 %v167
  %v880 = vunpack.c.l.b16 %v168
  %v881 = vunpack.c.h.b16 %v168
  %v882 = vunpack.c.l.b16 %v169
  %v883 = vunpack.c.h.b16 %v169
  %v884 = vunpack.c.l.b16 %v170
  %v885 = vunpack.c.h.b16 %v170
  %v886 = vunpack.c.l.b16 %v171
  %v887 = vunpack.c.h.b16 %v171
  %v888 = vunpack.c.l.b16 %v172
  %v889 = vunpack.c.h.b16 %v172
  %v890 = vunpack.c.l.b16 %v173
  %v891 = vunpack.c.h.b16 %v173
  %v892 = vunpack.c.l.b16 %v174
  %v893 = vunpack.c.h.b16 %v174
  %v894 = vunpack.c.l.b16 %v175
  %v895 = vunpack.c.h.b16 %v175
  %v896 = vunpack.c.l.b16 %v176
  %v897 = vunpack.c.h.b16 %v176
  %v898 = vunpack.c.l.b16 %v177
  %v899 = vunpack.c.h.b16 %v177
  %v900 = vunpack.c.l.b16 %v178
  %v901 = vunpack.c.h.b16 %v178
  %v902 = vunpack.c.l.b16 %v179
  %v903 = vunpack.c.h.b16 %v179
  %v904 = vunpack.c.l.b16 %v180
  %v905 = vunpack.c.h.b16 %v180
  %v906 = vunpack.c.l.b16 %v181
  %v907 = vunpack.c.h.b16 %v181
  %v908 = vunpack.c.l.b16 %v182
  %v909 = vunpack.c.h.b16 %v182
  %v910 = vunpack.c.l.b16 %v183
  %v911 = vunpack.c.h.b16 %v183
  %v912 = vunpack.c.l.b16 %v184
  %v913 = vunpack.c.h.b16 %v184
  %v914 = vunpack.c.l.b16 %v185
  %v915 = vunpack.c.h.b16 %v185
  %v916 = vunpack.c.l.b16 %v186
  %v917 = vunpack.c.h.b16 %v186
  %v918 = vunpack.c.l.b16 %v187
  %v919 = vunpack.c.h.b16 %v187
  %v920 = vunpack.c.l.b16 %v188
  %v921 = vunpack.c.h.b16 %v188
  %v922 = vunpack.c.l.b16 %v189
  %v923 = vunpack.c.h.b16 %v189
  %v924 = vunpack.c.l.b16 %v190
  %v925 = vunpack.c.h.b16 %v190
  %v926 = vunpack.c.l.b16 %v191
  %v927 = vunpack.c.h.b16 %v191
  %v928 = vunpack.c.l.b16 %v192
  %v929 = vunpack.c.h.b16 %v192
  %v930 = vunpack.c.l.b16 %v193
  %v931 = vunpack.c.h.b16 %v193
  %v932 = vunpack.c.l.b16 %v194
  %v933 = vunpack.c.h.b16 %v194
  %v934 = vunpack.c.l.b16 %v195
  %v935 = vunpack.c.h.b16 %v195
  %v936 = vunpack.c.l.b16 %v196
  %v937 = vunpack.c.h.b16 %v196
  %v938 = vunpack.c.l.b16 %v197
  %v939 = vunpack.c.h.b16 %v197
  %v940 = vunpack.c.l.b16 %v198
  %v941 = vunpack.c.h.b16 %v198
  %v942 = vunpack.c.l.b16 %v199
  %v943 = vunpack.c.h.b16 %v199
  %v944 = vunpack.c.l.b16 %v200
  %v945 = vunpack.c.h.b16 %v200
  %v946 = vunpack.c.l.b16 %v201
  %v947 = vunpack.c.h.b16 %v201
  %v948 = vunpack.c.l.b16 %v202
  %v949 = vunpack.c.h.b16 %v202
  %v950 = vunpack.c.l.b16 %v203
  %v951 = vunpack.c.h.b16 %v203
  %v952 = vunpack.c.l.b16 %v204
  %v953 = vunpack.c.h.b16 %v204
  %v954 = vunpack.c.l.b16 %v205
  %v955 = vunpack.c.h.b16 %v205
  %v956 = vunpack.c.l.b16 %v206
  %v957 = vunpack.c.h.b16 %v206
  %v958 = vunpack.c.l.b16 %v207
  %v959 = vunpack.c.h.b16 %v207
  %v960 = vunpack.c.l.b16 %v208
  %v961 = vunpack.c.h.b16 %v208
  %v962 = vunpack.c.l.b16 %v209
  %v963 = vunpack.c.h.b16 %v209
  %v964 = vunpack.c.l.b16 %v210
  %v965 = vunpack.c.h.b16 %v210
  %v966 = vunpack.c.l.b16 %v211
  %v967 = vunpack.c.h.b16 %v211
  %v968 = vunpack.c.l.b16 %v212
  %v969 = vunpack.c.h.b16 %v212
  %v970 = vunpack.c.l.b16 %v213
  %v971 = vunpack.c.h.b16 %v213
  %v972 = vunpack.c.l.b16 %v214
  %v973 = vunpack.c.h.b16 %v214
  %v974 = vunpack.c.l.b16 %v215
  %v975 = vunpack.c.h.b16 %v215
  %v976 = vunpack.c.l.b16 %v216
  %v977 = vunpack.c.h.b16 %v216
  %v978 = vunpack.c.l.b16 %v217
  %v979 = vunpack.c.h.b16 %v217
  %v980 = vunpack.c.l.b16 %v218
  %v981 = vunpack.c.h.b16 %v218
  %v982 = vunpack.c.l.b16 %v219
  %v983 = vunpack.c.h.b16 %v219
  %v984 = vunpack.c.l.b16 %v220
  %v985 = vunpack.c.h.b16 %v220
  %v986 = vunpack.c.l.b16 %v221
  %v987 = vunpack.c.h.b16 %v221
  %v988 = vunpack.c.l.b16 %v222
  %v989 = vunpack.c.h.b16 %v222
  %v990 = vunpack.c.l.b16 %v223
  %v991 = vunpack.c.h.b16 %v223
  %v992 = vunpack.c.l.b16 %v224
  %v993 = vunpack.c.h.b16 %v224
  %v994 = vunpack.c.l.b16 %v225
  %v995 = vunpack.c.h.b16 %v225
  %v996 = vunpack.c.l.b16 %v226
  %v997 = vunpack.c.h.b16 %v226
  %v998 = vunpack.c.l.b16 %v227
  %v999 = vunpack.c.h.b16 %v227
  %v1000 = vunpack.c.l.b16 %v228
  %v1001 = vunpack.c.h.b16 %v228
  %v1002 = vunpack.c.l.b16 %v229
  %v1003 = vunpack.c.h.b16 %v229
  %v1004 = vunpack.c.l.b16 %v230
  %v1005 = vunpack.c.h.b16 %v230
  %v1006 = vunpack.c.l.b16 %v231
  %v1007 = vunpack.c.h.b16 %v231
  %v1008 = vunpack.c.l.b16 %v232
  %v1009 = vunpack.c.h.b16 %v232
  %v1010 = vunpack.c.l.b16 %v233
  %v1011 = vunpack.c.h.b16 %v233
  %v1012 = vunpack.c.l.b16 %v234
  %v1013 = vunpack.c.h.b16 %v234
  %v1014 = vunpack.c.l.b16 %v235
  %v1015 = vunpack.c.h.b16 %v235
  %v1016 = vunpack.c.l.b16 %v236
  %v1017 = vunpack.c.h.b16 %v236
  %v1018 = vunpack.c.l.b16 %v237
  %v1019 = vunpack.c.h.b16 %v237
  %v1020 = vunpack.c.l.b16 %v238
  %v1021 = vunpack.c.h.b16 %v238
  %v1022 = vunpack.c.l.b16 %v239
  %v1023 = vunpack.c.h.b16 %v239
  %v1024 = vunpack.c.l.b16 %v240
  %v1025 = vunpack.c.h.b16 %v240
  %v1026 = vunpack.c.l.b16 %v241
  %v1027 = vunpack.c.h.b16 %v241
  %v1028 = vunpack.c.l.b16 %v242
  %v1029 = vunpack.c.h.b16 %v242
  %v1030 = vunpack.c.l.b16 %v243
  %v1031 = vunpack.c.h.b16 %v243
  %v1032 = vunpack.c.l.b16 %v244
  %v1033 = vunpack.c.h.b16 %v244
  %v1034 = vunpack.c.l.b16 %v245
  %v1035 = vunpack.c.h.b16 %v245
  %v1036 = vunpack.c.l.b16 %v246
  %v1037 = vunpack.c.h.b16 %v246
  %v1038 = vunpack.c.l.b16 %v247
  %v1039 = vunpack.c.h.b16 %v247
  %v1040 = vunpack.c.l.b16 %v248
  %v1041 = vunpack.c.h.b16 %v248
  %v1042 = vunpack.c.l.b16 %v249
  %v1043 = vunpack.c.h.b16 %v249
  %v1044 = vunpack.c.l.b16 %v250
  %v1045 = vunpack.c.h.b16 %v250
  %v1046 = vunpack.c.l.b16 %v251
  %v1047 = vunpack.c.h.b16 %v251
  %v1048 = vunpack.c.l.b16 %v252
  %v1049 = vunpack.c.h.b16 %v252
  %v1050 = vunpack.c.l.b16 %v253
  %v1051 = vunpack.c.h.b16 %v253
  %v1052 = vunpack.c.l.b16 %v254
  %v1053 = vunpack.c.h.b16 %v254
  %v1054 = vunpack.c.l.b16 %v255
  %v1055 = vunpack.c.h.b16 %v255
  %v1056 = vunpack.c.l.b16 %v256
  %v1057 = vunpack.c.h.b16 %v256
  %v1058 = vunpack.c.l.b16 %v257
  %v1059 = vunpack.c.h.b16 %v257
  %v1060 = vunpack.c.l.b16 %v258
  %v1061 = vunpack.c.h.b16 %v258
  %v1062 = vunpack.c.l.b16 %v259
  %v1063 = vunpack.c.h.b16 %v259
  %v1064 = vunpack.c.l.b16 %v260
  %v1065 = vunpack.c.h.b16 %v260
  %v1066 = vunpack.c.l.b16 %v261
  %v1067 = vunpack.c.h.b16 %v261
  %v1068 = vunpack.c.l.b16 %v262
  %v1069 = vunpack.c.h.b16 %v262
  %v1070 = vunpack.c.l.b16 %v263
  %v1071 = vunpack.c.h.b16 %v263
  %v1072 = vunpack.c.l.b16 %v264
  %v1073 = vunpack.c.h.b16 %v264
  %v1074 = vunpack.c.l.b16 %v265
  %v1075 = vunpack.c.h.b16 %v265
  %v1076 = vunpack.c.l.b16 %v266
  %v1077 = vunpack.c.h.b16 %v266
  %v1078 = vunpack.c.l.b16 %v267
  %v1079 = vunpack.c.h.b16 %v267
  %v1080 = vunpack.c.l.b16 %v268
  %v1081 = vunpack.c.h.b16 %v268
  %v1082 = vunpack.c.l.b16 %v269
  %v1083 = vunpack.c.h.b16 %v269
  %v1084 = vunpack.c.l.b16 %v270
  %v1085 = vunpack.c.h.b16 %v270
  %v1086 = vunpack.c.l.b16 %v271
  %v1087 = vunpack.c.h.b16 %v271
  %v1088 = vunpack.c.l.b16 %v272
  %v1089 = vunpack.c.h.b16 %v272
  %v1090 = vunpack.c.l.b16 %v273
  %v1091 = vunpack.c.h.b16 %v273
  %v1092 = vpack.c.b16 %v584, %v580
  %v1093 = vpack.c.b16 %v585, %v581
  %v1094 = vpack.c.b16 %v586, %v582
  %v1095 = vpack.c.b16 %v587, %v583
  %v1096 = vpack.c.b16 %v592, %v588
  %v1097 = vpack.c.b16 %v593, %v589
  %v1098 = vpack.c.b16 %v594, %v590
  %v1099 = vpack.c.b16 %v595, %v591
  %v1100 = vpack.c.b16 %v600, %v596
  %v1101 = vpack.c.b16 %v601, %v597
  %v1102 = vpack.c.b16 %v602, %v598
  %v1103 = vpack.c.b16 %v603, %v599
  %v1104 = vpack.c.b16 %v608, %v604
  %v1105 = vpack.c.b16 %v609, %v605
  %v1106 = vpack.c.b16 %v610, %v606
  %v1107 = vpack.c.b16 %v611, %v607
  %v1108 = vpack.c.b16 %v616, %v612
  %v1109 = vpack.c.b16 %v617, %v613
  %v1110 = vpack.c.b16 %v618, %v614
  %v1111 = vpack.c.b16 %v619, %v615
  %v1112 = vpack.c.b16 %v624, %v620
  %v1113 = vpack.c.b16 %v625, %v621
  %v1114 = vpack.c.b16 %v626, %v622
  %v1115 = vpack.c.b16 %v627, %v623
  %v1116 = vpack.c.b16 %v632, %v628
  %v1117 = vpack.c.b16 %v633, %v629
  %v1118 = vpack.c.b16 %v634, %v630
  %v1119 = vpack.c.b16 %v635, %v631
  %v1120 = vpack.c.b16 %v640, %v636
  %v1121 = vpack.c.b16 %v641, %v637
  %v1122 = vpack.c.b16 %v642, %v638
  %v1123 = vpack.c.b16 %v643, %v639
  %v1124 = vpack.c.b16 %v648, %v644
  %v1125 = vpack.c.b16 %v649, %v645
  %v1126 = vpack.c.b16 %v650, %v646
  %v1127 = vpack.c.b16 %v651, %v647
  %v1128 = vpack.c.b16 %v656, %v652
  %v1129 = vpack.c.b16 %v657, %v653
  %v1130 = vpack.c.b16 %v658, %v654
  %v1131 = vpack.c.b16 %v659, %v655
  %v1132 = vpack.c.b16 %v664, %v660
  %v1133 = vpack.c.b16 %v665, %v661
  %v1134 = vpack.c.b16 %v666, %v662
  %v1135 = vpack.c.b16 %v667, %v663
  %v1136 = vpack.c.b16 %v672, %v668
  %v1137 = vpack.c.b16 %v673, %v669
  %v1138 = vpack.c.b16 %v674, %v670
  %v1139 = vpack.c.b16 %v675, %v671
  %v1140 = vpack.c.b16 %v680, %v676
  %v1141 = vpack.c.b16 %v681, %v677
  %v1142 = vpack.c.b16 %v682, %v678
  %v1143 = vpack.c.b16 %v683, %v679
  %v1144 = vpack.c.b16 %v688, %v684
  %v1145 = vpack.c.b16 %v689, %v685
  %v1146 = vpack.c.b16 %v690, %v686
  %v1147 = vpack.c.b16 %v691, %v687
  %v1148 = vpack.c.b16 %v696, %v692
  %v1149 = vpack.c.b16 %v697, %v693
  %v1150 = vpack.c.b16 %v698, %v694
  %v1151 = vpack.c.b16 %v699, %v695
  %v1152 = vpack.c.b16 %v704, %v700
  %v1153 = vpack.c.b16 %v705, %v701
  %v1154 = vpack.c.b16 %v706, %v702
  %v1155 = vpack.c.b16 %v707, %v703
  %v1156 = vpack.c.b16 %v712, %v708
  %v1157 = vpack.c.b16 %v713, %v709
  %v1158 = vpack.c.b16 %v714, %v710
  %v1159 = vpack.c.b16 %v715, %v711
  %v1160 = vpack.c.b16 %v720, %v716
  %v1161 = vpack.c.b16 %v721, %v717
  %v1162 = vpack.c.b16 %v722, %v718
  %v1163 = vpack.c.b16 %v723, %v719
  %v1164 = vpack.c.b16 %v728, %v724
  %v1165 = vpack.c.b16 %v729, %v725
  %v1166 = vpack.c.b16 %v730, %v726
  %v1167 = vpack.c.b16 %v731, %v727
  %v1168 = vpack.c.b16 %v736, %v732
  %v1169 = vpack.c.b16 %v737, %v733
  %v1170 = vpack.c.b16 %v738, %v734
  %v1171 = vpack.c.b16 %v739, %v735
  %v1172 = vpack.c.b16 %v744, %v740
  %v1173 = vpack.c.b16 %v745, %v741
  %v1174 = vpack.c.b16 %v746, %v742
  %v1175 = vpack.c.b16 %v747, %v743
  %v1176 = vpack.c.b16 %v752, %v748
  %v1177 = vpack.c.b16 %v753, %v749
  %v1178 = vpack.c.b16 %v754, %v750
  %v1179 = vpack.c.b16 %v755, %v751
  %v1180 = vpack.c.b16 %v760, %v756
  %v1181 = vpack.c.b16 %v761, %v757
  %v1182 = vpack.c.b16 %v762, %v758
  %v1183 = vpack.c.b16 %v763, %v759
  %v1184 = vpack.c.b16 %v768, %v764
  %v1185 = vpack.c.b16 %v769, %v765
  %v1186 = vpack.c.b16 %v770, %v766
  %v1187 = vpack.c.b16 %v771, %v767
  %v1188 = vpack.c.b16 %v776, %v772
  %v1189 = vpack.c.b16 %v777, %v773
  %v1190 = vpack.c.b16 %v778, %v774
  %v1191 = vpack.c.b16 %v779, %v775
  %v1192 = vpack.c.b16 %v784, %v780
  %v1193 = vpack.c.b16 %v785, %v781
  %v1194 = vpack.c.b16 %v786, %v782
  %v1195 = vpack.c.b16 %v787, %v783
  %v1196 = vpack.c.b16 %v792, %v788
  %v1197 = vpack.c.b16 %v793, %v789
  %v1198 = vpack.c.b16 %v794, %v790
  %v1199 = vpack.c.b16 %v795, %v791
  %v1200 = vpack.c.b16 %v800, %v796
  %v1201 = vpack.c.b16 %v801, %v797
  %v1202 = vpack.c.b16 %v802, %v798
  %v1203 = vpack.c.b16 %v803, %v799
  %v1204 = vpack.c.b16 %v808, %v804
  %v1205 = vpack.c.b16 %v809, %v805
  %v1206 = vpack.c.b16 %v810, %v806
  %v1207 = vpack.c.b16 %v811, %v807
  %v1208 = vpack.c.b16 %v816, %v812
  %v1209 = vpack.c.b16 %v817, %v813
  %v1210 = vpack.c.b16 %v818, %v814
  %v1211 = vpack.c.b16 %v819, %v815
  %v1212 = vpack.c.b16 %v824, %v820
  %v1213 = vpack.c.b16 %v825, %v821
  %v1214 = vpack.c.b16 %v826, %v822
  %v1215 = vpack.c.b16 %v827, %v823
  %v1216 = vpack.c.b16 %v832, %v828
  %v1217 = vpack.c.b16 %v833, %v829
  %v1218 = vpack.c.b16 %v834, %v830
  %v1219 = vpack.c.b16 %v835, %v831
  %v1220 = vpack.c.b16 %v840, %v836
  %v1221 = vpack.c.b16 %v841, %v837
  %v1222 = vpack.c.b16 %v842, %v838
  %v1223 = vpack.c.b16 %v843, %v839
  %v1224 = vpack.c.b16 %v848, %v844
  %v1225 = vpack.c.b16 %v849, %v845
  %v1226 = vpack.c.b16 %v850, %v846
  %v1227 = vpack.c.b16 %v851, %v847
  %v1228 = vpack.c.b16 %v856, %v852
  %v1229 = vpack.c.b16 %v857, %v853
  %v1230 = vpack.c.b16 %v858, %v854
  %v1231 = vpack.c.b16 %v859, %v855
  %v1232 = vpack.c.b16 %v864, %v860
  %v1233 = vpack.c.b16 %v865, %v861
  %v1234 = vpack.c.b16 %v866, %v862
  %v1235 = vpack.c.b16 %v867, %v863
  %v1236 = vpack.c.b16 %v872, %v868
  %v1237 = vpack.c.b16 %v873, %v869
  %v1238 = vpack.c.b16 %v874, %v870
  %v1239 = vpack.c.b16 %v875, %v871
  %v1240 = vpack.c.b16 %v880, %v876
  %v1241 = vpack.c.b16 %v881, %v877
  %v1242 = vpack.c.b16 %v882, %v878
  %v1243 = vpack.c.b16 %v883, %v879
  %v1244 = vpack.c.b16 %v888, %v884
  %v1245 = vpack.c.b16 %v889, %v885
  %v1246 = vpack.c.b16 %v890, %v886
  %v1247 = vpack.c.b16 %v891, %v887
  %v1248 = vpack.c.b16 %v896, %v892
  %v1249 = vpack.c.b16 %v897, %v893
  %v1250 = vpack.c.b16 %v898, %v894
  %v1251 = vpack.c.b16 %v899, %v895
  %v1252 = vpack.c.b16 %v904, %v900
  %v1253 = vpack.c.b16 %v905, %v901
  %v1254 = vpack.c.b16 %v906, %v902
  %v1255 = vpack.c.b16 %v907, %v903
  %v1256 = vpack.c.b16 %v912, %v908
  %v1257 = vpack.c.b16 %v913, %v909
  %v1258 = vpack.c.b16 %v914, %v910
  %v1259 = vpack.c.b16 %v915, %v911
  %v1260 = vpack.c.b16 %v920, %v916
  %v1261 = vpack.c.b16 %v921, %v917
  %v1262 = vpack.c.b16 %v922, %v918
  %v1263 = vpack.c.b16 %v923, %v919
  %v1264 = vpack.c.b16 %v928, %v924
  %v1265 = vpack.c.b16 %v929, %v925
  %v1266 = vpack.c.b16 %v930, %v926
  %v1267 = vpack.c.b16 %v931, %v927
  %v1268 = vpack.c.b16 %v936, %v932
  %v1269 = vpack.c.b16 %v937, %v933
  %v1270 = vpack.c.b16 %v938, %v934
  %v1271 = vpack.c.b16 %v939, %v935
  %v1272 = vpack.c.b16 %v944, %v940
  %v1273 = vpack.c.b16 %v945, %v941
  %v1274 = vpack.c.b16 %v946, %v942
  %v1275 = vpack.c.b16 %v947, %v943
  %v1276 = vpack.c.b16 %v952, %v948
  %v1277 = vpack.c.b16 %v953, %v949
  %v1278 = vpack.c.b16 %v954, %v950
  %v1279 = vpack.c.b16 %v955, %v951
  %v1280 = vpack.c.b16 %v960, %v956
  %v1281 = vpack.c.b16 %v961, %v957
  %v1282 = vpack.c.b16 %v962, %v958
  %v1283 = vpack.c.b16 %v963, %v959
  %v1284 = vpack.c.b16 %v968, %v964
  %v1285 = vpack.c.b16 %v969, %v965
  %v1286 = vpack.c.b16 %v970, %v966
  %v1287 = vpack.c.b16 %v971, %v967
  %v1288 = vpack.c.b16 %v976, %v972
  %v1289 = vpack.c.b16 %v977, %v973
  %v1290 = vpack.c.b16 %v978, %v974
  %v1291 = vpack.c.b16 %v979, %v975
  %v1292 = vpack.c.b16 %v984, %v980
  %v1293 = vpack.c.b16 %v985, %v981
  %v1294 = vpack.c.b16 %v986, %v982
  %v1295 = vpack.c.b16 %v987, %v983
  %v1296 = vpack.c.b16 %v992, %v988
  %v1297 = vpack.c.b16 %v993, %v989
  %v1298 = vpack.c.b16 %v994, %v990
  %v1299 = vpack.c.b16 %v995, %v991
  %v1300 = vpack.c.b16 %v1000, %v996
  %v1301 = vpack.c.b16 %v1001, %v997
  %v1302 = vpack.c.b16 %v1002, %v998
  %v1303 = vpack.c.b16 %v1003, %v999
  %v1304 = vpack.c.b16 %v1008, %v1004
  %v1305 = vpack.c.b16 %v1009, %v1005
  %v1306 = vpack.c.b16 %v1010, %v1006
  %v1307 = vpack.c.b16 %v1011, %v1007
  %v1308 = vpack.c.b16 %v1016, %v1012
  %v1309 = vpack.c.b16 %v1017, %v1013
  %v1310 = vpack.c.b16 %v1018, %v1014
  %v1311 = vpack.c.b16 %v1019, %v1015
  %v1312 = vpack.c.b16 %v1024, %v1020
  %v1313 = vpack.c.b16 %v1025, %v1021
  %v1314 = vpack.c.b16 %v1026, %v1022
  %v1315 = vpack.c.b16 %v1027, %v1023
  %v1316 = vpack.c.b16 %v1032, %v1028
  %v1317 = vpack.c.b16 %v1033, %v1029
  %v1318 = vpack.c.b16 %v1034, %v1030
  %v1319 = vpack.c.b16 %v1035, %v1031
  %v1320 = vpack.c.b16 %v1040, %v1036
  %v1321 = vpack.c.b16 %v1041, %v1037
  %v1322 = vpack.c.b16 %v1042, %v1038
  %v1323 = vpack.c.b16 %v1043, %v1039
  %v1324 = vpack.c.b16 %v1048, %v1044
  %v1325 = vpack.c.b16 %v1049, %v1045
  %v1326 = vpack.c.b16 %v1050, %v1046
  %v1327 = vpack.c.b16 %v1051, %v1047
  %v1328 = vpack.c.b16 %v1056, %v1052
  %v1329 = vpack.c.b16 %v1057, %v1053
  %v1330 = vpack.c.b16 %v1058, %v1054
  %v1331 = vpack.c.b16 %v1059, %v1055
  %v1332 = vpack.c.b16 %v1064, %v1060
  %v1333 = vpack.c.b16 %v1065, %v1061
  %v1334 = vpack.c.b16 %v1066, %v1062
  %v1335 = vpack.c.b16 %v1067, %v1063
  %v1336 = vpack.c.b16 %v1072, %v1068
  %v1337 = vpack.c.b16 %v1073, %v1069
  %v1338 = vpack.c.b16 %v1074, %v1070
  %v1339 = vpack.c.b16 %v1075, %v1071
  %v1340 = vpack.c.b16 %v1080, %v1076
  %v1341 = vpack.c.b16 %v1081, %v1077
  %v1342 = vpack.c.b16 %v1082, %v1078
  %v1343 = vpack.c.b16 %v1083, %v1079
  %v1344 = vpack.c.b16 %v1088, %v1084
  %v1345 = vpack.c.b16 %v1089, %v1085
  %v1346 = vpack.c.b16 %v1090, %v1086
  %v1347 = vpack.c.b16 %v1091, %v1087
  %1604 = vmatprep.subr.bf16.mxu0 %v1093
  %1605 = vmatpush1.bf16.msra.mxu0 %v1092
  %1606 = vmatprep.subr.bf16.mxu0 %v1097
  %1607 = vmatpush1.bf16.msra.mxu0 %v1096
  %1608 = vmatprep.subr.bf16.mxu0 %v1101
  %1609 = vmatpush1.bf16.msra.mxu0 %v1100
  %1610 = vmatprep.subr.bf16.mxu0 %v1105
  %1611 = vmatpush1.bf16.msra.mxu0 %v1104
  %1612 = vmatprep.subr.bf16.mxu0 %v1109
  %1613 = vmatpush1.bf16.msra.mxu0 %v1108
  %1614 = vmatprep.subr.bf16.mxu0 %v1113
  %1615 = vmatpush1.bf16.msra.mxu0 %v1112
  %1616 = vmatprep.subr.bf16.mxu0 %v1117
  %1617 = vmatpush1.bf16.msra.mxu0 %v1116
  %1618 = vmatprep.subr.bf16.mxu0 %v1121
  %1619 = vmatpush1.bf16.msra.mxu0 %v1120
  %1620 = vmatprep.subr.bf16.mxu0 %v1125
  %1621 = vmatpush1.bf16.msra.mxu0 %v1124
  %1622 = vmatprep.subr.bf16.mxu0 %v1129
  %1623 = vmatpush1.bf16.msra.mxu0 %v1128
  %1624 = vmatprep.subr.bf16.mxu0 %v1133
  %1625 = vmatpush1.bf16.msra.mxu0 %v1132
  %1626 = vmatprep.subr.bf16.mxu0 %v1137
  %1627 = vmatpush1.bf16.msra.mxu0 %v1136
  %1628 = vmatprep.subr.bf16.mxu0 %v1141
  %1629 = vmatpush1.bf16.msra.mxu0 %v1140
  %1630 = vmatprep.subr.bf16.mxu0 %v1145
  %1631 = vmatpush1.bf16.msra.mxu0 %v1144
  %1632 = vmatprep.subr.bf16.mxu0 %v1149
  %1633 = vmatpush1.bf16.msra.mxu0 %v1148
  %1634 = vmatprep.subr.bf16.mxu0 %v1153
  %1635 = vmatpush1.bf16.msra.mxu0 %v1152
  %1636 = vmatprep.mubr.bf16.mxu0 %v309
  %1637 = vmatmul.mubr.bf16.gmra.mrb[0].mxu0 %v308
  %v1638 = vpop.f32.mrb[0].mxu0
  %v1639 = vadd.f32 %v279, %v1638
  %v1640 = vpop.f32.mrb[0].mxu0
  %v1641 = vadd.f32 %v283, %v1640
  %v1642 = vpop.f32.mrb[0].mxu0
  %v1643 = vpop.f32.mrb[0].mxu0
  %1644 = vdwg.mxu0
  %1645 = vmatprep.subr.bf16.mxu0 %v1157
  %1646 = vmatpush1.bf16.msra.mxu0 %v1156
  %1647 = vmatprep.subr.bf16.mxu0 %v1161
  %1648 = vmatpush1.bf16.msra.mxu0 %v1160
  %1649 = vmatprep.subr.bf16.mxu0 %v1165
  %1650 = vmatpush1.bf16.msra.mxu0 %v1164
  %1651 = vmatprep.subr.bf16.mxu0 %v1169
  %1652 = vmatpush1.bf16.msra.mxu0 %v1168
  %1653 = vmatprep.subr.bf16.mxu0 %v1173
  %1654 = vmatpush1.bf16.msra.mxu0 %v1172
  %1655 = vmatprep.subr.bf16.mxu0 %v1177
  %1656 = vmatpush1.bf16.msra.mxu0 %v1176
  %1657 = vmatprep.subr.bf16.mxu0 %v1181
  %1658 = vmatpush1.bf16.msra.mxu0 %v1180
  %1659 = vmatprep.subr.bf16.mxu0 %v1185
  %1660 = vmatpush1.bf16.msra.mxu0 %v1184
  %1661 = vmatprep.subr.bf16.mxu0 %v1189
  %1662 = vmatpush1.bf16.msra.mxu0 %v1188
  %1663 = vmatprep.subr.bf16.mxu0 %v1193
  %1664 = vmatpush1.bf16.msra.mxu0 %v1192
  %1665 = vmatprep.subr.bf16.mxu0 %v1197
  %1666 = vmatpush1.bf16.msra.mxu0 %v1196
  %1667 = vmatprep.subr.bf16.mxu0 %v1201
  %1668 = vmatpush1.bf16.msra.mxu0 %v1200
  %1669 = vmatprep.subr.bf16.mxu0 %v1205
  %1670 = vmatpush1.bf16.msra.mxu0 %v1204
  %1671 = vmatprep.subr.bf16.mxu0 %v1209
  %1672 = vmatpush1.bf16.msra.mxu0 %v1208
  %1673 = vmatprep.subr.bf16.mxu0 %v1213
  %1674 = vmatpush1.bf16.msra.mxu0 %v1212
  %1675 = vmatprep.subr.bf16.mxu0 %v1217
  %1676 = vmatpush1.bf16.msra.mxu0 %v1216
  %1677 = vmatprep.mubr.bf16.mxu0 %v311
  %1678 = vmatmul.mubr.bf16.gmra.mrb[0].mxu0 %v310
  %v1679 = vpop.f32.mrb[0].mxu0
  %v1680 = vadd.f32 %v1639, %v1679
  %v1681 = vpop.f32.mrb[0].mxu0
  %v1682 = vadd.f32 %v1641, %v1681
  %v1683 = vpop.f32.mrb[0].mxu0
  %v1684 = vpop.f32.mrb[0].mxu0
  %1685 = vdwg.mxu0
  %1686 = vmatprep.subr.bf16.mxu0 %v1221
  %1687 = vmatpush1.bf16.msra.mxu0 %v1220
  %1688 = vmatprep.subr.bf16.mxu0 %v1225
  %1689 = vmatpush1.bf16.msra.mxu0 %v1224
  %1690 = vmatprep.subr.bf16.mxu0 %v1229
  %1691 = vmatpush1.bf16.msra.mxu0 %v1228
  %1692 = vmatprep.subr.bf16.mxu0 %v1233
  %1693 = vmatpush1.bf16.msra.mxu0 %v1232
  %1694 = vmatprep.subr.bf16.mxu0 %v1237
  %1695 = vmatpush1.bf16.msra.mxu0 %v1236
  %1696 = vmatprep.subr.bf16.mxu0 %v1241
  %1697 = vmatpush1.bf16.msra.mxu0 %v1240
  %1698 = vmatprep.subr.bf16.mxu0 %v1245
  %1699 = vmatpush1.bf16.msra.mxu0 %v1244
  %1700 = vmatprep.subr.bf16.mxu0 %v1249
  %1701 = vmatpush1.bf16.msra.mxu0 %v1248
  %1702 = vmatprep.subr.bf16.mxu0 %v1253
  %1703 = vmatpush1.bf16.msra.mxu0 %v1252
  %1704 = vmatprep.subr.bf16.mxu0 %v1257
  %1705 = vmatpush1.bf16.msra.mxu0 %v1256
  %1706 = vmatprep.subr.bf16.mxu0 %v1261
  %1707 = vmatpush1.bf16.msra.mxu0 %v1260
  %1708 = vmatprep.subr.bf16.mxu0 %v1265
  %1709 = vmatpush1.bf16.msra.mxu0 %v1264
  %1710 = vmatprep.subr.bf16.mxu0 %v1269
  %1711 = vmatpush1.bf16.msra.mxu0 %v1268
  %1712 = vmatprep.subr.bf16.mxu0 %v1273
  %1713 = vmatpush1.bf16.msra.mxu0 %v1272
  %1714 = vmatprep.subr.bf16.mxu0 %v1277
  %1715 = vmatpush1.bf16.msra.mxu0 %v1276
  %1716 = vmatprep.subr.bf16.mxu0 %v1281
  %1717 = vmatpush1.bf16.msra.mxu0 %v1280
  %1718 = vmatprep.mubr.bf16.mxu0 %v313
  %1719 = vmatmul.mubr.bf16.gmra.mrb[0].mxu0 %v312
  %v1720 = vpop.f32.mrb[0].mxu0
  %v1721 = vadd.f32 %v1680, %v1720
  %v1722 = vpop.f32.mrb[0].mxu0
  %v1723 = vadd.f32 %v1682, %v1722
  %v1724 = vpop.f32.mrb[0].mxu0
  %v1725 = vpop.f32.mrb[0].mxu0
  %1726 = vdwg.mxu0
  %1727 = vmatprep.subr.bf16.mxu0 %v1285
  %1728 = vmatpush1.bf16.msra.mxu0 %v1284
  %1729 = vmatprep.subr.bf16.mxu0 %v1289
  %1730 = vmatpush1.bf16.msra.mxu0 %v1288
  %1731 = vmatprep.subr.bf16.mxu0 %v1293
  %1732 = vmatpush1.bf16.msra.mxu0 %v1292
  %1733 = vmatprep.subr.bf16.mxu0 %v1297
  %1734 = vmatpush1.bf16.msra.mxu0 %v1296
  %1735 = vmatprep.subr.bf16.mxu0 %v1301
  %1736 = vmatpush1.bf16.msra.mxu0 %v1300
  %1737 = vmatprep.subr.bf16.mxu0 %v1305
  %1738 = vmatpush1.bf16.msra.mxu0 %v1304
  %1739 = vmatprep.subr.bf16.mxu0 %v1309
  %1740 = vmatpush1.bf16.msra.mxu0 %v1308
  %1741 = vmatprep.subr.bf16.mxu0 %v1313
  %1742 = vmatpush1.bf16.msra.mxu0 %v1312
  %1743 = vmatprep.subr.bf16.mxu0 %v1317
  %1744 = vmatpush1.bf16.msra.mxu0 %v1316
  %1745 = vmatprep.subr.bf16.mxu0 %v1321
  %1746 = vmatpush1.bf16.msra.mxu0 %v1320
  %1747 = vmatprep.subr.bf16.mxu0 %v1325
  %1748 = vmatpush1.bf16.msra.mxu0 %v1324
  %1749 = vmatprep.subr.bf16.mxu0 %v1329
  %1750 = vmatpush1.bf16.msra.mxu0 %v1328
  %1751 = vmatprep.subr.bf16.mxu0 %v1333
  %1752 = vmatpush1.bf16.msra.mxu0 %v1332
  %1753 = vmatprep.subr.bf16.mxu0 %v1337
  %1754 = vmatpush1.bf16.msra.mxu0 %v1336
  %1755 = vmatprep.subr.bf16.mxu0 %v1341
  %1756 = vmatpush1.bf16.msra.mxu0 %v1340
  %1757 = vmatprep.subr.bf16.mxu0 %v1345
  %1758 = vmatpush1.bf16.msra.mxu0 %v1344
  %1759 = vmatprep.mubr.bf16.mxu0 %v315
  %1760 = vmatmul.mubr.bf16.gmra.mrb[0].mxu0 %v314
  %v1761 = vpop.f32.mrb[0].mxu0
  %v1762 = vadd.f32 %v1721, %v1761
  %v1763 = vpop.f32.mrb[0].mxu0
  %v1764 = vadd.f32 %v1723, %v1763
  %v1765 = vpop.f32.mrb[0].mxu0
  %v1766 = vpop.f32.mrb[0].mxu0
  %1767 = vdwg.mxu0
  %1768 = vmatprep.subr.bf16.mxu0 %v1095
  %1769 = vmatpush1.bf16.msra.mxu0 %v1094
  %1770 = vmatprep.subr.bf16.mxu0 %v1099
  %1771 = vmatpush1.bf16.msra.mxu0 %v1098
  %1772 = vmatprep.subr.bf16.mxu0 %v1103
  %1773 = vmatpush1.bf16.msra.mxu0 %v1102
  %1774 = vmatprep.subr.bf16.mxu0 %v1107
  %1775 = vmatpush1.bf16.msra.mxu0 %v1106
  %1776 = vmatprep.subr.bf16.mxu0 %v1111
  %1777 = vmatpush1.bf16.msra.mxu0 %v1110
  %1778 = vmatprep.subr.bf16.mxu0 %v1115
  %1779 = vmatpush1.bf16.msra.mxu0 %v1114
  %1780 = vmatprep.subr.bf16.mxu0 %v1119
  %1781 = vmatpush1.bf16.msra.mxu0 %v1118
  %1782 = vmatprep.subr.bf16.mxu0 %v1123
  %1783 = vmatpush1.bf16.msra.mxu0 %v1122
  %1784 = vmatprep.subr.bf16.mxu0 %v1127
  %1785 = vmatpush1.bf16.msra.mxu0 %v1126
  %1786 = vmatprep.subr.bf16.mxu0 %v1131
  %1787 = vmatpush1.bf16.msra.mxu0 %v1130
  %1788 = vmatprep.subr.bf16.mxu0 %v1135
  %1789 = vmatpush1.bf16.msra.mxu0 %v1134
  %1790 = vmatprep.subr.bf16.mxu0 %v1139
  %1791 = vmatpush1.bf16.msra.mxu0 %v1138
  %1792 = vmatprep.subr.bf16.mxu0 %v1143
  %1793 = vmatpush1.bf16.msra.mxu0 %v1142
  %1794 = vmatprep.subr.bf16.mxu0 %v1147
  %1795 = vmatpush1.bf16.msra.mxu0 %v1146
  %1796 = vmatprep.subr.bf16.mxu0 %v1151
  %1797 = vmatpush1.bf16.msra.mxu0 %v1150
  %1798 = vmatprep.subr.bf16.mxu0 %v1155
  %1799 = vmatpush1.bf16.msra.mxu0 %v1154
  %1800 = vmatprep.mubr.bf16.mxu0 %v309
  %1801 = vmatmul.mubr.bf16.gmra.mrb[0].mxu0 %v308
  %v1802 = vpop.f32.mrb[0].mxu0
  %v1803 = vadd.f32 %v287, %v1802
  %v1804 = vpop.f32.mrb[0].mxu0
  %v1805 = vadd.f32 %v291, %v1804
  %v1806 = vpop.f32.mrb[0].mxu0
  %v1807 = vpop.f32.mrb[0].mxu0
  %1808 = vdwg.mxu0
  %1809 = vmatprep.subr.bf16.mxu0 %v1159
  %1810 = vmatpush1.bf16.msra.mxu0 %v1158
  %1811 = vmatprep.subr.bf16.mxu0 %v1163
  %1812 = vmatpush1.bf16.msra.mxu0 %v1162
  %1813 = vmatprep.subr.bf16.mxu0 %v1167
  %1814 = vmatpush1.bf16.msra.mxu0 %v1166
  %1815 = vmatprep.subr.bf16.mxu0 %v1171
  %1816 = vmatpush1.bf16.msra.mxu0 %v1170
  %1817 = vmatprep.subr.bf16.mxu0 %v1175
  %1818 = vmatpush1.bf16.msra.mxu0 %v1174
  %1819 = vmatprep.subr.bf16.mxu0 %v1179
  %1820 = vmatpush1.bf16.msra.mxu0 %v1178
  %1821 = vmatprep.subr.bf16.mxu0 %v1183
  %1822 = vmatpush1.bf16.msra.mxu0 %v1182
  %1823 = vmatprep.subr.bf16.mxu0 %v1187
  %1824 = vmatpush1.bf16.msra.mxu0 %v1186
  %1825 = vmatprep.subr.bf16.mxu0 %v1191
  %1826 = vmatpush1.bf16.msra.mxu0 %v1190
  %1827 = vmatprep.subr.bf16.mxu0 %v1195
  %1828 = vmatpush1.bf16.msra.mxu0 %v1194
  %1829 = vmatprep.subr.bf16.mxu0 %v1199
  %1830 = vmatpush1.bf16.msra.mxu0 %v1198
  %1831 = vmatprep.subr.bf16.mxu0 %v1203
  %1832 = vmatpush1.bf16.msra.mxu0 %v1202
  %1833 = vmatprep.subr.bf16.mxu0 %v1207
  %1834 = vmatpush1.bf16.msra.mxu0 %v1206
  %1835 = vmatprep.subr.bf16.mxu0 %v1211
  %1836 = vmatpush1.bf16.msra.mxu0 %v1210
  %1837 = vmatprep.subr.bf16.mxu0 %v1215
  %1838 = vmatpush1.bf16.msra.mxu0 %v1214
  %1839 = vmatprep.subr.bf16.mxu0 %v1219
  %1840 = vmatpush1.bf16.msra.mxu0 %v1218
  %1841 = vmatprep.mubr.bf16.mxu0 %v311
  %1842 = vmatmul.mubr.bf16.gmra.mrb[0].mxu0 %v310
  %v1843 = vpop.f32.mrb[0].mxu0
  %v1844 = vadd.f32 %v1803, %v1843
  %v1845 = vpop.f32.mrb[0].mxu0
  %v1846 = vadd.f32 %v1805, %v1845
  %v1847 = vpop.f32.mrb[0].mxu0
  %v1848 = vpop.f32.mrb[0].mxu0
  %1849 = vdwg.mxu0
  %1850 = vmatprep.subr.bf16.mxu0 %v1223
  %1851 = vmatpush1.bf16.msra.mxu0 %v1222
  %1852 = vmatprep.subr.bf16.mxu0 %v1227
  %1853 = vmatpush1.bf16.msra.mxu0 %v1226
  %1854 = vmatprep.subr.bf16.mxu0 %v1231
  %1855 = vmatpush1.bf16.msra.mxu0 %v1230
  %1856 = vmatprep.subr.bf16.mxu0 %v1235
  %1857 = vmatpush1.bf16.msra.mxu0 %v1234
  %1858 = vmatprep.subr.bf16.mxu0 %v1239
  %1859 = vmatpush1.bf16.msra.mxu0 %v1238
  %1860 = vmatprep.subr.bf16.mxu0 %v1243
  %1861 = vmatpush1.bf16.msra.mxu0 %v1242
  %1862 = vmatprep.subr.bf16.mxu0 %v1247
  %1863 = vmatpush1.bf16.msra.mxu0 %v1246
  %1864 = vmatprep.subr.bf16.mxu0 %v1251
  %1865 = vmatpush1.bf16.msra.mxu0 %v1250
  %1866 = vmatprep.subr.bf16.mxu0 %v1255
  %1867 = vmatpush1.bf16.msra.mxu0 %v1254
  %1868 = vmatprep.subr.bf16.mxu0 %v1259
  %1869 = vmatpush1.bf16.msra.mxu0 %v1258
  %1870 = vmatprep.subr.bf16.mxu0 %v1263
  %1871 = vmatpush1.bf16.msra.mxu0 %v1262
  %1872 = vmatprep.subr.bf16.mxu0 %v1267
  %1873 = vmatpush1.bf16.msra.mxu0 %v1266
  %1874 = vmatprep.subr.bf16.mxu0 %v1271
  %1875 = vmatpush1.bf16.msra.mxu0 %v1270
  %1876 = vmatprep.subr.bf16.mxu0 %v1275
  %1877 = vmatpush1.bf16.msra.mxu0 %v1274
  %1878 = vmatprep.subr.bf16.mxu0 %v1279
  %1879 = vmatpush1.bf16.msra.mxu0 %v1278
  %1880 = vmatprep.subr.bf16.mxu0 %v1283
  %1881 = vmatpush1.bf16.msra.mxu0 %v1282
  %1882 = vmatprep.mubr.bf16.mxu0 %v313
  %1883 = vmatmul.mubr.bf16.gmra.mrb[0].mxu0 %v312
  %v1884 = vpop.f32.mrb[0].mxu0
  %v1885 = vadd.f32 %v1844, %v1884
  %v1886 = vpop.f32.mrb[0].mxu0
  %v1887 = vadd.f32 %v1846, %v1886
  %v1888 = vpop.f32.mrb[0].mxu0
  %v1889 = vpop.f32.mrb[0].mxu0
  %1890 = vdwg.mxu0
  %1891 = vmatprep.subr.bf16.mxu0 %v1287
  %1892 = vmatpush1.bf16.msra.mxu0 %v1286
  %1893 = vmatprep.subr.bf16.mxu0 %v1291
  %1894 = vmatpush1.bf16.msra.mxu0 %v1290
  %1895 = vmatprep.subr.bf16.mxu0 %v1295
  %1896 = vmatpush1.bf16.msra.mxu0 %v1294
  %1897 = vmatprep.subr.bf16.mxu0 %v1299
  %1898 = vmatpush1.bf16.msra.mxu0 %v1298
  %1899 = vmatprep.subr.bf16.mxu0 %v1303
  %1900 = vmatpush1.bf16.msra.mxu0 %v1302
  %1901 = vmatprep.subr.bf16.mxu0 %v1307
  %1902 = vmatpush1.bf16.msra.mxu0 %v1306
  %1903 = vmatprep.subr.bf16.mxu0 %v1311
  %1904 = vmatpush1.bf16.msra.mxu0 %v1310
  %1905 = vmatprep.subr.bf16.mxu0 %v1315
  %1906 = vmatpush1.bf16.msra.mxu0 %v1314
  %1907 = vmatprep.subr.bf16.mxu0 %v1319
  %1908 = vmatpush1.bf16.msra.mxu0 %v1318
  %1909 = vmatprep.subr.bf16.mxu0 %v1323
  %1910 = vmatpush1.bf16.msra.mxu0 %v1322
  %1911 = vmatprep.subr.bf16.mxu0 %v1327
  %1912 = vmatpush1.bf16.msra.mxu0 %v1326
  %1913 = vmatprep.subr.bf16.mxu0 %v1331
  %1914 = vmatpush1.bf16.msra.mxu0 %v1330
  %1915 = vmatprep.subr.bf16.mxu0 %v1335
  %1916 = vmatpush1.bf16.msra.mxu0 %v1334
  %1917 = vmatprep.subr.bf16.mxu0 %v1339
  %1918 = vmatpush1.bf16.msra.mxu0 %v1338
  %1919 = vmatprep.subr.bf16.mxu0 %v1343
  %1920 = vmatpush1.bf16.msra.mxu0 %v1342
  %1921 = vmatprep.subr.bf16.mxu0 %v1347
  %1922 = vmatpush1.bf16.msra.mxu0 %v1346
  %1923 = vmatprep.mubr.bf16.mxu0 %v315
  %1924 = vmatmul.mubr.bf16.gmra.mrb[0].mxu0 %v314
  %v1925 = vpop.f32.mrb[0].mxu0
  %v1926 = vadd.f32 %v1885, %v1925
  %v1927 = vpop.f32.mrb[0].mxu0
  %v1928 = vadd.f32 %v1887, %v1927
  %v1929 = vpop.f32.mrb[0].mxu0
  %v1930 = vpop.f32.mrb[0].mxu0
  %1931 = vdwg.mxu0
  %v1932 = vmax.f32 %v1762, 0.0
  %v1933 = vmax.f32 %v1764, 0.0
  %v1934 = vmax.f32 %v1926, 0.0
  %v1935 = vmax.f32 %v1928, 0.0
  %v1936 = vpack.c.bf16 %v1932, %v1932
  %v1937 = vpack.c.bf16 %v1933, %v1933
  %v1938 = vpack.c.bf16 %v1934, %v1934
  %v1939 = vpack.c.bf16 %v1935, %v1935
  %v1944 = vunpack.c.l.b16 %v1936
  %v1945 = vunpack.c.l.b16 %v1937
  %v1946 = vunpack.c.l.b16 %v1938
  %v1947 = vunpack.c.l.b16 %v1939
  %v1948 = vpack.c.b16 %v1945, %v1944
  %v1949 = vpack.c.b16 %v1947, %v1946
  %1952 = vst [vmem:[%s3] sm:$0xff] %v1948
  %1953 = vst [vmem:[%s3 + $0x8] sm:$0xff] %v1949
  // Predicated region
  $region14: #{autoencoder_forward.9} parent=0 // pred_check
    _
  $region15: #{autoencoder_forward.9} parent=0 // pred_check_branch
    %1955 = sbr.rel (0) target = $region17
  $region16: #{autoencoder_forward.9} parent=0 // pred_region
    _
  $region17: #{autoencoder_forward.9} parent=0 // pred_fallthru
    _
  // Predicated region
  $region18: #{autoencoder_forward.9} parent=0 // pred_check
    _
  $region19: #{autoencoder_forward.9} parent=0 // pred_check_branch
    %1957 = sbr.rel (0) target = $region21
  $region20: #{autoencoder_forward.9} parent=0 // pred_region
    _
  $region21: #{autoencoder_forward.9} parent=0 // pred_fallthru
    _

// kernel: autoencoder_forward.11
$region0: #{autoencoder_forward.11}
  #allocation0 [shape = 'u32[]', space=smem, size = 0x4, offset = 0x4, fixed_abs, tag = 'smem constant byte address 0x4 - core index']
  #allocation1 [shape = 'u32[144,128]{1,0:T(1,128)}', space=vmem, size = 0x12000, scoped, tag = 'internal scratch']
  %s0 = inlined_call_operand.vmem [shape: bf16[128,256], index: 0, kind: input, shape index: {}]
  %s1 = inlined_call_operand.vmem [shape: bf16[256,12], index: 1, kind: input, shape index: {}]
  %s2 = inlined_call_operand.vmem [shape: f32[1,12], index: 2, kind: input, shape index: {}]
  %s3 = inlined_call_operand.vmem [shape: f32[128,12], index: 3, kind: output, shape index: {}]
  %s4 = sld [smem:[#allocation0]]
  $region22: #{autoencoder_forward.11} parent=0
    _
  %s6 = ssub.s32 1, %s4
  %s7 = scalar_select 0, %s6, %s4
  // Predicated region
  $region2: #{autoencoder_forward.11} parent=0 // pred_check
    _
  $region3: #{autoencoder_forward.11} parent=0 // pred_check_branch
    %9 = sbr.rel (0) target = $region5
  $region4: #{autoencoder_forward.11} parent=0 // pred_region
    _
  $region5: #{autoencoder_forward.11} parent=0 // pred_fallthru
    _
  // Predicated region
  $region6: #{autoencoder_forward.11} parent=0 // pred_check
    _
  $region7: #{autoencoder_forward.11} parent=0 // pred_check_branch
    %11 = sbr.rel (0) target = $region9
  $region8: #{autoencoder_forward.11} parent=0 // pred_region
    _
  $region9: #{autoencoder_forward.11} parent=0 // pred_fallthru
    _
  // Predicated region
  $region10: #{autoencoder_forward.11} parent=0 // pred_check
    _
  $region11: #{autoencoder_forward.11} parent=0 // pred_check_branch
    %13 = sbr.rel (0) target = $region13
  $region12: #{autoencoder_forward.11} parent=0 // pred_region
    _
  $region13: #{autoencoder_forward.11} parent=0 // pred_fallthru
    _
  %v15 = vld [vmem:[%s0] sm:$0xff]
  %v16 = vld [vmem:[%s0 + $0x8] sm:$0xff]
  %v17 = vld [vmem:[%s0 + $0x10] sm:$0xff]
  %v18 = vld [vmem:[%s0 + $0x18] sm:$0xff]
  %v19 = vld [vmem:[%s0 + $0x20] sm:$0xff]
  %v20 = vld [vmem:[%s0 + $0x28] sm:$0xff]
  %v21 = vld [vmem:[%s0 + $0x30] sm:$0xff]
  %v22 = vld [vmem:[%s0 + $0x38] sm:$0xff]
  %v23 = vld [vmem:[%s0 + $0x40] sm:$0xff]
  %v24 = vld [vmem:[%s0 + $0x48] sm:$0xff]
  %v25 = vld [vmem:[%s0 + $0x50] sm:$0xff]
  %v26 = vld [vmem:[%s0 + $0x58] sm:$0xff]
  %v27 = vld [vmem:[%s0 + $0x60] sm:$0xff]
  %v28 = vld [vmem:[%s0 + $0x68] sm:$0xff]
  %v29 = vld [vmem:[%s0 + $0x70] sm:$0xff]
  %v30 = vld [vmem:[%s0 + $0x78] sm:$0xff]
  %v31 = vld [vmem:[%s1] sm:$0xf]
  %v32 = vld [vmem:[%s1 + $0x4] sm:$0xf]
  %v33 = vld [vmem:[%s1 + $0x8] sm:$0xf]
  %v34 = vld [vmem:[%s1 + $0xc] sm:$0xf]
  %v35 = vld [vmem:[%s1 + $0x10] sm:$0xf]
  %v36 = vld [vmem:[%s1 + $0x14] sm:$0xf]
  %v37 = vld [vmem:[%s1 + $0x18] sm:$0xf]
  %v38 = vld [vmem:[%s1 + $0x1c] sm:$0xf]
  %v39 = vld [vmem:[%s1 + $0x20] sm:$0xf]
  %v40 = vld [vmem:[%s1 + $0x24] sm:$0xf]
  %v41 = vld [vmem:[%s1 + $0x28] sm:$0xf]
  %v42 = vld [vmem:[%s1 + $0x2c] sm:$0xf]
  %v43 = vld [vmem:[%s1 + $0x30] sm:$0xf]
  %v44 = vld [vmem:[%s1 + $0x34] sm:$0xf]
  %v45 = vld [vmem:[%s1 + $0x38] sm:$0xf]
  %v46 = vld [vmem:[%s1 + $0x3c] sm:$0xf]
  %v47 = vld [vmem:[%s1 + $0x40] sm:$0xf]
  %v48 = vld [vmem:[%s1 + $0x44] sm:$0xf]
  %v49 = vld [vmem:[%s1 + $0x48] sm:$0xf]
  %v50 = vld [vmem:[%s1 + $0x4c] sm:$0xf]
  %v51 = vld [vmem:[%s1 + $0x50] sm:$0xf]
  %v52 = vld [vmem:[%s1 + $0x54] sm:$0xf]
  %v53 = vld [vmem:[%s1 + $0x58] sm:$0xf]
  %v54 = vld [vmem:[%s1 + $0x5c] sm:$0xf]
  %v55 = vld [vmem:[%s1 + $0x60] sm:$0xf]
  %v56 = vld [vmem:[%s1 + $0x64] sm:$0xf]
  %v57 = vld [vmem:[%s1 + $0x68] sm:$0xf]
  %v58 = vld [vmem:[%s1 + $0x6c] sm:$0xf]
  %v59 = vld [vmem:[%s1 + $0x70] sm:$0xf]
  %v60 = vld [vmem:[%s1 + $0x74] sm:$0xf]
  %v61 = vld [vmem:[%s1 + $0x78] sm:$0xf]
  %v62 = vld [vmem:[%s1 + $0x7c] sm:$0xf]
  %v63 = vld [vmem:[%s2] sm:$0x1]
  %v65 = vlaneseq
  %v66 = vshrl.u32 %v65, 7
  %v67 = vsub.s32 0, %v66
  %v68 = vrot.slane %v63, %v67
  %v86 = vunpack.c.l.b16 %v15
  %v87 = vunpack.c.h.b16 %v15
  %v88 = vunpack.c.l.b16 %v16
  %v89 = vunpack.c.h.b16 %v16
  %v90 = vunpack.c.l.b16 %v17
  %v91 = vunpack.c.h.b16 %v17
  %v92 = vunpack.c.l.b16 %v18
  %v93 = vunpack.c.h.b16 %v18
  %v94 = vunpack.c.l.b16 %v19
  %v95 = vunpack.c.h.b16 %v19
  %v96 = vunpack.c.l.b16 %v20
  %v97 = vunpack.c.h.b16 %v20
  %v98 = vunpack.c.l.b16 %v21
  %v99 = vunpack.c.h.b16 %v21
  %v100 = vunpack.c.l.b16 %v22
  %v101 = vunpack.c.h.b16 %v22
  %v102 = vunpack.c.l.b16 %v23
  %v103 = vunpack.c.h.b16 %v23
  %v104 = vunpack.c.l.b16 %v24
  %v105 = vunpack.c.h.b16 %v24
  %v106 = vunpack.c.l.b16 %v25
  %v107 = vunpack.c.h.b16 %v25
  %v108 = vunpack.c.l.b16 %v26
  %v109 = vunpack.c.h.b16 %v26
  %v110 = vunpack.c.l.b16 %v27
  %v111 = vunpack.c.h.b16 %v27
  %v112 = vunpack.c.l.b16 %v28
  %v113 = vunpack.c.h.b16 %v28
  %v114 = vunpack.c.l.b16 %v29
  %v115 = vunpack.c.h.b16 %v29
  %v116 = vunpack.c.l.b16 %v30
  %v117 = vunpack.c.h.b16 %v30
  %v118 = vpack.c.b16 %v88, %v86
  %v119 = vpack.c.b16 %v89, %v87
  %v120 = vpack.c.b16 %v92, %v90
  %v121 = vpack.c.b16 %v93, %v91
  %v122 = vpack.c.b16 %v96, %v94
  %v123 = vpack.c.b16 %v97, %v95
  %v124 = vpack.c.b16 %v100, %v98
  %v125 = vpack.c.b16 %v101, %v99
  %v126 = vpack.c.b16 %v104, %v102
  %v127 = vpack.c.b16 %v105, %v103
  %v128 = vpack.c.b16 %v108, %v106
  %v129 = vpack.c.b16 %v109, %v107
  %v130 = vpack.c.b16 %v112, %v110
  %v131 = vpack.c.b16 %v113, %v111
  %v132 = vpack.c.b16 %v116, %v114
  %v133 = vpack.c.b16 %v117, %v115
  %v182 = vunpack.c.l.b16 %v31
  %v183 = vunpack.c.l.b16 %v32
  %v184 = vunpack.c.l.b16 %v33
  %v185 = vunpack.c.l.b16 %v34
  %v186 = vunpack.c.l.b16 %v35
  %v187 = vunpack.c.l.b16 %v36
  %v188 = vunpack.c.l.b16 %v37
  %v189 = vunpack.c.l.b16 %v38
  %v190 = vunpack.c.l.b16 %v39
  %v191 = vunpack.c.l.b16 %v40
  %v192 = vunpack.c.l.b16 %v41
  %v193 = vunpack.c.l.b16 %v42
  %v194 = vunpack.c.l.b16 %v43
  %v195 = vunpack.c.l.b16 %v44
  %v196 = vunpack.c.l.b16 %v45
  %v197 = vunpack.c.l.b16 %v46
  %v198 = vunpack.c.l.b16 %v47
  %v199 = vunpack.c.l.b16 %v48
  %v200 = vunpack.c.l.b16 %v49
  %v201 = vunpack.c.l.b16 %v50
  %v202 = vunpack.c.l.b16 %v51
  %v203 = vunpack.c.l.b16 %v52
  %v204 = vunpack.c.l.b16 %v53
  %v205 = vunpack.c.l.b16 %v54
  %v206 = vunpack.c.l.b16 %v55
  %v207 = vunpack.c.l.b16 %v56
  %v208 = vunpack.c.l.b16 %v57
  %v209 = vunpack.c.l.b16 %v58
  %v210 = vunpack.c.l.b16 %v59
  %v211 = vunpack.c.l.b16 %v60
  %v212 = vunpack.c.l.b16 %v61
  %v213 = vunpack.c.l.b16 %v62
  %v214 = vpack.c.b16 %v183, %v182
  %v215 = vpack.c.b16 %v185, %v184
  %v216 = vpack.c.b16 %v187, %v186
  %v217 = vpack.c.b16 %v189, %v188
  %v218 = vpack.c.b16 %v191, %v190
  %v219 = vpack.c.b16 %v193, %v192
  %v220 = vpack.c.b16 %v195, %v194
  %v221 = vpack.c.b16 %v197, %v196
  %v222 = vpack.c.b16 %v199, %v198
  %v223 = vpack.c.b16 %v201, %v200
  %v224 = vpack.c.b16 %v203, %v202
  %v225 = vpack.c.b16 %v205, %v204
  %v226 = vpack.c.b16 %v207, %v206
  %v227 = vpack.c.b16 %v209, %v208
  %v228 = vpack.c.b16 %v211, %v210
  %v229 = vpack.c.b16 %v213, %v212
  %246 = vmatprep.subr.bf16.mxu0 0
  %247 = vmatpush1.bf16.msra.mxu0 %v214
  %248 = vmatprep.subr.bf16.mxu0 0
  %249 = vmatpush1.bf16.msra.mxu0 %v215
  %250 = vmatprep.subr.bf16.mxu0 0
  %251 = vmatpush1.bf16.msra.mxu0 %v216
  %252 = vmatprep.subr.bf16.mxu0 0
  %253 = vmatpush1.bf16.msra.mxu0 %v217
  %254 = vmatprep.subr.bf16.mxu0 0
  %255 = vmatpush1.bf16.msra.mxu0 %v218
  %256 = vmatprep.subr.bf16.mxu0 0
  %257 = vmatpush1.bf16.msra.mxu0 %v219
  %258 = vmatprep.subr.bf16.mxu0 0
  %259 = vmatpush1.bf16.msra.mxu0 %v220
  %260 = vmatprep.subr.bf16.mxu0 0
  %261 = vmatpush1.bf16.msra.mxu0 %v221
  %262 = vmatprep.subr.bf16.mxu0 0
  %263 = vmatpush1.bf16.msra.mxu0 %v222
  %264 = vmatprep.subr.bf16.mxu0 0
  %265 = vmatpush1.bf16.msra.mxu0 %v223
  %266 = vmatprep.subr.bf16.mxu0 0
  %267 = vmatpush1.bf16.msra.mxu0 %v224
  %268 = vmatprep.subr.bf16.mxu0 0
  %269 = vmatpush1.bf16.msra.mxu0 %v225
  %270 = vmatprep.subr.bf16.mxu0 0
  %271 = vmatpush1.bf16.msra.mxu0 %v226
  %272 = vmatprep.subr.bf16.mxu0 0
  %273 = vmatpush1.bf16.msra.mxu0 %v227
  %274 = vmatprep.subr.bf16.mxu0 0
  %275 = vmatpush1.bf16.msra.mxu0 %v228
  %276 = vmatprep.subr.bf16.mxu0 0
  %277 = vmatpush1.bf16.msra.mxu0 %v229
  %278 = vmatprep.mubr.bf16.mxu0 %v119
  %279 = vmatmul.mubr.bf16.gmra.mrb[0].mxu0 %v118
  %v280 = vpop.f32.mrb[0].mxu0
  %v281 = vadd.f32 %v68, %v280
  %v282 = vpop.f32.mrb[0].mxu0
  %v283 = vpop.f32.mrb[0].mxu0
  %v284 = vadd.f32 %v68, %v283
  %v285 = vpop.f32.mrb[0].mxu0
  %286 = vmatprep.mubr.bf16.mxu0 %v121
  %287 = vmatmul.mubr.bf16.gmra.mrb[0].mxu0 %v120
  %v288 = vpop.f32.mrb[0].mxu0
  %v289 = vadd.f32 %v68, %v288
  %v290 = vpop.f32.mrb[0].mxu0
  %v291 = vpop.f32.mrb[0].mxu0
  %v292 = vadd.f32 %v68, %v291
  %v293 = vpop.f32.mrb[0].mxu0
  %294 = vmatprep.mubr.bf16.mxu0 %v123
  %295 = vmatmul.mubr.bf16.gmra.mrb[0].mxu0 %v122
  %v296 = vpop.f32.mrb[0].mxu0
  %v297 = vadd.f32 %v68, %v296
  %v298 = vpop.f32.mrb[0].mxu0
  %v299 = vpop.f32.mrb[0].mxu0
  %v300 = vadd.f32 %v68, %v299
  %v301 = vpop.f32.mrb[0].mxu0
  %302 = vmatprep.mubr.bf16.mxu0 %v125
  %303 = vmatmul.mubr.bf16.gmra.mrb[0].mxu0 %v124
  %v304 = vpop.f32.mrb[0].mxu0
  %v305 = vadd.f32 %v68, %v304
  %v306 = vpop.f32.mrb[0].mxu0
  %v307 = vpop.f32.mrb[0].mxu0
  %v308 = vadd.f32 %v68, %v307
  %v309 = vpop.f32.mrb[0].mxu0
  %310 = vmatprep.mubr.bf16.mxu0 %v127
  %311 = vmatmul.mubr.bf16.gmra.mrb[0].mxu0 %v126
  %v312 = vpop.f32.mrb[0].mxu0
  %v313 = vadd.f32 %v68, %v312
  %v314 = vpop.f32.mrb[0].mxu0
  %v315 = vpop.f32.mrb[0].mxu0
  %v316 = vadd.f32 %v68, %v315
  %v317 = vpop.f32.mrb[0].mxu0
  %318 = vmatprep.mubr.bf16.mxu0 %v129
  %319 = vmatmul.mubr.bf16.gmra.mrb[0].mxu0 %v128
  %v320 = vpop.f32.mrb[0].mxu0
  %v321 = vadd.f32 %v68, %v320
  %v322 = vpop.f32.mrb[0].mxu0
  %v323 = vpop.f32.mrb[0].mxu0
  %v324 = vadd.f32 %v68, %v323
  %v325 = vpop.f32.mrb[0].mxu0
  %326 = vmatprep.mubr.bf16.mxu0 %v131
  %327 = vmatmul.mubr.bf16.gmra.mrb[0].mxu0 %v130
  %v328 = vpop.f32.mrb[0].mxu0
  %v329 = vadd.f32 %v68, %v328
  %v330 = vpop.f32.mrb[0].mxu0
  %v331 = vpop.f32.mrb[0].mxu0
  %v332 = vadd.f32 %v68, %v331
  %v333 = vpop.f32.mrb[0].mxu0
  %334 = vmatprep.mubr.bf16.mxu0 %v133
  %335 = vmatmul.mubr.bf16.gmra.mrb[0].mxu0 %v132
  %v336 = vpop.f32.mrb[0].mxu0
  %v337 = vadd.f32 %v68, %v336
  %v338 = vpop.f32.mrb[0].mxu0
  %v339 = vpop.f32.mrb[0].mxu0
  %v340 = vadd.f32 %v68, %v339
  %v341 = vpop.f32.mrb[0].mxu0
  %342 = vdwg.mxu0
  %v343 = vsub.f32 0.0, %v281
  %v344 = vsub.f32 0.0, %v284
  %v345 = vsub.f32 0.0, %v289
  %v346 = vsub.f32 0.0, %v292
  %v347 = vsub.f32 0.0, %v297
  %v348 = vsub.f32 0.0, %v300
  %v349 = vsub.f32 0.0, %v305
  %v350 = vsub.f32 0.0, %v308
  %v351 = vsub.f32 0.0, %v313
  %v352 = vsub.f32 0.0, %v316
  %v353 = vsub.f32 0.0, %v321
  %v354 = vsub.f32 0.0, %v324
  %v355 = vsub.f32 0.0, %v329
  %v356 = vsub.f32 0.0, %v332
  %v357 = vsub.f32 0.0, %v337
  %v358 = vsub.f32 0.0, %v340
  %v359 = vmul.f32 %v343, 1.442695
  %v360 = vpow.pop %v359
  %v361 = vmul.f32 %v344, 1.442695
  %v362 = vpow.pop %v361
  %v363 = vmul.f32 %v345, 1.442695
  %v364 = vpow.pop %v363
  %v365 = vmul.f32 %v346, 1.442695
  %v366 = vpow.pop %v365
  %v367 = vmul.f32 %v347, 1.442695
  %v368 = vpow.pop %v367
  %v369 = vmul.f32 %v348, 1.442695
  %v370 = vpow.pop %v369
  %v371 = vmul.f32 %v349, 1.442695
  %v372 = vpow.pop %v371
  %v373 = vmul.f32 %v350, 1.442695
  %v374 = vpow.pop %v373
  %v375 = vmul.f32 %v351, 1.442695
  %v376 = vpow.pop %v375
  %v377 = vmul.f32 %v352, 1.442695
  %v378 = vpow.pop %v377
  %v379 = vmul.f32 %v353, 1.442695
  %v380 = vpow.pop %v379
  %v381 = vmul.f32 %v354, 1.442695
  %v382 = vpow.pop %v381
  %v383 = vmul.f32 %v355, 1.442695
  %v384 = vpow.pop %v383
  %v385 = vmul.f32 %v356, 1.442695
  %v386 = vpow.pop %v385
  %v387 = vmul.f32 %v357, 1.442695
  %v388 = vpow.pop %v387
  %v389 = vmul.f32 %v358, 1.442695
  %v390 = vpow.pop %v389
  %v391 = vadd.f32 %v360, 1.0
  %v392 = vadd.f32 %v362, 1.0
  %v393 = vadd.f32 %v364, 1.0
  %v394 = vadd.f32 %v366, 1.0
  %v395 = vadd.f32 %v368, 1.0
  %v396 = vadd.f32 %v370, 1.0
  %v397 = vadd.f32 %v372, 1.0
  %v398 = vadd.f32 %v374, 1.0
  %v399 = vadd.f32 %v376, 1.0
  %v400 = vadd.f32 %v378, 1.0
  %v401 = vadd.f32 %v380, 1.0
  %v402 = vadd.f32 %v382, 1.0
  %v403 = vadd.f32 %v384, 1.0
  %v404 = vadd.f32 %v386, 1.0
  %v405 = vadd.f32 %v388, 1.0
  %v406 = vadd.f32 %v390, 1.0
  %v407 = vrcp.pop %v391
  %v408 = vrcp.pop %v392
  %v409 = vrcp.pop %v393
  %v410 = vrcp.pop %v394
  %v411 = vrcp.pop %v395
  %v412 = vrcp.pop %v396
  %v413 = vrcp.pop %v397
  %v414 = vrcp.pop %v398
  %v415 = vrcp.pop %v399
  %v416 = vrcp.pop %v400
  %v417 = vrcp.pop %v401
  %v418 = vrcp.pop %v402
  %v419 = vrcp.pop %v403
  %v420 = vrcp.pop %v404
  %v421 = vrcp.pop %v405
  %v422 = vrcp.pop %v406
  %vm423 = vcmask 97280
  %424 = vst.msk [vmem:[%s3] sm:$0xff] %vm423, %v407
  %425 = vst.msk [vmem:[%s3 + $0x8] sm:$0xff] %vm423, %v408
  %426 = vst.msk [vmem:[%s3 + $0x10] sm:$0xff] %vm423, %v409
  %427 = vst.msk [vmem:[%s3 + $0x18] sm:$0xff] %vm423, %v410
  %428 = vst.msk [vmem:[%s3 + $0x20] sm:$0xff] %vm423, %v411
  %429 = vst.msk [vmem:[%s3 + $0x28] sm:$0xff] %vm423, %v412
  %430 = vst.msk [vmem:[%s3 + $0x30] sm:$0xff] %vm423, %v413
  %431 = vst.msk [vmem:[%s3 + $0x38] sm:$0xff] %vm423, %v414
  %432 = vst.msk [vmem:[%s3 + $0x40] sm:$0xff] %vm423, %v415
  %433 = vst.msk [vmem:[%s3 + $0x48] sm:$0xff] %vm423, %v416
  %434 = vst.msk [vmem:[%s3 + $0x50] sm:$0xff] %vm423, %v417
  %435 = vst.msk [vmem:[%s3 + $0x58] sm:$0xff] %vm423, %v418
  %436 = vst.msk [vmem:[%s3 + $0x60] sm:$0xff] %vm423, %v419
  %437 = vst.msk [vmem:[%s3 + $0x68] sm:$0xff] %vm423, %v420
  %438 = vst.msk [vmem:[%s3 + $0x70] sm:$0xff] %vm423, %v421
  %439 = vst.msk [vmem:[%s3 + $0x78] sm:$0xff] %vm423, %v422
  // Predicated region
  $region14: #{autoencoder_forward.11} parent=0 // pred_check
    _
  $region15: #{autoencoder_forward.11} parent=0 // pred_check_branch
    %441 = sbr.rel (0) target = $region17
  $region16: #{autoencoder_forward.11} parent=0 // pred_region
    _
  $region17: #{autoencoder_forward.11} parent=0 // pred_fallthru
    _
  // Predicated region
  $region18: #{autoencoder_forward.11} parent=0 // pred_check
    _
  $region19: #{autoencoder_forward.11} parent=0 // pred_check_branch
    %443 = sbr.rel (0) target = $region21
  $region20: #{autoencoder_forward.11} parent=0 // pred_region
    _
  $region21: #{autoencoder_forward.11} parent=0 // pred_fallthru
    _

</llo_original>
